<compile_context>
chip_gen: v7x
topology: tpu7x:2x2x1
jax: 0.10.0
libtpu: 0.0.40
codegen_flags: <defaults>
</compile_context>

<pallas_src>
import functools

import jax
import jax.numpy as jnp
import numpy as np
from jax.experimental import pallas as pl
from jax.experimental.pallas import tpu as pltpu

LANE = 128
SUBLANE = 8


def _round_up(x, m):
    return (x + m - 1) // m * m


@functools.lru_cache(maxsize=None)
def _vmem_capacity_bytes():
    """Per-core VMEM capacity (generation aware); conservative fallback."""
    try:
        cap = int(pltpu.get_tpu_info().vmem_capacity_bytes)
        if cap > 0:
            return cap
    except Exception:
        pass
    return 64 << 20  # v7x per-core size == safe lower bound for v5e/v6e


def _pick_lane_tile(n, cap):
    """Largest multiple of 128 that divides n and is <= cap.
    All padded lane dims are multiples of 128, so this never collapses
    below a full 128-lane tile."""
    assert n % LANE == 0
    t = min(cap, n)
    t -= t % LANE
    while t > LANE and n % t:
        t -= LANE
    return max(t, LANE)


# ----------------------------------------------------------------------------
# Generic tiled linear kernel:  y = x @ w_t + b   (lane-dense, M/N tiled).
# Used for (a) the hoisted GRU input projection over all timesteps and
# (b) the output vocabulary projection.
# ----------------------------------------------------------------------------
def _linear_kernel(x_ref, w_ref, b_ref, o_ref):
    # Cast the activation tile to the weight dtype so bf16 weights actually
    # run the MXU in bf16 (f32 accumulation via preferred_element_type).
    acc = jnp.dot(x_ref[...].astype(w_ref.dtype), w_ref[...],
                  preferred_element_type=jnp.float32)
    o_ref[...] = (acc + b_ref[...]).astype(o_ref.dtype)


def linear(x, w_t, b2d, out_dtype=jnp.float32, block_m=512, block_n=512):
    """x:(M,K), w_t:(K,N) with N a multiple of 128, b2d:(1,N) -> (M,N)."""
    M, K = x.shape
    N = w_t.shape[1]
    cap = _vmem_capacity_bytes()

    TM = min(block_m, _round_up(M, SUBLANE))
    TN = _pick_lane_tile(N, block_n)
    xb, wb = x.dtype.itemsize, w_t.dtype.itemsize
    ob = jnp.dtype(out_dtype).itemsize

    def usage(tm, tn):  # double-buffered block working set
        return 2 * (tm * K * xb + K * tn * wb + tm * tn * ob + tn * 4)

    budget = int(0.35 * cap)
    while usage(TM, TN) > budget and TM > SUBLANE:
        TM = max(SUBLANE, _round_up(TM // 2, SUBLANE))
    while usage(TM, TN) > budget and TN > LANE:
        TN = _pick_lane_tile(N, max(LANE, TN // 2))
    # TODO(synk): tile K with an f32 accumulator for very large reductions.

    Mp = _round_up(M, TM)
    if Mp != M:
        # Pad rows up to the tile instead of shrinking TM to a tiny divisor.
        x = jnp.pad(x, ((0, Mp - M), (0, 0)))

    out = pl.pallas_call(
        _linear_kernel,
        out_shape=jax.ShapeDtypeStruct((Mp, N), out_dtype),
        grid_spec=pltpu.PrefetchScalarGridSpec(
            num_scalar_prefetch=0,
            # Weight-block axis outermost: each weight tile is DMA'd once and
            # stays resident while the activation rows stream through it.
            grid=(N // TN, Mp // TM),
            in_specs=[
                pl.BlockSpec((TM, K), lambda j, i: (i, 0)),
                pl.BlockSpec((K, TN), lambda j, i: (0, j)),
                pl.BlockSpec((1, TN), lambda j, i: (0, j)),
            ],
            out_specs=pl.BlockSpec((TM, TN), lambda j, i: (i, j)),
        ),
        compiler_params=pltpu.CompilerParams(
            dimension_semantics=("parallel", "parallel"),
            vmem_limit_bytes=int(0.5 * cap)),
    )(x, w_t, b2d)
    return out[:M] if Mp != M else out


# ----------------------------------------------------------------------------
# GRU recurrence kernel.  Inputs are the precomputed input-gates
# GI = x @ W_ih^T + b_ih for a chunk of timesteps; per step only the recurrent
# matmul h @ W_hh^T runs.  Gate order follows PyTorch nn.GRU: (r, z, n), each
# gate in its own lane-aligned H_pad slot.  `emit_y` is a static flag: the top
# layer skips the (S, Bp, Hp) hidden-state writeback entirely.
# ----------------------------------------------------------------------------
def _make_gru_kernel(emit_y, unroll):
    def kernel(gi_ref, whh_ref, bhh_ref, h0_ref, *rest):
        if emit_y:
            y_ref, hf_ref, h_scr = rest
        else:
            hf_ref, h_scr = rest
            y_ref = None

        c = pl.program_id(1)  # time-chunk axis (axis 0 = batch blocks)

        @pl.when(c == 0)
        def _():
            h_scr[...] = h0_ref[...].astype(jnp.float32)

        ts = gi_ref.shape[0]
        Hp = h_scr.shape[-1]
        mx_dtype = whh_ref.dtype  # bf16 weights -> bf16 MXU, f32 accumulate

        # TODO(synk): weight-stationary MXU driving (pltpu.matmul_push_rhs of
        # W_hh once per chunk) could further cut the per-step MXU push cost.
        def step(t, h):
            gi = gi_ref[t]                                       # (Bblk, 3*Hp)
            # W_hh / b_hh read straight from VMEM refs each step (no hoisted
            # vreg-resident copy); this matmul is the recurrent critical path.
            gh = jnp.dot(h.astype(mx_dtype), whh_ref[...],
                         preferred_element_type=jnp.float32) + bhh_ref[...]
            r = jax.nn.sigmoid(gi[:, :Hp] + gh[:, :Hp])
            z = jax.nn.sigmoid(gi[:, Hp:2 * Hp] + gh[:, Hp:2 * Hp])
            n = jnp.tanh(gi[:, 2 * Hp:] + r * gh[:, 2 * Hp:])
            h_new = (1.0 - z) * n + z * h
            if emit_y:
                y_ref[t] = h_new.astype(y_ref.dtype)
            return h_new

        h_last = jax.lax.fori_loop(0, ts, step, h_scr[...],
                                   unroll=min(unroll, ts))
        h_scr[...] = h_last

        @pl.when(c == pl.num_programs(1) - 1)
        def _():
            hf_ref[...] = h_last.astype(hf_ref.dtype)

    return kernel


def gru_layer(x_tm, lp, h0_pad, emit_y, compute_dtype):
    """One GRU layer.  x_tm: (S, B_pad, Din_pad) time-major, padded.
    Returns (y or None, h_final: (B_pad, H_pad) f32)."""
    S, Bp, Dp = x_tm.shape
    Hp = h0_pad.shape[-1]
    G = 3 * Hp
    cap = _vmem_capacity_bytes()

    # (1) Hoisted input projection over ALL timesteps; emitted in the compute
    #     dtype (bf16 by default) to halve the GI HBM round trip.
    gi = linear(x_tm.reshape(S * Bp, Dp), lp["w_ih_t"], lp["b_ih"],
                out_dtype=compute_dtype)
    gi = gi.reshape(S, Bp, G)

    # (2) Batch-block axis so v7x megacore can shard the otherwise serial
    #     recurrence across its two TensorCores; keep a native sublane tile of
    #     rows per block (16 for bf16, 8 for f32).
    bmult = 16 if compute_dtype == jnp.bfloat16 else SUBLANE
    Bblk = Bp // 2 if (Bp >= 2 * bmult and (Bp // 2) % bmult == 0) else Bp
    n_bblk = Bp // Bblk

    # (3) VMEM-budgeted time chunking (generation aware), W_hh etc. resident.
    gi_b = jnp.dtype(gi.dtype).itemsize
    y_b = jnp.dtype(compute_dtype).itemsize
    per_step = 2 * Bblk * G * gi_b + (2 * Bblk * Hp * y_b if emit_y else 0)
    resident = (Hp * G * lp["w_hh_t"].dtype.itemsize + G * 4
                + 3 * Bblk * Hp * 4)
    budget = min(cap // 4, 32 << 20)
    ts = max(1, min(S, (budget - resident) // max(per_step, 1)))
    while S % ts:   # exact division keeps the in-kernel trip count static
        ts -= 1

    out_shape = [jax.ShapeDtypeStruct((Bp, Hp), jnp.float32)]
    out_specs = [pl.BlockSpec((Bblk, Hp), lambda b, c: (b, 0))]
    if emit_y:
        out_shape = [jax.ShapeDtypeStruct((S, Bp, Hp), compute_dtype)] + out_shape
        out_specs = [pl.BlockSpec((ts, Bblk, Hp),
                                  lambda b, c: (c, b, 0))] + out_specs

    result = pl.pallas_call(
        _make_gru_kernel(emit_y, unroll=8),
        out_shape=tuple(out_shape) if emit_y else out_shape[0],
        grid_spec=pltpu.PrefetchScalarGridSpec(
            num_scalar_prefetch=0,
            grid=(n_bblk, S // ts),
            in_specs=[
                pl.BlockSpec((ts, Bblk, G), lambda b, c: (c, b, 0)),  # GI
                pl.BlockSpec((Hp, G), lambda b, c: (0, 0)),           # W_hh^T
                pl.BlockSpec((1, G), lambda b, c: (0, 0)),            # b_hh
                pl.BlockSpec((Bblk, Hp), lambda b, c: (b, 0)),        # h0
            ],
            out_specs=tuple(out_specs) if emit_y else out_specs[0],
            scratch_shapes=[pltpu.VMEM((Bblk, Hp), jnp.float32)],
        ),
        compiler_params=pltpu.CompilerParams(
            dimension_semantics=("parallel", "arbitrary"),
            vmem_limit_bytes=int(0.6 * cap)),
    )(gi, lp["w_hh_t"], lp["b_hh"], h0_pad)

    if emit_y:
        y, hf = result
        return y, hf
    return None, result


# ----------------------------------------------------------------------------
# Full model forward (matches GRUTextGenerationModel.forward, multi_task=False)
# ----------------------------------------------------------------------------
def model_forward(prepared, x_ids, hidden):
    B, S = x_ids.shape
    Bp, H, Hp, V = prepared["B_pad"], prepared["H"], prepared["H_pad"], prepared["V"]
    dt = prepared["dtype"]

    # Embedding gather straight into time-major layout (plain-JAX glue); the
    # table is stored in the compute dtype with a lane-padded feature dim.
    emb = prepared["embedding"][x_ids.T]                   # (S, B, E_pad)
    x_tm = jnp.pad(emb, ((0, 0), (0, Bp - B), (0, 0)))     # batch -> sublanes

    finals = []
    n_layers = len(prepared["gru"])
    for l, lp in enumerate(prepared["gru"]):
        h0 = jnp.pad(hidden[l], ((0, Bp - B), (0, Hp - H)))
        last = l == n_layers - 1
        # Top layer: skip the (S,Bp,Hp) y writeback; only its final hidden
        # feeds the vocabulary projection.
        y, hf = gru_layer(x_tm, lp, h0, emit_y=not last, compute_dtype=dt)
        finals.append(hf)
        if not last:
            x_tm = y

    # TODO(synk): nn.Dropout (between layers and on the output) is
    # inference-mode identity here (no RNG mask).
    # output[:, -1, :] of the top layer == its final hidden state.
    logits = linear(finals[-1], prepared["w_out_t"], prepared["b_out"],
                    out_dtype=jnp.float32)
    logits = logits[:B, :V]
    new_hidden = jnp.stack([h[:B, :H] for h in finals], axis=0)
    return logits, None, new_hidden


# ----------------------------------------------------------------------------
# Parameter construction: logical PyTorch-layout params + kernel-ready padded /
# transposed layouts (each gate padded to its own lane-aligned H_pad slot).
# ----------------------------------------------------------------------------
def init_params(key, vocab_size, embedding_dim, hidden_size, num_layers):
    keys = jax.random.split(key, 3 + 4 * num_layers)
    params = {
        "embedding": 0.1 * jax.random.normal(
            keys[0], (vocab_size, embedding_dim), jnp.float32),
        "w_out": 0.1 * jax.random.normal(
            keys[1], (vocab_size, hidden_size), jnp.float32),
        "b_out": 0.01 * jax.random.normal(keys[2], (vocab_size,), jnp.float32),
        "gru": [],
    }
    for l in range(num_layers):
        din = embedding_dim if l == 0 else hidden_size
        k = keys[3 + 4 * l: 3 + 4 * (l + 1)]
        params["gru"].append({
            "w_ih": 0.1 * jax.random.normal(k[0], (3 * hidden_size, din), jnp.float32),
            "w_hh": 0.1 * jax.random.normal(k[1], (3 * hidden_size, hidden_size), jnp.float32),
            "b_ih": 0.05 * jax.random.normal(k[2], (3 * hidden_size,), jnp.float32),
            "b_hh": 0.05 * jax.random.normal(k[3], (3 * hidden_size,), jnp.float32),
        })
    return params


def prepare_params(params, batch_size, dtype=jnp.bfloat16):
    """Pad/transpose into kernel layouts.  dtype=bfloat16 (default) stores the
    weights, embedding table and GI/y intermediates in bf16 and runs the MXU
    in bf16 with f32 accumulation; dtype=float32 keeps full f32 numerics."""
    V, E = params["embedding"].shape
    H = params["gru"][0]["w_hh"].shape[1]
    Ep, Hp, Vp = _round_up(E, LANE), _round_up(H, LANE), _round_up(V, LANE)
    bmult = 16 if dtype == jnp.bfloat16 else SUBLANE
    Bp = _round_up(batch_size, bmult)

    def gates_t(w, din, din_p):            # (3H, din) -> (din_p, 3*Hp)
        wt = w.T
        cols = [jnp.pad(wt[:, g * H:(g + 1) * H],
                        ((0, din_p - din), (0, Hp - H))) for g in range(3)]
        return jnp.concatenate(cols, axis=1).astype(dtype)

    def gate_bias(b):                       # (3H,) -> (1, 3*Hp), f32
        cols = [jnp.pad(b[g * H:(g + 1) * H], (0, Hp - H)) for g in range(3)]
        return jnp.concatenate(cols)[None, :].astype(jnp.float32)

    prepared = {
        "dtype": dtype,
        "H": H, "H_pad": Hp, "B_pad": Bp, "V": V, "V_pad": Vp,
        "embedding": jnp.pad(params["embedding"],
                             ((0, 0), (0, Ep - E))).astype(dtype),
        # TODO(synk): on v7x an fp8 w_out_t (f32 accumulate) would halve the
        # vocab-projection weight DMA again; not wired here.
        "w_out_t": jnp.pad(params["w_out"].T,
                           ((0, Hp - H), (0, Vp - V))).astype(dtype),
        "b_out": jnp.pad(params["b_out"], (0, Vp - V))[None, :].astype(jnp.float32),
        "gru": [],
    }
    for l, lp in enumerate(params["gru"]):
        din = E if l == 0 else H
        din_p = Ep if l == 0 else Hp
        prepared["gru"].append({
            "w_ih_t": gates_t(lp["w_ih"], din, din_p),
            "w_hh_t": gates_t(lp["w_hh"], H, Hp),
            "b_ih": gate_bias(lp["b_ih"]),
            "b_hh": gate_bias(lp["b_hh"]),
        })
    return prepared


# ----------------------------------------------------------------------------
# Pure-NumPy float64 reference (numerically exact baseline for the checks).
# ----------------------------------------------------------------------------
def ref_forward_np(params, x_ids, hidden):
    def npf(a):
        return np.asarray(a, dtype=np.float64)

    def sigmoid(v):
        return 1.0 / (1.0 + np.exp(-v))

    x = npf(params["embedding"])[np.asarray(x_ids)]          # (B, S, E)
    B, S, _ = x.shape
    H = params["gru"][0]["w_hh"].shape[1]
    h_layers = [npf(hidden[l]) for l in range(len(params["gru"]))]
    for l, lp in enumerate(params["gru"]):
        w_ih, w_hh = npf(lp["w_ih"]), npf(lp["w_hh"])
        b_ih, b_hh = npf(lp["b_ih"]), npf(lp["b_hh"])
        h = h_layers[l]
        outs = []
        for t in range(S):
            gi = x[:, t, :] @ w_ih.T + b_ih
            gh = h @ w_hh.T + b_hh
            r = sigmoid(gi[:, :H] + gh[:, :H])
            z = sigmoid(gi[:, H:2 * H] + gh[:, H:2 * H])
            n = np.tanh(gi[:, 2 * H:] + r * gh[:, 2 * H:])
            h = (1.0 - z) * n + z * h
            outs.append(h)
        x = np.stack(outs, axis=1)
        h_layers[l] = h
    logits = x[:, -1, :] @ npf(params["w_out"]).T + npf(params["b_out"])
    return logits, np.stack(h_layers, axis=0)


if __name__ == "__main__":
    vocab_size, embedding_dim, hidden_size, num_layers = 64, 16, 32, 2
    batch, seq = 2, 8

    key = jax.random.PRNGKey(0)
    k_param, k_ids = jax.random.split(key)
    params = init_params(k_param, vocab_size, embedding_dim, hidden_size, num_layers)

    x_ids = jax.random.randint(k_ids, (batch, seq), 0, vocab_size, dtype=jnp.int32)
    hidden0 = jnp.zeros((num_layers, batch, hidden_size), jnp.float32)  # init_hidden

    ref_logits, ref_hidden = ref_forward_np(params, np.asarray(x_ids),
                                            np.asarray(hidden0))

    # (a) f32 path: tight correctness check against the float64 reference.
    prepared_f32 = prepare_params(params, batch, dtype=jnp.float32)
    fwd_f32 = jax.jit(functools.partial(model_forward, prepared_f32))
    logits32, aux, hid32 = fwd_f32(x_ids, hidden0)
    logits32 = jax.block_until_ready(logits32)
    hid32 = jax.block_until_ready(hid32)
    assert aux is None
    assert logits32.shape == (batch, vocab_size)
    assert hid32.shape == (num_layers, batch, hidden_size)
    np.testing.assert_allclose(np.asarray(logits32), ref_logits,
                               rtol=1e-4, atol=1e-5)
    np.testing.assert_allclose(np.asarray(hid32), ref_hidden,
                               rtol=1e-4, atol=1e-5)

    # (b) default bf16 path (bf16 weights + intermediates, f32 accumulation).
    prepared_bf16 = prepare_params(params, batch)          # dtype=bfloat16
    fwd_bf16 = jax.jit(functools.partial(model_forward, prepared_bf16))
    logits16, aux16, hid16 = fwd_bf16(x_ids, hidden0)
    logits16 = jax.block_until_ready(logits16)
    hid16 = jax.block_until_ready(hid16)
    assert aux16 is None
    np.testing.assert_allclose(np.asarray(logits16), ref_logits,
                               rtol=5e-2, atol=2e-2)
    np.testing.assert_allclose(np.asarray(hid16), ref_hidden,
                               rtol=5e-2, atol=2e-2)

    print("KERNEL_OK")
</pallas_src>

<mosaic_0001>
module attributes {stable_mosaic.version = 11 : i64} {
  func.func @_linear_kernel(%arg0: i32, %arg1: i32, %arg2: memref<64x128xf32, #tpu.memory_space<vmem>>, %arg3: memref<128x384xf32, #tpu.memory_space<vmem>>, %arg4: memref<1x384xf32, #tpu.memory_space<vmem>>, %arg5: memref<64x384xf32, #tpu.memory_space<vmem>>) attributes {dimension_semantics = [#tpu.dimension_semantics<parallel>, #tpu.dimension_semantics<parallel>], iteration_bounds = array<i64: 1, 1>, scalar_prefetch = 0 : i64, scratch_operands = 0 : i64, tpu.core_type = #tpu.core_type<tc>, window_params = [{transform_indices = @transform_0, window_bounds = array<i64: 64, 128>}, {transform_indices = @transform_1, window_bounds = array<i64: 128, 384>}, {transform_indices = @transform_2, window_bounds = array<i64: 1, 384>}, {transform_indices = @transform_3, window_bounds = array<i64: 64, 384>}]} {
    %c0 = arith.constant 0 : index
    %c0_0 = arith.constant 0 : index
    %0 = vector.load %arg2[%c0, %c0_0] : memref<64x128xf32, #tpu.memory_space<vmem>>, vector<64x128xf32>
    %c0_1 = arith.constant 0 : index
    %c0_2 = arith.constant 0 : index
    %1 = vector.load %arg3[%c0_1, %c0_2] : memref<128x384xf32, #tpu.memory_space<vmem>>, vector<128x384xf32>
    %cst = arith.constant dense<0.000000e+00> : vector<64x384xf32>
    %2 = tpu.matmul %0, %1, %cst {dimension_numbers = #tpu.dot_dimension_numbers<[1], [0], [0], [1], [0, 0, 1, 1], [], []>} : vector<64x128xf32>, vector<128x384xf32>, vector<64x384xf32> -> vector<64x384xf32>
    %c0_3 = arith.constant 0 : index
    %c0_4 = arith.constant 0 : index
    %3 = vector.load %arg4[%c0_3, %c0_4] : memref<1x384xf32, #tpu.memory_space<vmem>>, vector<1x384xf32>
    %4 = vector.broadcast %3 : vector<1x384xf32> to vector<64x384xf32>
    %5 = arith.addf %2, %4 : vector<64x384xf32>
    %c0_5 = arith.constant 0 : index
    %c0_6 = arith.constant 0 : index
    %6 = vector.load %arg5[%c0_5, %c0_6] : memref<64x384xf32, #tpu.memory_space<vmem>>, vector<64x384xf32>
    tpu.vector_store %arg5[%c0_5, %c0_6], %5 {strides = array<i32>} : memref<64x384xf32, #tpu.memory_space<vmem>>, vector<64x384xf32>,
    return
  }
  func.func @transform_0(%arg0: i32, %arg1: i32) -> (i32, i32) {
    %c0_i32 = arith.constant 0 : i32
    %c0_i32_0 = arith.constant 0 : i32
    return %arg1, %c0_i32 : i32, i32
  }
  func.func @transform_1(%arg0: i32, %arg1: i32) -> (i32, i32) {
    %c0_i32 = arith.constant 0 : i32
    %c0_i32_0 = arith.constant 0 : i32
    return %c0_i32, %arg0 : i32, i32
  }
  func.func @transform_2(%arg0: i32, %arg1: i32) -> (i32, i32) {
    %c0_i32 = arith.constant 0 : i32
    %c0_i32_0 = arith.constant 0 : i32
    return %c0_i32, %arg0 : i32, i32
  }
  func.func @transform_3(%arg0: i32, %arg1: i32) -> (i32, i32) {
    %c0_i32 = arith.constant 0 : i32
    return %arg1, %arg0 : i32, i32
  }
}

module attributes {stable_mosaic.version = 11 : i64} {
  func.func @_linear_kernel(%arg0: i32, %arg1: i32, %arg2: memref<64x128xf32, #tpu.memory_space<vmem>>, %arg3: memref<128x384xf32, #tpu.memory_space<vmem>>, %arg4: memref<1x384xf32, #tpu.memory_space<vmem>>, %arg5: memref<64x384xf32, #tpu.memory_space<vmem>>) attributes {dimension_semantics = [#tpu.dimension_semantics<parallel>, #tpu.dimension_semantics<parallel>], iteration_bounds = array<i64: 1, 1>, scalar_prefetch = 0 : i64, scratch_operands = 0 : i64, tpu.core_type = #tpu.core_type<tc>, window_params = [{transform_indices = @transform_0, window_bounds = array<i64: 64, 128>}, {transform_indices = @transform_1, window_bounds = array<i64: 128, 384>}, {transform_indices = @transform_2, window_bounds = array<i64: 1, 384>}, {transform_indices = @transform_3, window_bounds = array<i64: 64, 384>}]} {
    %c0 = arith.constant 0 : index
    %c0_0 = arith.constant 0 : index
    %0 = vector.load %arg2[%c0, %c0_0] : memref<64x128xf32, #tpu.memory_space<vmem>>, vector<64x128xf32>
    %c0_1 = arith.constant 0 : index
    %c0_2 = arith.constant 0 : index
    %1 = vector.load %arg3[%c0_1, %c0_2] : memref<128x384xf32, #tpu.memory_space<vmem>>, vector<128x384xf32>
    %cst = arith.constant dense<0.000000e+00> : vector<64x384xf32>
    %2 = tpu.matmul %0, %1, %cst {dimension_numbers = #tpu.dot_dimension_numbers<[1], [0], [0], [1], [0, 0, 1, 1], [], []>} : vector<64x128xf32>, vector<128x384xf32>, vector<64x384xf32> -> vector<64x384xf32>
    %c0_3 = arith.constant 0 : index
    %c0_4 = arith.constant 0 : index
    %3 = vector.load %arg4[%c0_3, %c0_4] : memref<1x384xf32, #tpu.memory_space<vmem>>, vector<1x384xf32>
    %4 = vector.broadcast %3 : vector<1x384xf32> to vector<64x384xf32>
    %5 = arith.addf %2, %4 : vector<64x384xf32>
    %c0_5 = arith.constant 0 : index
    %c0_6 = arith.constant 0 : index
    %6 = vector.load %arg5[%c0_5, %c0_6] : memref<64x384xf32, #tpu.memory_space<vmem>>, vector<64x384xf32>
    tpu.vector_store %arg5[%c0_5, %c0_6], %5 {strides = array<i32>} : memref<64x384xf32, #tpu.memory_space<vmem>>, vector<64x384xf32>,
    return
  }
  func.func @transform_0(%arg0: i32, %arg1: i32) -> (i32, i32) {
    %c0_i32 = arith.constant 0 : i32
    %c0_i32_0 = arith.constant 0 : i32
    return %arg1, %c0_i32 : i32, i32
  }
  func.func @transform_1(%arg0: i32, %arg1: i32) -> (i32, i32) {
    %c0_i32 = arith.constant 0 : i32
    %c0_i32_0 = arith.constant 0 : i32
    return %c0_i32, %arg0 : i32, i32
  }
  func.func @transform_2(%arg0: i32, %arg1: i32) -> (i32, i32) {
    %c0_i32 = arith.constant 0 : i32
    %c0_i32_0 = arith.constant 0 : i32
    return %c0_i32, %arg0 : i32, i32
  }
  func.func @transform_3(%arg0: i32, %arg1: i32) -> (i32, i32) {
    %c0_i32 = arith.constant 0 : i32
    return %arg1, %arg0 : i32, i32
  }
}

module attributes {stable_mosaic.version = 11 : i64} {
  func.func @kernel(%arg0: i32, %arg1: i32, %arg2: memref<8x8x384xf32, #tpu.memory_space<vmem>>, %arg3: memref<128x384xf32, #tpu.memory_space<vmem>>, %arg4: memref<1x384xf32, #tpu.memory_space<vmem>>, %arg5: memref<8x128xf32, #tpu.memory_space<vmem>>, %arg6: memref<8x128xf32, #tpu.memory_space<vmem>>, %arg7: memref<8x128xf32, #tpu.memory_space<vmem>>) attributes {dimension_semantics = [#tpu.dimension_semantics<parallel>, #tpu.dimension_semantics<arbitrary>], iteration_bounds = array<i64: 1, 1>, scalar_prefetch = 0 : i64, scratch_operands = 1 : i64, tpu.core_type = #tpu.core_type<tc>, window_params = [{transform_indices = @transform_0, window_bounds = array<i64: 8, 8, 384>}, {pipeline_mode = #tpu.pipeline_mode<synchronous>, transform_indices = @transform_1, window_bounds = array<i64: 128, 384>}, {pipeline_mode = #tpu.pipeline_mode<synchronous>, transform_indices = @transform_2, window_bounds = array<i64: 1, 384>}, {transform_indices = @transform_3, window_bounds = array<i64: 8, 128>}, {transform_indices = @transform_4, window_bounds = array<i64: 8, 128>}]} {
    %c0_i32 = arith.constant 0 : i32
    %0 = arith.cmpi eq, %arg1, %c0_i32 : i32
    %1 = arith.extui %0 : i1 to i32
    %c0_i32_0 = arith.constant 0 : i32
    %2 = arith.cmpi ne, %1, %c0_i32_0 : i32
    scf.if %2 {
      %c0_86 = arith.constant 0 : index
      %c0_87 = arith.constant 0 : index
      %280 = vector.load %arg5[%c0_86, %c0_87] : memref<8x128xf32, #tpu.memory_space<vmem>>, vector<8x128xf32>
      %c0_88 = arith.constant 0 : index
      %c0_89 = arith.constant 0 : index
      %281 = vector.load %arg7[%c0_88, %c0_89] : memref<8x128xf32, #tpu.memory_space<vmem>>, vector<8x128xf32>
      tpu.vector_store %arg7[%c0_88, %c0_89], %280 {strides = array<i32>} : memref<8x128xf32, #tpu.memory_space<vmem>>, vector<8x128xf32>,
    } else {
    }
    %c0 = arith.constant 0 : index
    %c0_1 = arith.constant 0 : index
    %3 = vector.load %arg7[%c0, %c0_1] : memref<8x128xf32, #tpu.memory_space<vmem>>, vector<8x128xf32>
    %c0_i32_2 = arith.constant 0 : i32
    %4 = arith.index_cast %c0_i32_2 : i32 to index
    %c0_3 = arith.constant 0 : index
    %c0_4 = arith.constant 0 : index
    %5 = vector.load %arg2[%4, %c0_3, %c0_4] : memref<8x8x384xf32, #tpu.memory_space<vmem>>, vector<1x8x384xf32>
    %6 = vector.shape_cast %5 : vector<1x8x384xf32> to vector<8x384xf32>
    %c0_5 = arith.constant 0 : index
    %c0_6 = arith.constant 0 : index
    %7 = vector.load %arg3[%c0_5, %c0_6] : memref<128x384xf32, #tpu.memory_space<vmem>>, vector<128x384xf32>
    %cst = arith.constant dense<0.000000e+00> : vector<8x384xf32>
    %8 = tpu.matmul %3, %7, %cst {dimension_numbers = #tpu.dot_dimension_numbers<[1], [0], [0], [1], [0, 0, 1, 1], [], []>} : vector<8x128xf32>, vector<128x384xf32>, vector<8x384xf32> -> vector<8x384xf32>
    %c0_7 = arith.constant 0 : index
    %c0_8 = arith.constant 0 : index
    %9 = vector.load %arg4[%c0_7, %c0_8] : memref<1x384xf32, #tpu.memory_space<vmem>>, vector<1x384xf32>
    %10 = vector.broadcast %9 : vector<1x384xf32> to vector<8x384xf32>
    %11 = arith.addf %8, %10 : vector<8x384xf32>
    %12 = vector.extract_strided_slice %6 {offsets = [0, 0], sizes = [8, 128], strides = [1, 1]} : vector<8x384xf32> to vector<8x128xf32>
    %13 = vector.extract_strided_slice %11 {offsets = [0, 0], sizes = [8, 128], strides = [1, 1]} : vector<8x384xf32> to vector<8x128xf32>
    %14 = arith.addf %12, %13 : vector<8x128xf32>
    %15 = arith.negf %14 : vector<8x128xf32>
    %16 = math.exp %15 : vector<8x128xf32>
    %cst_9 = arith.constant 1.000000e+00 : f32
    %17 = vector.broadcast %cst_9 : f32 to vector<8x128xf32>
    %18 = arith.addf %17, %16 : vector<8x128xf32>
    %19 = arith.divf %17, %18 : vector<8x128xf32>
    %20 = vector.extract_strided_slice %6 {offsets = [0, 128], sizes = [8, 128], strides = [1, 1]} : vector<8x384xf32> to vector<8x128xf32>
    %21 = vector.extract_strided_slice %11 {offsets = [0, 128], sizes = [8, 128], strides = [1, 1]} : vector<8x384xf32> to vector<8x128xf32>
    %22 = arith.addf %20, %21 : vector<8x128xf32>
    %23 = arith.negf %22 : vector<8x128xf32>
    %24 = math.exp %23 : vector<8x128xf32>
    %cst_10 = arith.constant 1.000000e+00 : f32
    %25 = vector.broadcast %cst_10 : f32 to vector<8x128xf32>
    %26 = arith.addf %25, %24 : vector<8x128xf32>
    %27 = arith.divf %25, %26 : vector<8x128xf32>
    %28 = vector.extract_strided_slice %6 {offsets = [0, 256], sizes = [8, 128], strides = [1, 1]} : vector<8x384xf32> to vector<8x128xf32>
    %29 = vector.extract_strided_slice %11 {offsets = [0, 256], sizes = [8, 128], strides = [1, 1]} : vector<8x384xf32> to vector<8x128xf32>
    %30 = arith.mulf %19, %29 : vector<8x128xf32>
    %31 = arith.addf %28, %30 : vector<8x128xf32>
    %32 = math.tanh %31 : vector<8x128xf32>
    %cst_11 = arith.constant 1.000000e+00 : f32
    %33 = vector.broadcast %cst_11 : f32 to vector<8x128xf32>
    %34 = arith.subf %33, %27 : vector<8x128xf32>
    %35 = arith.mulf %34, %32 : vector<8x128xf32>
    %36 = arith.mulf %27, %3 : vector<8x128xf32>
    %37 = arith.addf %35, %36 : vector<8x128xf32>
    %c1_i32 = arith.constant 1 : i32
    %38 = arith.index_cast %c1_i32 : i32 to index
    %c0_12 = arith.constant 0 : index
    %c0_13 = arith.constant 0 : index
    %39 = vector.load %arg2[%38, %c0_12, %c0_13] : memref<8x8x384xf32, #tpu.memory_space<vmem>>, vector<1x8x384xf32>
    %40 = vector.shape_cast %39 : vector<1x8x384xf32> to vector<8x384xf32>
    %c0_14 = arith.constant 0 : index
    %c0_15 = arith.constant 0 : index
    %41 = vector.load %arg3[%c0_14, %c0_15] : memref<128x384xf32, #tpu.memory_space<vmem>>, vector<128x384xf32>
    %cst_16 = arith.constant dense<0.000000e+00> : vector<8x384xf32>
    %42 = tpu.matmul %37, %41, %cst_16 {dimension_numbers = #tpu.dot_dimension_numbers<[1], [0], [0], [1], [0, 0, 1, 1], [], []>} : vector<8x128xf32>, vector<128x384xf32>, vector<8x384xf32> -> vector<8x384xf32>
    %c0_17 = arith.constant 0 : index
    %c0_18 = arith.constant 0 : index
    %43 = vector.load %arg4[%c0_17, %c0_18] : memref<1x384xf32, #tpu.memory_space<vmem>>, vector<1x384xf32>
    %44 = vector.broadcast %43 : vector<1x384xf32> to vector<8x384xf32>
    %45 = arith.addf %42, %44 : vector<8x384xf32>
    %46 = vector.extract_strided_slice %40 {offsets = [0, 0], sizes = [8, 128], strides = [1, 1]} : vector<8x384xf32> to vector<8x128xf32>
    %47 = vector.extract_strided_slice %45 {offsets = [0, 0], sizes = [8, 128], strides = [1, 1]} : vector<8x384xf32> to vector<8x128xf32>
    %48 = arith.addf %46, %47 : vector<8x128xf32>
    %49 = arith.negf %48 : vector<8x128xf32>
    %50 = math.exp %49 : vector<8x128xf32>
    %cst_19 = arith.constant 1.000000e+00 : f32
    %51 = vector.broadcast %cst_19 : f32 to vector<8x128xf32>
    %52 = arith.addf %51, %50 : vector<8x128xf32>
    %53 = arith.divf %51, %52 : vector<8x128xf32>
    %54 = vector.extract_strided_slice %40 {offsets = [0, 128], sizes = [8, 128], strides = [1, 1]} : vector<8x384xf32> to vector<8x128xf32>
    %55 = vector.extract_strided_slice %45 {offsets = [0, 128], sizes = [8, 128], strides = [1, 1]} : vector<8x384xf32> to vector<8x128xf32>
    %56 = arith.addf %54, %55 : vector<8x128xf32>
    %57 = arith.negf %56 : vector<8x128xf32>
    %58 = math.exp %57 : vector<8x128xf32>
    %cst_20 = arith.constant 1.000000e+00 : f32
    %59 = vector.broadcast %cst_20 : f32 to vector<8x128xf32>
    %60 = arith.addf %59, %58 : vector<8x128xf32>
    %61 = arith.divf %59, %60 : vector<8x128xf32>
    %62 = vector.extract_strided_slice %40 {offsets = [0, 256], sizes = [8, 128], strides = [1, 1]} : vector<8x384xf32> to vector<8x128xf32>
    %63 = vector.extract_strided_slice %45 {offsets = [0, 256], sizes = [8, 128], strides = [1, 1]} : vector<8x384xf32> to vector<8x128xf32>
    %64 = arith.mulf %53, %63 : vector<8x128xf32>
    %65 = arith.addf %62, %64 : vector<8x128xf32>
    %66 = math.tanh %65 : vector<8x128xf32>
    %cst_21 = arith.constant 1.000000e+00 : f32
    %67 = vector.broadcast %cst_21 : f32 to vector<8x128xf32>
    %68 = arith.subf %67, %61 : vector<8x128xf32>
    %69 = arith.mulf %68, %66 : vector<8x128xf32>
    %70 = arith.mulf %61, %37 : vector<8x128xf32>
    %71 = arith.addf %69, %70 : vector<8x128xf32>
    %c2_i32 = arith.constant 2 : i32
    %72 = arith.index_cast %c2_i32 : i32 to index
    %c0_22 = arith.constant 0 : index
    %c0_23 = arith.constant 0 : index
    %73 = vector.load %arg2[%72, %c0_22, %c0_23] : memref<8x8x384xf32, #tpu.memory_space<vmem>>, vector<1x8x384xf32>
    %74 = vector.shape_cast %73 : vector<1x8x384xf32> to vector<8x384xf32>
    %c0_24 = arith.constant 0 : index
    %c0_25 = arith.constant 0 : index
    %75 = vector.load %arg3[%c0_24, %c0_25] : memref<128x384xf32, #tpu.memory_space<vmem>>, vector<128x384xf32>
    %cst_26 = arith.constant dense<0.000000e+00> : vector<8x384xf32>
    %76 = tpu.matmul %71, %75, %cst_26 {dimension_numbers = #tpu.dot_dimension_numbers<[1], [0], [0], [1], [0, 0, 1, 1], [], []>} : vector<8x128xf32>, vector<128x384xf32>, vector<8x384xf32> -> vector<8x384xf32>
    %c0_27 = arith.constant 0 : index
    %c0_28 = arith.constant 0 : index
    %77 = vector.load %arg4[%c0_27, %c0_28] : memref<1x384xf32, #tpu.memory_space<vmem>>, vector<1x384xf32>
    %78 = vector.broadcast %77 : vector<1x384xf32> to vector<8x384xf32>
    %79 = arith.addf %76, %78 : vector<8x384xf32>
    %80 = vector.extract_strided_slice %74 {offsets = [0, 0], sizes = [8, 128], strides = [1, 1]} : vector<8x384xf32> to vector<8x128xf32>
    %81 = vector.extract_strided_slice %79 {offsets = [0, 0], sizes = [8, 128], strides = [1, 1]} : vector<8x384xf32> to vector<8x128xf32>
    %82 = arith.addf %80, %81 : vector<8x128xf32>
    %83 = arith.negf %82 : vector<8x128xf32>
    %84 = math.exp %83 : vector<8x128xf32>
    %cst_29 = arith.constant 1.000000e+00 : f32
    %85 = vector.broadcast %cst_29 : f32 to vector<8x128xf32>
    %86 = arith.addf %85, %84 : vector<8x128xf32>
    %87 = arith.divf %85, %86 : vector<8x128xf32>
    %88 = vector.extract_strided_slice %74 {offsets = [0, 128], sizes = [8, 128], strides = [1, 1]} : vector<8x384xf32> to vector<8x128xf32>
    %89 = vector.extract_strided_slice %79 {offsets = [0, 128], sizes = [8, 128], strides = [1, 1]} : vector<8x384xf32> to vector<8x128xf32>
    %90 = arith.addf %88, %89 : vector<8x128xf32>
    %91 = arith.negf %90 : vector<8x128xf32>
    %92 = math.exp %91 : vector<8x128xf32>
    %cst_30 = arith.constant 1.000000e+00 : f32
    %93 = vector.broadcast %cst_30 : f32 to vector<8x128xf32>
    %94 = arith.addf %93, %92 : vector<8x128xf32>
    %95 = arith.divf %93, %94 : vector<8x128xf32>
    %96 = vector.extract_strided_slice %74 {offsets = [0, 256], sizes = [8, 128], strides = [1, 1]} : vector<8x384xf32> to vector<8x128xf32>
    %97 = vector.extract_strided_slice %79 {offsets = [0, 256], sizes = [8, 128], strides = [1, 1]} : vector<8x384xf32> to vector<8x128xf32>
    %98 = arith.mulf %87, %97 : vector<8x128xf32>
    %99 = arith.addf %96, %98 : vector<8x128xf32>
    %100 = math.tanh %99 : vector<8x128xf32>
    %cst_31 = arith.constant 1.000000e+00 : f32
    %101 = vector.broadcast %cst_31 : f32 to vector<8x128xf32>
    %102 = arith.subf %101, %95 : vector<8x128xf32>
    %103 = arith.mulf %102, %100 : vector<8x128xf32>
    %104 = arith.mulf %95, %71 : vector<8x128xf32>
    %105 = arith.addf %103, %104 : vector<8x128xf32>
    %c3_i32 = arith.constant 3 : i32
    %106 = arith.index_cast %c3_i32 : i32 to index
    %c0_32 = arith.constant 0 : index
    %c0_33 = arith.constant 0 : index
    %107 = vector.load %arg2[%106, %c0_32, %c0_33] : memref<8x8x384xf32, #tpu.memory_space<vmem>>, vector<1x8x384xf32>
    %108 = vector.shape_cast %107 : vector<1x8x384xf32> to vector<8x384xf32>
    %c0_34 = arith.constant 0 : index
    %c0_35 = arith.constant 0 : index
    %109 = vector.load %arg3[%c0_34, %c0_35] : memref<128x384xf32, #tpu.memory_space<vmem>>, vector<128x384xf32>
    %cst_36 = arith.constant dense<0.000000e+00> : vector<8x384xf32>
    %110 = tpu.matmul %105, %109, %cst_36 {dimension_numbers = #tpu.dot_dimension_numbers<[1], [0], [0], [1], [0, 0, 1, 1], [], []>} : vector<8x128xf32>, vector<128x384xf32>, vector<8x384xf32> -> vector<8x384xf32>
    %c0_37 = arith.constant 0 : index
    %c0_38 = arith.constant 0 : index
    %111 = vector.load %arg4[%c0_37, %c0_38] : memref<1x384xf32, #tpu.memory_space<vmem>>, vector<1x384xf32>
    %112 = vector.broadcast %111 : vector<1x384xf32> to vector<8x384xf32>
    %113 = arith.addf %110, %112 : vector<8x384xf32>
    %114 = vector.extract_strided_slice %108 {offsets = [0, 0], sizes = [8, 128], strides = [1, 1]} : vector<8x384xf32> to vector<8x128xf32>
    %115 = vector.extract_strided_slice %113 {offsets = [0, 0], sizes = [8, 128], strides = [1, 1]} : vector<8x384xf32> to vector<8x128xf32>
    %116 = arith.addf %114, %115 : vector<8x128xf32>
    %117 = arith.negf %116 : vector<8x128xf32>
    %118 = math.exp %117 : vector<8x128xf32>
    %cst_39 = arith.constant 1.000000e+00 : f32
    %119 = vector.broadcast %cst_39 : f32 to vector<8x128xf32>
    %120 = arith.addf %119, %118 : vector<8x128xf32>
    %121 = arith.divf %119, %120 : vector<8x128xf32>
    %122 = vector.extract_strided_slice %108 {offsets = [0, 128], sizes = [8, 128], strides = [1, 1]} : vector<8x384xf32> to vector<8x128xf32>
    %123 = vector.extract_strided_slice %113 {offsets = [0, 128], sizes = [8, 128], strides = [1, 1]} : vector<8x384xf32> to vector<8x128xf32>
    %124 = arith.addf %122, %123 : vector<8x128xf32>
    %125 = arith.negf %124 : vector<8x128xf32>
    %126 = math.exp %125 : vector<8x128xf32>
    %cst_40 = arith.constant 1.000000e+00 : f32
    %127 = vector.broadcast %cst_40 : f32 to vector<8x128xf32>
    %128 = arith.addf %127, %126 : vector<8x128xf32>
    %129 = arith.divf %127, %128 : vector<8x128xf32>
    %130 = vector.extract_strided_slice %108 {offsets = [0, 256], sizes = [8, 128], strides = [1, 1]} : vector<8x384xf32> to vector<8x128xf32>
    %131 = vector.extract_strided_slice %113 {offsets = [0, 256], sizes = [8, 128], strides = [1, 1]} : vector<8x384xf32> to vector<8x128xf32>
    %132 = arith.mulf %121, %131 : vector<8x128xf32>
    %133 = arith.addf %130, %132 : vector<8x128xf32>
    %134 = math.tanh %133 : vector<8x128xf32>
    %cst_41 = arith.constant 1.000000e+00 : f32
    %135 = vector.broadcast %cst_41 : f32 to vector<8x128xf32>
    %136 = arith.subf %135, %129 : vector<8x128xf32>
    %137 = arith.mulf %136, %134 : vector<8x128xf32>
    %138 = arith.mulf %129, %105 : vector<8x128xf32>
    %139 = arith.addf %137, %138 : vector<8x128xf32>
    %c4_i32 = arith.constant 4 : i32
    %140 = arith.index_cast %c4_i32 : i32 to index
    %c0_42 = arith.constant 0 : index
    %c0_43 = arith.constant 0 : index
    %141 = vector.load %arg2[%140, %c0_42, %c0_43] : memref<8x8x384xf32, #tpu.memory_space<vmem>>, vector<1x8x384xf32>
    %142 = vector.shape_cast %141 : vector<1x8x384xf32> to vector<8x384xf32>
    %c0_44 = arith.constant 0 : index
    %c0_45 = arith.constant 0 : index
    %143 = vector.load %arg3[%c0_44, %c0_45] : memref<128x384xf32, #tpu.memory_space<vmem>>, vector<128x384xf32>
    %cst_46 = arith.constant dense<0.000000e+00> : vector<8x384xf32>
    %144 = tpu.matmul %139, %143, %cst_46 {dimension_numbers = #tpu.dot_dimension_numbers<[1], [0], [0], [1], [0, 0, 1, 1], [], []>} : vector<8x128xf32>, vector<128x384xf32>, vector<8x384xf32> -> vector<8x384xf32>
    %c0_47 = arith.constant 0 : index
    %c0_48 = arith.constant 0 : index
    %145 = vector.load %arg4[%c0_47, %c0_48] : memref<1x384xf32, #tpu.memory_space<vmem>>, vector<1x384xf32>
    %146 = vector.broadcast %145 : vector<1x384xf32> to vector<8x384xf32>
    %147 = arith.addf %144, %146 : vector<8x384xf32>
    %148 = vector.extract_strided_slice %142 {offsets = [0, 0], sizes = [8, 128], strides = [1, 1]} : vector<8x384xf32> to vector<8x128xf32>
    %149 = vector.extract_strided_slice %147 {offsets = [0, 0], sizes = [8, 128], strides = [1, 1]} : vector<8x384xf32> to vector<8x128xf32>
    %150 = arith.addf %148, %149 : vector<8x128xf32>
    %151 = arith.negf %150 : vector<8x128xf32>
    %152 = math.exp %151 : vector<8x128xf32>
    %cst_49 = arith.constant 1.000000e+00 : f32
    %153 = vector.broadcast %cst_49 : f32 to vector<8x128xf32>
    %154 = arith.addf %153, %152 : vector<8x128xf32>
    %155 = arith.divf %153, %154 : vector<8x128xf32>
    %156 = vector.extract_strided_slice %142 {offsets = [0, 128], sizes = [8, 128], strides = [1, 1]} : vector<8x384xf32> to vector<8x128xf32>
    %157 = vector.extract_strided_slice %147 {offsets = [0, 128], sizes = [8, 128], strides = [1, 1]} : vector<8x384xf32> to vector<8x128xf32>
    %158 = arith.addf %156, %157 : vector<8x128xf32>
    %159 = arith.negf %158 : vector<8x128xf32>
    %160 = math.exp %159 : vector<8x128xf32>
    %cst_50 = arith.constant 1.000000e+00 : f32
    %161 = vector.broadcast %cst_50 : f32 to vector<8x128xf32>
    %162 = arith.addf %161, %160 : vector<8x128xf32>
    %163 = arith.divf %161, %162 : vector<8x128xf32>
    %164 = vector.extract_strided_slice %142 {offsets = [0, 256], sizes = [8, 128], strides = [1, 1]} : vector<8x384xf32> to vector<8x128xf32>
    %165 = vector.extract_strided_slice %147 {offsets = [0, 256], sizes = [8, 128], strides = [1, 1]} : vector<8x384xf32> to vector<8x128xf32>
    %166 = arith.mulf %155, %165 : vector<8x128xf32>
    %167 = arith.addf %164, %166 : vector<8x128xf32>
    %168 = math.tanh %167 : vector<8x128xf32>
    %cst_51 = arith.constant 1.000000e+00 : f32
    %169 = vector.broadcast %cst_51 : f32 to vector<8x128xf32>
    %170 = arith.subf %169, %163 : vector<8x128xf32>
    %171 = arith.mulf %170, %168 : vector<8x128xf32>
    %172 = arith.mulf %163, %139 : vector<8x128xf32>
    %173 = arith.addf %171, %172 : vector<8x128xf32>
    %c5_i32 = arith.constant 5 : i32
    %174 = arith.index_cast %c5_i32 : i32 to index
    %c0_52 = arith.constant 0 : index
    %c0_53 = arith.constant 0 : index
    %175 = vector.load %arg2[%174, %c0_52, %c0_53] : memref<8x8x384xf32, #tpu.memory_space<vmem>>, vector<1x8x384xf32>
    %176 = vector.shape_cast %175 : vector<1x8x384xf32> to vector<8x384xf32>
    %c0_54 = arith.constant 0 : index
    %c0_55 = arith.constant 0 : index
    %177 = vector.load %arg3[%c0_54, %c0_55] : memref<128x384xf32, #tpu.memory_space<vmem>>, vector<128x384xf32>
    %cst_56 = arith.constant dense<0.000000e+00> : vector<8x384xf32>
    %178 = tpu.matmul %173, %177, %cst_56 {dimension_numbers = #tpu.dot_dimension_numbers<[1], [0], [0], [1], [0, 0, 1, 1], [], []>} : vector<8x128xf32>, vector<128x384xf32>, vector<8x384xf32> -> vector<8x384xf32>
    %c0_57 = arith.constant 0 : index
    %c0_58 = arith.constant 0 : index
    %179 = vector.load %arg4[%c0_57, %c0_58] : memref<1x384xf32, #tpu.memory_space<vmem>>, vector<1x384xf32>
    %180 = vector.broadcast %179 : vector<1x384xf32> to vector<8x384xf32>
    %181 = arith.addf %178, %180 : vector<8x384xf32>
    %182 = vector.extract_strided_slice %176 {offsets = [0, 0], sizes = [8, 128], strides = [1, 1]} : vector<8x384xf32> to vector<8x128xf32>
    %183 = vector.extract_strided_slice %181 {offsets = [0, 0], sizes = [8, 128], strides = [1, 1]} : vector<8x384xf32> to vector<8x128xf32>
    %184 = arith.addf %182, %183 : vector<8x128xf32>
    %185 = arith.negf %184 : vector<8x128xf32>
    %186 = math.exp %185 : vector<8x128xf32>
    %cst_59 = arith.constant 1.000000e+00 : f32
    %187 = vector.broadcast %cst_59 : f32 to vector<8x128xf32>
    %188 = arith.addf %187, %186 : vector<8x128xf32>
    %189 = arith.divf %187, %188 : vector<8x128xf32>
    %190 = vector.extract_strided_slice %176 {offsets = [0, 128], sizes = [8, 128], strides = [1, 1]} : vector<8x384xf32> to vector<8x128xf32>
    %191 = vector.extract_strided_slice %181 {offsets = [0, 128], sizes = [8, 128], strides = [1, 1]} : vector<8x384xf32> to vector<8x128xf32>
    %192 = arith.addf %190, %191 : vector<8x128xf32>
    %193 = arith.negf %192 : vector<8x128xf32>
    %194 = math.exp %193 : vector<8x128xf32>
    %cst_60 = arith.constant 1.000000e+00 : f32
    %195 = vector.broadcast %cst_60 : f32 to vector<8x128xf32>
    %196 = arith.addf %195, %194 : vector<8x128xf32>
    %197 = arith.divf %195, %196 : vector<8x128xf32>
    %198 = vector.extract_strided_slice %176 {offsets = [0, 256], sizes = [8, 128], strides = [1, 1]} : vector<8x384xf32> to vector<8x128xf32>
    %199 = vector.extract_strided_slice %181 {offsets = [0, 256], sizes = [8, 128], strides = [1, 1]} : vector<8x384xf32> to vector<8x128xf32>
    %200 = arith.mulf %189, %199 : vector<8x128xf32>
    %201 = arith.addf %198, %200 : vector<8x128xf32>
    %202 = math.tanh %201 : vector<8x128xf32>
    %cst_61 = arith.constant 1.000000e+00 : f32
    %203 = vector.broadcast %cst_61 : f32 to vector<8x128xf32>
    %204 = arith.subf %203, %197 : vector<8x128xf32>
    %205 = arith.mulf %204, %202 : vector<8x128xf32>
    %206 = arith.mulf %197, %173 : vector<8x128xf32>
    %207 = arith.addf %205, %206 : vector<8x128xf32>
    %c6_i32 = arith.constant 6 : i32
    %208 = arith.index_cast %c6_i32 : i32 to index
    %c0_62 = arith.constant 0 : index
    %c0_63 = arith.constant 0 : index
    %209 = vector.load %arg2[%208, %c0_62, %c0_63] : memref<8x8x384xf32, #tpu.memory_space<vmem>>, vector<1x8x384xf32>
    %210 = vector.shape_cast %209 : vector<1x8x384xf32> to vector<8x384xf32>
    %c0_64 = arith.constant 0 : index
    %c0_65 = arith.constant 0 : index
    %211 = vector.load %arg3[%c0_64, %c0_65] : memref<128x384xf32, #tpu.memory_space<vmem>>, vector<128x384xf32>
    %cst_66 = arith.constant dense<0.000000e+00> : vector<8x384xf32>
    %212 = tpu.matmul %207, %211, %cst_66 {dimension_numbers = #tpu.dot_dimension_numbers<[1], [0], [0], [1], [0, 0, 1, 1], [], []>} : vector<8x128xf32>, vector<128x384xf32>, vector<8x384xf32> -> vector<8x384xf32>
    %c0_67 = arith.constant 0 : index
    %c0_68 = arith.constant 0 : index
    %213 = vector.load %arg4[%c0_67, %c0_68] : memref<1x384xf32, #tpu.memory_space<vmem>>, vector<1x384xf32>
    %214 = vector.broadcast %213 : vector<1x384xf32> to vector<8x384xf32>
    %215 = arith.addf %212, %214 : vector<8x384xf32>
    %216 = vector.extract_strided_slice %210 {offsets = [0, 0], sizes = [8, 128], strides = [1, 1]} : vector<8x384xf32> to vector<8x128xf32>
    %217 = vector.extract_strided_slice %215 {offsets = [0, 0], sizes = [8, 128], strides = [1, 1]} : vector<8x384xf32> to vector<8x128xf32>
    %218 = arith.addf %216, %217 : vector<8x128xf32>
    %219 = arith.negf %218 : vector<8x128xf32>
    %220 = math.exp %219 : vector<8x128xf32>
    %cst_69 = arith.constant 1.000000e+00 : f32
    %221 = vector.broadcast %cst_69 : f32 to vector<8x128xf32>
    %222 = arith.addf %221, %220 : vector<8x128xf32>
    %223 = arith.divf %221, %222 : vector<8x128xf32>
    %224 = vector.extract_strided_slice %210 {offsets = [0, 128], sizes = [8, 128], strides = [1, 1]} : vector<8x384xf32> to vector<8x128xf32>
    %225 = vector.extract_strided_slice %215 {offsets = [0, 128], sizes = [8, 128], strides = [1, 1]} : vector<8x384xf32> to vector<8x128xf32>
    %226 = arith.addf %224, %225 : vector<8x128xf32>
    %227 = arith.negf %226 : vector<8x128xf32>
    %228 = math.exp %227 : vector<8x128xf32>
    %cst_70 = arith.constant 1.000000e+00 : f32
    %229 = vector.broadcast %cst_70 : f32 to vector<8x128xf32>
    %230 = arith.addf %229, %228 : vector<8x128xf32>
    %231 = arith.divf %229, %230 : vector<8x128xf32>
    %232 = vector.extract_strided_slice %210 {offsets = [0, 256], sizes = [8, 128], strides = [1, 1]} : vector<8x384xf32> to vector<8x128xf32>
    %233 = vector.extract_strided_slice %215 {offsets = [0, 256], sizes = [8, 128], strides = [1, 1]} : vector<8x384xf32> to vector<8x128xf32>
    %234 = arith.mulf %223, %233 : vector<8x128xf32>
    %235 = arith.addf %232, %234 : vector<8x128xf32>
    %236 = math.tanh %235 : vector<8x128xf32>
    %cst_71 = arith.constant 1.000000e+00 : f32
    %237 = vector.broadcast %cst_71 : f32 to vector<8x128xf32>
    %238 = arith.subf %237, %231 : vector<8x128xf32>
    %239 = arith.mulf %238, %236 : vector<8x128xf32>
    %240 = arith.mulf %231, %207 : vector<8x128xf32>
    %241 = arith.addf %239, %240 : vector<8x128xf32>
    %c7_i32 = arith.constant 7 : i32
    %242 = arith.index_cast %c7_i32 : i32 to index
    %c0_72 = arith.constant 0 : index
    %c0_73 = arith.constant 0 : index
    %243 = vector.load %arg2[%242, %c0_72, %c0_73] : memref<8x8x384xf32, #tpu.memory_space<vmem>>, vector<1x8x384xf32>
    %244 = vector.shape_cast %243 : vector<1x8x384xf32> to vector<8x384xf32>
    %c0_74 = arith.constant 0 : index
    %c0_75 = arith.constant 0 : index
    %245 = vector.load %arg3[%c0_74, %c0_75] : memref<128x384xf32, #tpu.memory_space<vmem>>, vector<128x384xf32>
    %cst_76 = arith.constant dense<0.000000e+00> : vector<8x384xf32>
    %246 = tpu.matmul %241, %245, %cst_76 {dimension_numbers = #tpu.dot_dimension_numbers<[1], [0], [0], [1], [0, 0, 1, 1], [], []>} : vector<8x128xf32>, vector<128x384xf32>, vector<8x384xf32> -> vector<8x384xf32>
    %c0_77 = arith.constant 0 : index
    %c0_78 = arith.constant 0 : index
    %247 = vector.load %arg4[%c0_77, %c0_78] : memref<1x384xf32, #tpu.memory_space<vmem>>, vector<1x384xf32>
    %248 = vector.broadcast %247 : vector<1x384xf32> to vector<8x384xf32>
    %249 = arith.addf %246, %248 : vector<8x384xf32>
    %250 = vector.extract_strided_slice %244 {offsets = [0, 0], sizes = [8, 128], strides = [1, 1]} : vector<8x384xf32> to vector<8x128xf32>
    %251 = vector.extract_strided_slice %249 {offsets = [0, 0], sizes = [8, 128], strides = [1, 1]} : vector<8x384xf32> to vector<8x128xf32>
    %252 = arith.addf %250, %251 : vector<8x128xf32>
    %253 = arith.negf %252 : vector<8x128xf32>
    %254 = math.exp %253 : vector<8x128xf32>
    %cst_79 = arith.constant 1.000000e+00 : f32
    %255 = vector.broadcast %cst_79 : f32 to vector<8x128xf32>
    %256 = arith.addf %255, %254 : vector<8x128xf32>
    %257 = arith.divf %255, %256 : vector<8x128xf32>
    %258 = vector.extract_strided_slice %244 {offsets = [0, 128], sizes = [8, 128], strides = [1, 1]} : vector<8x384xf32> to vector<8x128xf32>
    %259 = vector.extract_strided_slice %249 {offsets = [0, 128], sizes = [8, 128], strides = [1, 1]} : vector<8x384xf32> to vector<8x128xf32>
    %260 = arith.addf %258, %259 : vector<8x128xf32>
    %261 = arith.negf %260 : vector<8x128xf32>
    %262 = math.exp %261 : vector<8x128xf32>
    %cst_80 = arith.constant 1.000000e+00 : f32
    %263 = vector.broadcast %cst_80 : f32 to vector<8x128xf32>
    %264 = arith.addf %263, %262 : vector<8x128xf32>
    %265 = arith.divf %263, %264 : vector<8x128xf32>
    %266 = vector.extract_strided_slice %244 {offsets = [0, 256], sizes = [8, 128], strides = [1, 1]} : vector<8x384xf32> to vector<8x128xf32>
    %267 = vector.extract_strided_slice %249 {offsets = [0, 256], sizes = [8, 128], strides = [1, 1]} : vector<8x384xf32> to vector<8x128xf32>
    %268 = arith.mulf %257, %267 : vector<8x128xf32>
    %269 = arith.addf %266, %268 : vector<8x128xf32>
    %270 = math.tanh %269 : vector<8x128xf32>
    %cst_81 = arith.constant 1.000000e+00 : f32
    %271 = vector.broadcast %cst_81 : f32 to vector<8x128xf32>
    %272 = arith.subf %271, %265 : vector<8x128xf32>
    %273 = arith.mulf %272, %270 : vector<8x128xf32>
    %274 = arith.mulf %265, %241 : vector<8x128xf32>
    %275 = arith.addf %273, %274 : vector<8x128xf32>
    %c8_i32 = arith.constant 8 : i32
    %c0_82 = arith.constant 0 : index
    %c0_83 = arith.constant 0 : index
    %276 = vector.load %arg7[%c0_82, %c0_83] : memref<8x128xf32, #tpu.memory_space<vmem>>, vector<8x128xf32>
    tpu.vector_store %arg7[%c0_82, %c0_83], %275 {strides = array<i32>} : memref<8x128xf32, #tpu.memory_space<vmem>>, vector<8x128xf32>,
    %c0_i32_84 = arith.constant 0 : i32
    %277 = arith.cmpi eq, %arg1, %c0_i32_84 : i32
    %278 = arith.extui %277 : i1 to i32
    %c0_i32_85 = arith.constant 0 : i32
    %279 = arith.cmpi ne, %278, %c0_i32_85 : i32
    scf.if %279 {
      %c0_86 = arith.constant 0 : index
      %c0_87 = arith.constant 0 : index
      %280 = vector.load %arg6[%c0_86, %c0_87] : memref<8x128xf32, #tpu.memory_space<vmem>>, vector<8x128xf32>
      tpu.vector_store %arg6[%c0_86, %c0_87], %275 {strides = array<i32>} : memref<8x128xf32, #tpu.memory_space<vmem>>, vector<8x128xf32>,
    } else {
    }
    return
  }
  func.func @transform_0(%arg0: i32, %arg1: i32) -> (i32, i32, i32) {
    %c0_i32 = arith.constant 0 : i32
    %c0_i32_0 = arith.constant 0 : i32
    return %arg1, %arg0, %c0_i32 : i32, i32, i32
  }
  func.func @transform_1(%arg0: i32, %arg1: i32) -> (i32, i32) {
    %c0_i32 = arith.constant 0 : i32
    %c0_i32_0 = arith.constant 0 : i32
    %c0_i32_1 = arith.constant 0 : i32
    return %c0_i32, %c0_i32_0 : i32, i32
  }
  func.func @transform_2(%arg0: i32, %arg1: i32) -> (i32, i32) {
    %c0_i32 = arith.constant 0 : i32
    %c0_i32_0 = arith.constant 0 : i32
    %c0_i32_1 = arith.constant 0 : i32
    return %c0_i32, %c0_i32_0 : i32, i32
  }
  func.func @transform_3(%arg0: i32, %arg1: i32) -> (i32, i32) {
    %c0_i32 = arith.constant 0 : i32
    %c0_i32_0 = arith.constant 0 : i32
    return %arg0, %c0_i32 : i32, i32
  }
  func.func @transform_4(%arg0: i32, %arg1: i32) -> (i32, i32) {
    %c0_i32 = arith.constant 0 : i32
    %c0_i32_0 = arith.constant 0 : i32
    return %arg0, %c0_i32 : i32, i32
  }
}

module attributes {stable_mosaic.version = 11 : i64} {
  func.func @kernel(%arg0: i32, %arg1: i32, %arg2: memref<8x8x384xf32, #tpu.memory_space<vmem>>, %arg3: memref<128x384xf32, #tpu.memory_space<vmem>>, %arg4: memref<1x384xf32, #tpu.memory_space<vmem>>, %arg5: memref<8x128xf32, #tpu.memory_space<vmem>>, %arg6: memref<8x8x128xf32, #tpu.memory_space<vmem>>, %arg7: memref<8x128xf32, #tpu.memory_space<vmem>>, %arg8: memref<8x128xf32, #tpu.memory_space<vmem>>) attributes {dimension_semantics = [#tpu.dimension_semantics<parallel>, #tpu.dimension_semantics<arbitrary>], iteration_bounds = array<i64: 1, 1>, scalar_prefetch = 0 : i64, scratch_operands = 1 : i64, tpu.core_type = #tpu.core_type<tc>, window_params = [{transform_indices = @transform_0, window_bounds = array<i64: 8, 8, 384>}, {pipeline_mode = #tpu.pipeline_mode<synchronous>, transform_indices = @transform_1, window_bounds = array<i64: 128, 384>}, {pipeline_mode = #tpu.pipeline_mode<synchronous>, transform_indices = @transform_2, window_bounds = array<i64: 1, 384>}, {transform_indices = @transform_3, window_bounds = array<i64: 8, 128>}, {transform_indices = @transform_4, window_bounds = array<i64: 8, 8, 128>}, {transform_indices = @transform_5, window_bounds = array<i64: 8, 128>}]} {
    %c0_i32 = arith.constant 0 : i32
    %0 = arith.cmpi eq, %arg1, %c0_i32 : i32
    %1 = arith.extui %0 : i1 to i32
    %c0_i32_0 = arith.constant 0 : i32
    %2 = arith.cmpi ne, %1, %c0_i32_0 : i32
    scf.if %2 {
      %c0_102 = arith.constant 0 : index
      %c0_103 = arith.constant 0 : index
      %312 = vector.load %arg5[%c0_102, %c0_103] : memref<8x128xf32, #tpu.memory_space<vmem>>, vector<8x128xf32>
      %c0_104 = arith.constant 0 : index
      %c0_105 = arith.constant 0 : index
      %313 = vector.load %arg8[%c0_104, %c0_105] : memref<8x128xf32, #tpu.memory_space<vmem>>, vector<8x128xf32>
      tpu.vector_store %arg8[%c0_104, %c0_105], %312 {strides = array<i32>} : memref<8x128xf32, #tpu.memory_space<vmem>>, vector<8x128xf32>,
    } else {
    }
    %c0 = arith.constant 0 : index
    %c0_1 = arith.constant 0 : index
    %3 = vector.load %arg8[%c0, %c0_1] : memref<8x128xf32, #tpu.memory_space<vmem>>, vector<8x128xf32>
    %c0_i32_2 = arith.constant 0 : i32
    %4 = arith.index_cast %c0_i32_2 : i32 to index
    %c0_3 = arith.constant 0 : index
    %c0_4 = arith.constant 0 : index
    %5 = vector.load %arg2[%4, %c0_3, %c0_4] : memref<8x8x384xf32, #tpu.memory_space<vmem>>, vector<1x8x384xf32>
    %6 = vector.shape_cast %5 : vector<1x8x384xf32> to vector<8x384xf32>
    %c0_5 = arith.constant 0 : index
    %c0_6 = arith.constant 0 : index
    %7 = vector.load %arg3[%c0_5, %c0_6] : memref<128x384xf32, #tpu.memory_space<vmem>>, vector<128x384xf32>
    %cst = arith.constant dense<0.000000e+00> : vector<8x384xf32>
    %8 = tpu.matmul %3, %7, %cst {dimension_numbers = #tpu.dot_dimension_numbers<[1], [0], [0], [1], [0, 0, 1, 1], [], []>} : vector<8x128xf32>, vector<128x384xf32>, vector<8x384xf32> -> vector<8x384xf32>
    %c0_7 = arith.constant 0 : index
    %c0_8 = arith.constant 0 : index
    %9 = vector.load %arg4[%c0_7, %c0_8] : memref<1x384xf32, #tpu.memory_space<vmem>>, vector<1x384xf32>
    %10 = vector.broadcast %9 : vector<1x384xf32> to vector<8x384xf32>
    %11 = arith.addf %8, %10 : vector<8x384xf32>
    %12 = vector.extract_strided_slice %6 {offsets = [0, 0], sizes = [8, 128], strides = [1, 1]} : vector<8x384xf32> to vector<8x128xf32>
    %13 = vector.extract_strided_slice %11 {offsets = [0, 0], sizes = [8, 128], strides = [1, 1]} : vector<8x384xf32> to vector<8x128xf32>
    %14 = arith.addf %12, %13 : vector<8x128xf32>
    %15 = arith.negf %14 : vector<8x128xf32>
    %16 = math.exp %15 : vector<8x128xf32>
    %cst_9 = arith.constant 1.000000e+00 : f32
    %17 = vector.broadcast %cst_9 : f32 to vector<8x128xf32>
    %18 = arith.addf %17, %16 : vector<8x128xf32>
    %19 = arith.divf %17, %18 : vector<8x128xf32>
    %20 = vector.extract_strided_slice %6 {offsets = [0, 128], sizes = [8, 128], strides = [1, 1]} : vector<8x384xf32> to vector<8x128xf32>
    %21 = vector.extract_strided_slice %11 {offsets = [0, 128], sizes = [8, 128], strides = [1, 1]} : vector<8x384xf32> to vector<8x128xf32>
    %22 = arith.addf %20, %21 : vector<8x128xf32>
    %23 = arith.negf %22 : vector<8x128xf32>
    %24 = math.exp %23 : vector<8x128xf32>
    %cst_10 = arith.constant 1.000000e+00 : f32
    %25 = vector.broadcast %cst_10 : f32 to vector<8x128xf32>
    %26 = arith.addf %25, %24 : vector<8x128xf32>
    %27 = arith.divf %25, %26 : vector<8x128xf32>
    %28 = vector.extract_strided_slice %6 {offsets = [0, 256], sizes = [8, 128], strides = [1, 1]} : vector<8x384xf32> to vector<8x128xf32>
    %29 = vector.extract_strided_slice %11 {offsets = [0, 256], sizes = [8, 128], strides = [1, 1]} : vector<8x384xf32> to vector<8x128xf32>
    %30 = arith.mulf %19, %29 : vector<8x128xf32>
    %31 = arith.addf %28, %30 : vector<8x128xf32>
    %32 = math.tanh %31 : vector<8x128xf32>
    %cst_11 = arith.constant 1.000000e+00 : f32
    %33 = vector.broadcast %cst_11 : f32 to vector<8x128xf32>
    %34 = arith.subf %33, %27 : vector<8x128xf32>
    %35 = arith.mulf %34, %32 : vector<8x128xf32>
    %36 = arith.mulf %27, %3 : vector<8x128xf32>
    %37 = arith.addf %35, %36 : vector<8x128xf32>
    %38 = arith.index_cast %c0_i32_2 : i32 to index
    %c0_12 = arith.constant 0 : index
    %c0_13 = arith.constant 0 : index
    %39 = vector.load %arg6[%38, %c0_12, %c0_13] : memref<8x8x128xf32, #tpu.memory_space<vmem>>, vector<1x8x128xf32>
    %40 = vector.shape_cast %39 : vector<1x8x128xf32> to vector<8x128xf32>
    %41 = vector.shape_cast %37 : vector<8x128xf32> to vector<1x8x128xf32>
    tpu.vector_store %arg6[%38, %c0_12, %c0_13], %41 {strides = array<i32>} : memref<8x8x128xf32, #tpu.memory_space<vmem>>, vector<1x8x128xf32>,
    %c1_i32 = arith.constant 1 : i32
    %42 = arith.index_cast %c1_i32 : i32 to index
    %c0_14 = arith.constant 0 : index
    %c0_15 = arith.constant 0 : index
    %43 = vector.load %arg2[%42, %c0_14, %c0_15] : memref<8x8x384xf32, #tpu.memory_space<vmem>>, vector<1x8x384xf32>
    %44 = vector.shape_cast %43 : vector<1x8x384xf32> to vector<8x384xf32>
    %c0_16 = arith.constant 0 : index
    %c0_17 = arith.constant 0 : index
    %45 = vector.load %arg3[%c0_16, %c0_17] : memref<128x384xf32, #tpu.memory_space<vmem>>, vector<128x384xf32>
    %cst_18 = arith.constant dense<0.000000e+00> : vector<8x384xf32>
    %46 = tpu.matmul %37, %45, %cst_18 {dimension_numbers = #tpu.dot_dimension_numbers<[1], [0], [0], [1], [0, 0, 1, 1], [], []>} : vector<8x128xf32>, vector<128x384xf32>, vector<8x384xf32> -> vector<8x384xf32>
    %c0_19 = arith.constant 0 : index
    %c0_20 = arith.constant 0 : index
    %47 = vector.load %arg4[%c0_19, %c0_20] : memref<1x384xf32, #tpu.memory_space<vmem>>, vector<1x384xf32>
    %48 = vector.broadcast %47 : vector<1x384xf32> to vector<8x384xf32>
    %49 = arith.addf %46, %48 : vector<8x384xf32>
    %50 = vector.extract_strided_slice %44 {offsets = [0, 0], sizes = [8, 128], strides = [1, 1]} : vector<8x384xf32> to vector<8x128xf32>
    %51 = vector.extract_strided_slice %49 {offsets = [0, 0], sizes = [8, 128], strides = [1, 1]} : vector<8x384xf32> to vector<8x128xf32>
    %52 = arith.addf %50, %51 : vector<8x128xf32>
    %53 = arith.negf %52 : vector<8x128xf32>
    %54 = math.exp %53 : vector<8x128xf32>
    %cst_21 = arith.constant 1.000000e+00 : f32
    %55 = vector.broadcast %cst_21 : f32 to vector<8x128xf32>
    %56 = arith.addf %55, %54 : vector<8x128xf32>
    %57 = arith.divf %55, %56 : vector<8x128xf32>
    %58 = vector.extract_strided_slice %44 {offsets = [0, 128], sizes = [8, 128], strides = [1, 1]} : vector<8x384xf32> to vector<8x128xf32>
    %59 = vector.extract_strided_slice %49 {offsets = [0, 128], sizes = [8, 128], strides = [1, 1]} : vector<8x384xf32> to vector<8x128xf32>
    %60 = arith.addf %58, %59 : vector<8x128xf32>
    %61 = arith.negf %60 : vector<8x128xf32>
    %62 = math.exp %61 : vector<8x128xf32>
    %cst_22 = arith.constant 1.000000e+00 : f32
    %63 = vector.broadcast %cst_22 : f32 to vector<8x128xf32>
    %64 = arith.addf %63, %62 : vector<8x128xf32>
    %65 = arith.divf %63, %64 : vector<8x128xf32>
    %66 = vector.extract_strided_slice %44 {offsets = [0, 256], sizes = [8, 128], strides = [1, 1]} : vector<8x384xf32> to vector<8x128xf32>
    %67 = vector.extract_strided_slice %49 {offsets = [0, 256], sizes = [8, 128], strides = [1, 1]} : vector<8x384xf32> to vector<8x128xf32>
    %68 = arith.mulf %57, %67 : vector<8x128xf32>
    %69 = arith.addf %66, %68 : vector<8x128xf32>
    %70 = math.tanh %69 : vector<8x128xf32>
    %cst_23 = arith.constant 1.000000e+00 : f32
    %71 = vector.broadcast %cst_23 : f32 to vector<8x128xf32>
    %72 = arith.subf %71, %65 : vector<8x128xf32>
    %73 = arith.mulf %72, %70 : vector<8x128xf32>
    %74 = arith.mulf %65, %37 : vector<8x128xf32>
    %75 = arith.addf %73, %74 : vector<8x128xf32>
    %76 = arith.index_cast %c1_i32 : i32 to index
    %c0_24 = arith.constant 0 : index
    %c0_25 = arith.constant 0 : index
    %77 = vector.load %arg6[%76, %c0_24, %c0_25] : memref<8x8x128xf32, #tpu.memory_space<vmem>>, vector<1x8x128xf32>
    %78 = vector.shape_cast %77 : vector<1x8x128xf32> to vector<8x128xf32>
    %79 = vector.shape_cast %75 : vector<8x128xf32> to vector<1x8x128xf32>
    tpu.vector_store %arg6[%76, %c0_24, %c0_25], %79 {strides = array<i32>} : memref<8x8x128xf32, #tpu.memory_space<vmem>>, vector<1x8x128xf32>,
    %c2_i32 = arith.constant 2 : i32
    %80 = arith.index_cast %c2_i32 : i32 to index
    %c0_26 = arith.constant 0 : index
    %c0_27 = arith.constant 0 : index
    %81 = vector.load %arg2[%80, %c0_26, %c0_27] : memref<8x8x384xf32, #tpu.memory_space<vmem>>, vector<1x8x384xf32>
    %82 = vector.shape_cast %81 : vector<1x8x384xf32> to vector<8x384xf32>
    %c0_28 = arith.constant 0 : index
    %c0_29 = arith.constant 0 : index
    %83 = vector.load %arg3[%c0_28, %c0_29] : memref<128x384xf32, #tpu.memory_space<vmem>>, vector<128x384xf32>
    %cst_30 = arith.constant dense<0.000000e+00> : vector<8x384xf32>
    %84 = tpu.matmul %75, %83, %cst_30 {dimension_numbers = #tpu.dot_dimension_numbers<[1], [0], [0], [1], [0, 0, 1, 1], [], []>} : vector<8x128xf32>, vector<128x384xf32>, vector<8x384xf32> -> vector<8x384xf32>
    %c0_31 = arith.constant 0 : index
    %c0_32 = arith.constant 0 : index
    %85 = vector.load %arg4[%c0_31, %c0_32] : memref<1x384xf32, #tpu.memory_space<vmem>>, vector<1x384xf32>
    %86 = vector.broadcast %85 : vector<1x384xf32> to vector<8x384xf32>
    %87 = arith.addf %84, %86 : vector<8x384xf32>
    %88 = vector.extract_strided_slice %82 {offsets = [0, 0], sizes = [8, 128], strides = [1, 1]} : vector<8x384xf32> to vector<8x128xf32>
    %89 = vector.extract_strided_slice %87 {offsets = [0, 0], sizes = [8, 128], strides = [1, 1]} : vector<8x384xf32> to vector<8x128xf32>
    %90 = arith.addf %88, %89 : vector<8x128xf32>
    %91 = arith.negf %90 : vector<8x128xf32>
    %92 = math.exp %91 : vector<8x128xf32>
    %cst_33 = arith.constant 1.000000e+00 : f32
    %93 = vector.broadcast %cst_33 : f32 to vector<8x128xf32>
    %94 = arith.addf %93, %92 : vector<8x128xf32>
    %95 = arith.divf %93, %94 : vector<8x128xf32>
    %96 = vector.extract_strided_slice %82 {offsets = [0, 128], sizes = [8, 128], strides = [1, 1]} : vector<8x384xf32> to vector<8x128xf32>
    %97 = vector.extract_strided_slice %87 {offsets = [0, 128], sizes = [8, 128], strides = [1, 1]} : vector<8x384xf32> to vector<8x128xf32>
    %98 = arith.addf %96, %97 : vector<8x128xf32>
    %99 = arith.negf %98 : vector<8x128xf32>
    %100 = math.exp %99 : vector<8x128xf32>
    %cst_34 = arith.constant 1.000000e+00 : f32
    %101 = vector.broadcast %cst_34 : f32 to vector<8x128xf32>
    %102 = arith.addf %101, %100 : vector<8x128xf32>
    %103 = arith.divf %101, %102 : vector<8x128xf32>
    %104 = vector.extract_strided_slice %82 {offsets = [0, 256], sizes = [8, 128], strides = [1, 1]} : vector<8x384xf32> to vector<8x128xf32>
    %105 = vector.extract_strided_slice %87 {offsets = [0, 256], sizes = [8, 128], strides = [1, 1]} : vector<8x384xf32> to vector<8x128xf32>
    %106 = arith.mulf %95, %105 : vector<8x128xf32>
    %107 = arith.addf %104, %106 : vector<8x128xf32>
    %108 = math.tanh %107 : vector<8x128xf32>
    %cst_35 = arith.constant 1.000000e+00 : f32
    %109 = vector.broadcast %cst_35 : f32 to vector<8x128xf32>
    %110 = arith.subf %109, %103 : vector<8x128xf32>
    %111 = arith.mulf %110, %108 : vector<8x128xf32>
    %112 = arith.mulf %103, %75 : vector<8x128xf32>
    %113 = arith.addf %111, %112 : vector<8x128xf32>
    %114 = arith.index_cast %c2_i32 : i32 to index
    %c0_36 = arith.constant 0 : index
    %c0_37 = arith.constant 0 : index
    %115 = vector.load %arg6[%114, %c0_36, %c0_37] : memref<8x8x128xf32, #tpu.memory_space<vmem>>, vector<1x8x128xf32>
    %116 = vector.shape_cast %115 : vector<1x8x128xf32> to vector<8x128xf32>
    %117 = vector.shape_cast %113 : vector<8x128xf32> to vector<1x8x128xf32>
    tpu.vector_store %arg6[%114, %c0_36, %c0_37], %117 {strides = array<i32>} : memref<8x8x128xf32, #tpu.memory_space<vmem>>, vector<1x8x128xf32>,
    %c3_i32 = arith.constant 3 : i32
    %118 = arith.index_cast %c3_i32 : i32 to index
    %c0_38 = arith.constant 0 : index
    %c0_39 = arith.constant 0 : index
    %119 = vector.load %arg2[%118, %c0_38, %c0_39] : memref<8x8x384xf32, #tpu.memory_space<vmem>>, vector<1x8x384xf32>
    %120 = vector.shape_cast %119 : vector<1x8x384xf32> to vector<8x384xf32>
    %c0_40 = arith.constant 0 : index
    %c0_41 = arith.constant 0 : index
    %121 = vector.load %arg3[%c0_40, %c0_41] : memref<128x384xf32, #tpu.memory_space<vmem>>, vector<128x384xf32>
    %cst_42 = arith.constant dense<0.000000e+00> : vector<8x384xf32>
    %122 = tpu.matmul %113, %121, %cst_42 {dimension_numbers = #tpu.dot_dimension_numbers<[1], [0], [0], [1], [0, 0, 1, 1], [], []>} : vector<8x128xf32>, vector<128x384xf32>, vector<8x384xf32> -> vector<8x384xf32>
    %c0_43 = arith.constant 0 : index
    %c0_44 = arith.constant 0 : index
    %123 = vector.load %arg4[%c0_43, %c0_44] : memref<1x384xf32, #tpu.memory_space<vmem>>, vector<1x384xf32>
    %124 = vector.broadcast %123 : vector<1x384xf32> to vector<8x384xf32>
    %125 = arith.addf %122, %124 : vector<8x384xf32>
    %126 = vector.extract_strided_slice %120 {offsets = [0, 0], sizes = [8, 128], strides = [1, 1]} : vector<8x384xf32> to vector<8x128xf32>
    %127 = vector.extract_strided_slice %125 {offsets = [0, 0], sizes = [8, 128], strides = [1, 1]} : vector<8x384xf32> to vector<8x128xf32>
    %128 = arith.addf %126, %127 : vector<8x128xf32>
    %129 = arith.negf %128 : vector<8x128xf32>
    %130 = math.exp %129 : vector<8x128xf32>
    %cst_45 = arith.constant 1.000000e+00 : f32
    %131 = vector.broadcast %cst_45 : f32 to vector<8x128xf32>
    %132 = arith.addf %131, %130 : vector<8x128xf32>
    %133 = arith.divf %131, %132 : vector<8x128xf32>
    %134 = vector.extract_strided_slice %120 {offsets = [0, 128], sizes = [8, 128], strides = [1, 1]} : vector<8x384xf32> to vector<8x128xf32>
    %135 = vector.extract_strided_slice %125 {offsets = [0, 128], sizes = [8, 128], strides = [1, 1]} : vector<8x384xf32> to vector<8x128xf32>
    %136 = arith.addf %134, %135 : vector<8x128xf32>
    %137 = arith.negf %136 : vector<8x128xf32>
    %138 = math.exp %137 : vector<8x128xf32>
    %cst_46 = arith.constant 1.000000e+00 : f32
    %139 = vector.broadcast %cst_46 : f32 to vector<8x128xf32>
    %140 = arith.addf %139, %138 : vector<8x128xf32>
    %141 = arith.divf %139, %140 : vector<8x128xf32>
    %142 = vector.extract_strided_slice %120 {offsets = [0, 256], sizes = [8, 128], strides = [1, 1]} : vector<8x384xf32> to vector<8x128xf32>
    %143 = vector.extract_strided_slice %125 {offsets = [0, 256], sizes = [8, 128], strides = [1, 1]} : vector<8x384xf32> to vector<8x128xf32>
    %144 = arith.mulf %133, %143 : vector<8x128xf32>
    %145 = arith.addf %142, %144 : vector<8x128xf32>
    %146 = math.tanh %145 : vector<8x128xf32>
    %cst_47 = arith.constant 1.000000e+00 : f32
    %147 = vector.broadcast %cst_47 : f32 to vector<8x128xf32>
    %148 = arith.subf %147, %141 : vector<8x128xf32>
    %149 = arith.mulf %148, %146 : vector<8x128xf32>
    %150 = arith.mulf %141, %113 : vector<8x128xf32>
    %151 = arith.addf %149, %150 : vector<8x128xf32>
    %152 = arith.index_cast %c3_i32 : i32 to index
    %c0_48 = arith.constant 0 : index
    %c0_49 = arith.constant 0 : index
    %153 = vector.load %arg6[%152, %c0_48, %c0_49] : memref<8x8x128xf32, #tpu.memory_space<vmem>>, vector<1x8x128xf32>
    %154 = vector.shape_cast %153 : vector<1x8x128xf32> to vector<8x128xf32>
    %155 = vector.shape_cast %151 : vector<8x128xf32> to vector<1x8x128xf32>
    tpu.vector_store %arg6[%152, %c0_48, %c0_49], %155 {strides = array<i32>} : memref<8x8x128xf32, #tpu.memory_space<vmem>>, vector<1x8x128xf32>,
    %c4_i32 = arith.constant 4 : i32
    %156 = arith.index_cast %c4_i32 : i32 to index
    %c0_50 = arith.constant 0 : index
    %c0_51 = arith.constant 0 : index
    %157 = vector.load %arg2[%156, %c0_50, %c0_51] : memref<8x8x384xf32, #tpu.memory_space<vmem>>, vector<1x8x384xf32>
    %158 = vector.shape_cast %157 : vector<1x8x384xf32> to vector<8x384xf32>
    %c0_52 = arith.constant 0 : index
    %c0_53 = arith.constant 0 : index
    %159 = vector.load %arg3[%c0_52, %c0_53] : memref<128x384xf32, #tpu.memory_space<vmem>>, vector<128x384xf32>
    %cst_54 = arith.constant dense<0.000000e+00> : vector<8x384xf32>
    %160 = tpu.matmul %151, %159, %cst_54 {dimension_numbers = #tpu.dot_dimension_numbers<[1], [0], [0], [1], [0, 0, 1, 1], [], []>} : vector<8x128xf32>, vector<128x384xf32>, vector<8x384xf32> -> vector<8x384xf32>
    %c0_55 = arith.constant 0 : index
    %c0_56 = arith.constant 0 : index
    %161 = vector.load %arg4[%c0_55, %c0_56] : memref<1x384xf32, #tpu.memory_space<vmem>>, vector<1x384xf32>
    %162 = vector.broadcast %161 : vector<1x384xf32> to vector<8x384xf32>
    %163 = arith.addf %160, %162 : vector<8x384xf32>
    %164 = vector.extract_strided_slice %158 {offsets = [0, 0], sizes = [8, 128], strides = [1, 1]} : vector<8x384xf32> to vector<8x128xf32>
    %165 = vector.extract_strided_slice %163 {offsets = [0, 0], sizes = [8, 128], strides = [1, 1]} : vector<8x384xf32> to vector<8x128xf32>
    %166 = arith.addf %164, %165 : vector<8x128xf32>
    %167 = arith.negf %166 : vector<8x128xf32>
    %168 = math.exp %167 : vector<8x128xf32>
    %cst_57 = arith.constant 1.000000e+00 : f32
    %169 = vector.broadcast %cst_57 : f32 to vector<8x128xf32>
    %170 = arith.addf %169, %168 : vector<8x128xf32>
    %171 = arith.divf %169, %170 : vector<8x128xf32>
    %172 = vector.extract_strided_slice %158 {offsets = [0, 128], sizes = [8, 128], strides = [1, 1]} : vector<8x384xf32> to vector<8x128xf32>
    %173 = vector.extract_strided_slice %163 {offsets = [0, 128], sizes = [8, 128], strides = [1, 1]} : vector<8x384xf32> to vector<8x128xf32>
    %174 = arith.addf %172, %173 : vector<8x128xf32>
    %175 = arith.negf %174 : vector<8x128xf32>
    %176 = math.exp %175 : vector<8x128xf32>
    %cst_58 = arith.constant 1.000000e+00 : f32
    %177 = vector.broadcast %cst_58 : f32 to vector<8x128xf32>
    %178 = arith.addf %177, %176 : vector<8x128xf32>
    %179 = arith.divf %177, %178 : vector<8x128xf32>
    %180 = vector.extract_strided_slice %158 {offsets = [0, 256], sizes = [8, 128], strides = [1, 1]} : vector<8x384xf32> to vector<8x128xf32>
    %181 = vector.extract_strided_slice %163 {offsets = [0, 256], sizes = [8, 128], strides = [1, 1]} : vector<8x384xf32> to vector<8x128xf32>
    %182 = arith.mulf %171, %181 : vector<8x128xf32>
    %183 = arith.addf %180, %182 : vector<8x128xf32>
    %184 = math.tanh %183 : vector<8x128xf32>
    %cst_59 = arith.constant 1.000000e+00 : f32
    %185 = vector.broadcast %cst_59 : f32 to vector<8x128xf32>
    %186 = arith.subf %185, %179 : vector<8x128xf32>
    %187 = arith.mulf %186, %184 : vector<8x128xf32>
    %188 = arith.mulf %179, %151 : vector<8x128xf32>
    %189 = arith.addf %187, %188 : vector<8x128xf32>
    %190 = arith.index_cast %c4_i32 : i32 to index
    %c0_60 = arith.constant 0 : index
    %c0_61 = arith.constant 0 : index
    %191 = vector.load %arg6[%190, %c0_60, %c0_61] : memref<8x8x128xf32, #tpu.memory_space<vmem>>, vector<1x8x128xf32>
    %192 = vector.shape_cast %191 : vector<1x8x128xf32> to vector<8x128xf32>
    %193 = vector.shape_cast %189 : vector<8x128xf32> to vector<1x8x128xf32>
    tpu.vector_store %arg6[%190, %c0_60, %c0_61], %193 {strides = array<i32>} : memref<8x8x128xf32, #tpu.memory_space<vmem>>, vector<1x8x128xf32>,
    %c5_i32 = arith.constant 5 : i32
    %194 = arith.index_cast %c5_i32 : i32 to index
    %c0_62 = arith.constant 0 : index
    %c0_63 = arith.constant 0 : index
    %195 = vector.load %arg2[%194, %c0_62, %c0_63] : memref<8x8x384xf32, #tpu.memory_space<vmem>>, vector<1x8x384xf32>
    %196 = vector.shape_cast %195 : vector<1x8x384xf32> to vector<8x384xf32>
    %c0_64 = arith.constant 0 : index
    %c0_65 = arith.constant 0 : index
    %197 = vector.load %arg3[%c0_64, %c0_65] : memref<128x384xf32, #tpu.memory_space<vmem>>, vector<128x384xf32>
    %cst_66 = arith.constant dense<0.000000e+00> : vector<8x384xf32>
    %198 = tpu.matmul %189, %197, %cst_66 {dimension_numbers = #tpu.dot_dimension_numbers<[1], [0], [0], [1], [0, 0, 1, 1], [], []>} : vector<8x128xf32>, vector<128x384xf32>, vector<8x384xf32> -> vector<8x384xf32>
    %c0_67 = arith.constant 0 : index
    %c0_68 = arith.constant 0 : index
    %199 = vector.load %arg4[%c0_67, %c0_68] : memref<1x384xf32, #tpu.memory_space<vmem>>, vector<1x384xf32>
    %200 = vector.broadcast %199 : vector<1x384xf32> to vector<8x384xf32>
    %201 = arith.addf %198, %200 : vector<8x384xf32>
    %202 = vector.extract_strided_slice %196 {offsets = [0, 0], sizes = [8, 128], strides = [1, 1]} : vector<8x384xf32> to vector<8x128xf32>
    %203 = vector.extract_strided_slice %201 {offsets = [0, 0], sizes = [8, 128], strides = [1, 1]} : vector<8x384xf32> to vector<8x128xf32>
    %204 = arith.addf %202, %203 : vector<8x128xf32>
    %205 = arith.negf %204 : vector<8x128xf32>
    %206 = math.exp %205 : vector<8x128xf32>
    %cst_69 = arith.constant 1.000000e+00 : f32
    %207 = vector.broadcast %cst_69 : f32 to vector<8x128xf32>
    %208 = arith.addf %207, %206 : vector<8x128xf32>
    %209 = arith.divf %207, %208 : vector<8x128xf32>
    %210 = vector.extract_strided_slice %196 {offsets = [0, 128], sizes = [8, 128], strides = [1, 1]} : vector<8x384xf32> to vector<8x128xf32>
    %211 = vector.extract_strided_slice %201 {offsets = [0, 128], sizes = [8, 128], strides = [1, 1]} : vector<8x384xf32> to vector<8x128xf32>
    %212 = arith.addf %210, %211 : vector<8x128xf32>
    %213 = arith.negf %212 : vector<8x128xf32>
    %214 = math.exp %213 : vector<8x128xf32>
    %cst_70 = arith.constant 1.000000e+00 : f32
    %215 = vector.broadcast %cst_70 : f32 to vector<8x128xf32>
    %216 = arith.addf %215, %214 : vector<8x128xf32>
    %217 = arith.divf %215, %216 : vector<8x128xf32>
    %218 = vector.extract_strided_slice %196 {offsets = [0, 256], sizes = [8, 128], strides = [1, 1]} : vector<8x384xf32> to vector<8x128xf32>
    %219 = vector.extract_strided_slice %201 {offsets = [0, 256], sizes = [8, 128], strides = [1, 1]} : vector<8x384xf32> to vector<8x128xf32>
    %220 = arith.mulf %209, %219 : vector<8x128xf32>
    %221 = arith.addf %218, %220 : vector<8x128xf32>
    %222 = math.tanh %221 : vector<8x128xf32>
    %cst_71 = arith.constant 1.000000e+00 : f32
    %223 = vector.broadcast %cst_71 : f32 to vector<8x128xf32>
    %224 = arith.subf %223, %217 : vector<8x128xf32>
    %225 = arith.mulf %224, %222 : vector<8x128xf32>
    %226 = arith.mulf %217, %189 : vector<8x128xf32>
    %227 = arith.addf %225, %226 : vector<8x128xf32>
    %228 = arith.index_cast %c5_i32 : i32 to index
    %c0_72 = arith.constant 0 : index
    %c0_73 = arith.constant 0 : index
    %229 = vector.load %arg6[%228, %c0_72, %c0_73] : memref<8x8x128xf32, #tpu.memory_space<vmem>>, vector<1x8x128xf32>
    %230 = vector.shape_cast %229 : vector<1x8x128xf32> to vector<8x128xf32>
    %231 = vector.shape_cast %227 : vector<8x128xf32> to vector<1x8x128xf32>
    tpu.vector_store %arg6[%228, %c0_72, %c0_73], %231 {strides = array<i32>} : memref<8x8x128xf32, #tpu.memory_space<vmem>>, vector<1x8x128xf32>,
    %c6_i32 = arith.constant 6 : i32
    %232 = arith.index_cast %c6_i32 : i32 to index
    %c0_74 = arith.constant 0 : index
    %c0_75 = arith.constant 0 : index
    %233 = vector.load %arg2[%232, %c0_74, %c0_75] : memref<8x8x384xf32, #tpu.memory_space<vmem>>, vector<1x8x384xf32>
    %234 = vector.shape_cast %233 : vector<1x8x384xf32> to vector<8x384xf32>
    %c0_76 = arith.constant 0 : index
    %c0_77 = arith.constant 0 : index
    %235 = vector.load %arg3[%c0_76, %c0_77] : memref<128x384xf32, #tpu.memory_space<vmem>>, vector<128x384xf32>
    %cst_78 = arith.constant dense<0.000000e+00> : vector<8x384xf32>
    %236 = tpu.matmul %227, %235, %cst_78 {dimension_numbers = #tpu.dot_dimension_numbers<[1], [0], [0], [1], [0, 0, 1, 1], [], []>} : vector<8x128xf32>, vector<128x384xf32>, vector<8x384xf32> -> vector<8x384xf32>
    %c0_79 = arith.constant 0 : index
    %c0_80 = arith.constant 0 : index
    %237 = vector.load %arg4[%c0_79, %c0_80] : memref<1x384xf32, #tpu.memory_space<vmem>>, vector<1x384xf32>
    %238 = vector.broadcast %237 : vector<1x384xf32> to vector<8x384xf32>
    %239 = arith.addf %236, %238 : vector<8x384xf32>
    %240 = vector.extract_strided_slice %234 {offsets = [0, 0], sizes = [8, 128], strides = [1, 1]} : vector<8x384xf32> to vector<8x128xf32>
    %241 = vector.extract_strided_slice %239 {offsets = [0, 0], sizes = [8, 128], strides = [1, 1]} : vector<8x384xf32> to vector<8x128xf32>
    %242 = arith.addf %240, %241 : vector<8x128xf32>
    %243 = arith.negf %242 : vector<8x128xf32>
    %244 = math.exp %243 : vector<8x128xf32>
    %cst_81 = arith.constant 1.000000e+00 : f32
    %245 = vector.broadcast %cst_81 : f32 to vector<8x128xf32>
    %246 = arith.addf %245, %244 : vector<8x128xf32>
    %247 = arith.divf %245, %246 : vector<8x128xf32>
    %248 = vector.extract_strided_slice %234 {offsets = [0, 128], sizes = [8, 128], strides = [1, 1]} : vector<8x384xf32> to vector<8x128xf32>
    %249 = vector.extract_strided_slice %239 {offsets = [0, 128], sizes = [8, 128], strides = [1, 1]} : vector<8x384xf32> to vector<8x128xf32>
    %250 = arith.addf %248, %249 : vector<8x128xf32>
    %251 = arith.negf %250 : vector<8x128xf32>
    %252 = math.exp %251 : vector<8x128xf32>
    %cst_82 = arith.constant 1.000000e+00 : f32
    %253 = vector.broadcast %cst_82 : f32 to vector<8x128xf32>
    %254 = arith.addf %253, %252 : vector<8x128xf32>
    %255 = arith.divf %253, %254 : vector<8x128xf32>
    %256 = vector.extract_strided_slice %234 {offsets = [0, 256], sizes = [8, 128], strides = [1, 1]} : vector<8x384xf32> to vector<8x128xf32>
    %257 = vector.extract_strided_slice %239 {offsets = [0, 256], sizes = [8, 128], strides = [1, 1]} : vector<8x384xf32> to vector<8x128xf32>
    %258 = arith.mulf %247, %257 : vector<8x128xf32>
    %259 = arith.addf %256, %258 : vector<8x128xf32>
    %260 = math.tanh %259 : vector<8x128xf32>
    %cst_83 = arith.constant 1.000000e+00 : f32
    %261 = vector.broadcast %cst_83 : f32 to vector<8x128xf32>
    %262 = arith.subf %261, %255 : vector<8x128xf32>
    %263 = arith.mulf %262, %260 : vector<8x128xf32>
    %264 = arith.mulf %255, %227 : vector<8x128xf32>
    %265 = arith.addf %263, %264 : vector<8x128xf32>
    %266 = arith.index_cast %c6_i32 : i32 to index
    %c0_84 = arith.constant 0 : index
    %c0_85 = arith.constant 0 : index
    %267 = vector.load %arg6[%266, %c0_84, %c0_85] : memref<8x8x128xf32, #tpu.memory_space<vmem>>, vector<1x8x128xf32>
    %268 = vector.shape_cast %267 : vector<1x8x128xf32> to vector<8x128xf32>
    %269 = vector.shape_cast %265 : vector<8x128xf32> to vector<1x8x128xf32>
    tpu.vector_store %arg6[%266, %c0_84, %c0_85], %269 {strides = array<i32>} : memref<8x8x128xf32, #tpu.memory_space<vmem>>, vector<1x8x128xf32>,
    %c7_i32 = arith.constant 7 : i32
    %270 = arith.index_cast %c7_i32 : i32 to index
    %c0_86 = arith.constant 0 : index
    %c0_87 = arith.constant 0 : index
    %271 = vector.load %arg2[%270, %c0_86, %c0_87] : memref<8x8x384xf32, #tpu.memory_space<vmem>>, vector<1x8x384xf32>
    %272 = vector.shape_cast %271 : vector<1x8x384xf32> to vector<8x384xf32>
    %c0_88 = arith.constant 0 : index
    %c0_89 = arith.constant 0 : index
    %273 = vector.load %arg3[%c0_88, %c0_89] : memref<128x384xf32, #tpu.memory_space<vmem>>, vector<128x384xf32>
    %cst_90 = arith.constant dense<0.000000e+00> : vector<8x384xf32>
    %274 = tpu.matmul %265, %273, %cst_90 {dimension_numbers = #tpu.dot_dimension_numbers<[1], [0], [0], [1], [0, 0, 1, 1], [], []>} : vector<8x128xf32>, vector<128x384xf32>, vector<8x384xf32> -> vector<8x384xf32>
    %c0_91 = arith.constant 0 : index
    %c0_92 = arith.constant 0 : index
    %275 = vector.load %arg4[%c0_91, %c0_92] : memref<1x384xf32, #tpu.memory_space<vmem>>, vector<1x384xf32>
    %276 = vector.broadcast %275 : vector<1x384xf32> to vector<8x384xf32>
    %277 = arith.addf %274, %276 : vector<8x384xf32>
    %278 = vector.extract_strided_slice %272 {offsets = [0, 0], sizes = [8, 128], strides = [1, 1]} : vector<8x384xf32> to vector<8x128xf32>
    %279 = vector.extract_strided_slice %277 {offsets = [0, 0], sizes = [8, 128], strides = [1, 1]} : vector<8x384xf32> to vector<8x128xf32>
    %280 = arith.addf %278, %279 : vector<8x128xf32>
    %281 = arith.negf %280 : vector<8x128xf32>
    %282 = math.exp %281 : vector<8x128xf32>
    %cst_93 = arith.constant 1.000000e+00 : f32
    %283 = vector.broadcast %cst_93 : f32 to vector<8x128xf32>
    %284 = arith.addf %283, %282 : vector<8x128xf32>
    %285 = arith.divf %283, %284 : vector<8x128xf32>
    %286 = vector.extract_strided_slice %272 {offsets = [0, 128], sizes = [8, 128], strides = [1, 1]} : vector<8x384xf32> to vector<8x128xf32>
    %287 = vector.extract_strided_slice %277 {offsets = [0, 128], sizes = [8, 128], strides = [1, 1]} : vector<8x384xf32> to vector<8x128xf32>
    %288 = arith.addf %286, %287 : vector<8x128xf32>
    %289 = arith.negf %288 : vector<8x128xf32>
    %290 = math.exp %289 : vector<8x128xf32>
    %cst_94 = arith.constant 1.000000e+00 : f32
    %291 = vector.broadcast %cst_94 : f32 to vector<8x128xf32>
    %292 = arith.addf %291, %290 : vector<8x128xf32>
    %293 = arith.divf %291, %292 : vector<8x128xf32>
    %294 = vector.extract_strided_slice %272 {offsets = [0, 256], sizes = [8, 128], strides = [1, 1]} : vector<8x384xf32> to vector<8x128xf32>
    %295 = vector.extract_strided_slice %277 {offsets = [0, 256], sizes = [8, 128], strides = [1, 1]} : vector<8x384xf32> to vector<8x128xf32>
    %296 = arith.mulf %285, %295 : vector<8x128xf32>
    %297 = arith.addf %294, %296 : vector<8x128xf32>
    %298 = math.tanh %297 : vector<8x128xf32>
    %cst_95 = arith.constant 1.000000e+00 : f32
    %299 = vector.broadcast %cst_95 : f32 to vector<8x128xf32>
    %300 = arith.subf %299, %293 : vector<8x128xf32>
    %301 = arith.mulf %300, %298 : vector<8x128xf32>
    %302 = arith.mulf %293, %265 : vector<8x128xf32>
    %303 = arith.addf %301, %302 : vector<8x128xf32>
    %304 = arith.index_cast %c7_i32 : i32 to index
    %c0_96 = arith.constant 0 : index
    %c0_97 = arith.constant 0 : index
    %305 = vector.load %arg6[%304, %c0_96, %c0_97] : memref<8x8x128xf32, #tpu.memory_space<vmem>>, vector<1x8x128xf32>
    %306 = vector.shape_cast %305 : vector<1x8x128xf32> to vector<8x128xf32>
    %307 = vector.shape_cast %303 : vector<8x128xf32> to vector<1x8x128xf32>
    tpu.vector_store %arg6[%304, %c0_96, %c0_97], %307 {strides = array<i32>} : memref<8x8x128xf32, #tpu.memory_space<vmem>>, vector<1x8x128xf32>,
    %c8_i32 = arith.constant 8 : i32
    %c0_98 = arith.constant 0 : index
    %c0_99 = arith.constant 0 : index
    %308 = vector.load %arg8[%c0_98, %c0_99] : memref<8x128xf32, #tpu.memory_space<vmem>>, vector<8x128xf32>
    tpu.vector_store %arg8[%c0_98, %c0_99], %303 {strides = array<i32>} : memref<8x128xf32, #tpu.memory_space<vmem>>, vector<8x128xf32>,
    %c0_i32_100 = arith.constant 0 : i32
    %309 = arith.cmpi eq, %arg1, %c0_i32_100 : i32
    %310 = arith.extui %309 : i1 to i32
    %c0_i32_101 = arith.constant 0 : i32
    %311 = arith.cmpi ne, %310, %c0_i32_101 : i32
    scf.if %311 {
      %c0_102 = arith.constant 0 : index
      %c0_103 = arith.constant 0 : index
      %312 = vector.load %arg7[%c0_102, %c0_103] : memref<8x128xf32, #tpu.memory_space<vmem>>, vector<8x128xf32>
      tpu.vector_store %arg7[%c0_102, %c0_103], %303 {strides = array<i32>} : memref<8x128xf32, #tpu.memory_space<vmem>>, vector<8x128xf32>,
    } else {
    }
    return
  }
  func.func @transform_0(%arg0: i32, %arg1: i32) -> (i32, i32, i32) {
    %c0_i32 = arith.constant 0 : i32
    %c0_i32_0 = arith.constant 0 : i32
    return %arg1, %arg0, %c0_i32 : i32, i32, i32
  }
  func.func @transform_1(%arg0: i32, %arg1: i32) -> (i32, i32) {
    %c0_i32 = arith.constant 0 : i32
    %c0_i32_0 = arith.constant 0 : i32
    %c0_i32_1 = arith.constant 0 : i32
    return %c0_i32, %c0_i32_0 : i32, i32
  }
  func.func @transform_2(%arg0: i32, %arg1: i32) -> (i32, i32) {
    %c0_i32 = arith.constant 0 : i32
    %c0_i32_0 = arith.constant 0 : i32
    %c0_i32_1 = arith.constant 0 : i32
    return %c0_i32, %c0_i32_0 : i32, i32
  }
  func.func @transform_3(%arg0: i32, %arg1: i32) -> (i32, i32) {
    %c0_i32 = arith.constant 0 : i32
    %c0_i32_0 = arith.constant 0 : i32
    return %arg0, %c0_i32 : i32, i32
  }
  func.func @transform_4(%arg0: i32, %arg1: i32) -> (i32, i32, i32) {
    %c0_i32 = arith.constant 0 : i32
    %c0_i32_0 = arith.constant 0 : i32
    return %arg1, %arg0, %c0_i32 : i32, i32, i32
  }
  func.func @transform_5(%arg0: i32, %arg1: i32) -> (i32, i32) {
    %c0_i32 = arith.constant 0 : i32
    %c0_i32_0 = arith.constant 0 : i32
    return %arg0, %c0_i32 : i32, i32
  }
}

module attributes {stable_mosaic.version = 11 : i64} {
  func.func @_linear_kernel(%arg0: i32, %arg1: i32, %arg2: memref<8x128xf32, #tpu.memory_space<vmem>>, %arg3: memref<128x128xf32, #tpu.memory_space<vmem>>, %arg4: memref<1x128xf32, #tpu.memory_space<vmem>>, %arg5: memref<8x128xf32, #tpu.memory_space<vmem>>) attributes {dimension_semantics = [#tpu.dimension_semantics<parallel>, #tpu.dimension_semantics<parallel>], iteration_bounds = array<i64: 1, 1>, scalar_prefetch = 0 : i64, scratch_operands = 0 : i64, tpu.core_type = #tpu.core_type<tc>, window_params = [{transform_indices = @transform_0, window_bounds = array<i64: 8, 128>}, {transform_indices = @transform_1, window_bounds = array<i64: 128, 128>}, {transform_indices = @transform_2, window_bounds = array<i64: 1, 128>}, {transform_indices = @transform_3, window_bounds = array<i64: 8, 128>}]} {
    %c0 = arith.constant 0 : index
    %c0_0 = arith.constant 0 : index
    %0 = vector.load %arg2[%c0, %c0_0] : memref<8x128xf32, #tpu.memory_space<vmem>>, vector<8x128xf32>
    %c0_1 = arith.constant 0 : index
    %c0_2 = arith.constant 0 : index
    %1 = vector.load %arg3[%c0_1, %c0_2] : memref<128x128xf32, #tpu.memory_space<vmem>>, vector<128x128xf32>
    %cst = arith.constant dense<0.000000e+00> : vector<8x128xf32>
    %2 = tpu.matmul %0, %1, %cst {dimension_numbers = #tpu.dot_dimension_numbers<[1], [0], [0], [1], [0, 0, 1, 1], [], []>} : vector<8x128xf32>, vector<128x128xf32>, vector<8x128xf32> -> vector<8x128xf32>
    %c0_3 = arith.constant 0 : index
    %c0_4 = arith.constant 0 : index
    %3 = vector.load %arg4[%c0_3, %c0_4] : memref<1x128xf32, #tpu.memory_space<vmem>>, vector<1x128xf32>
    %4 = vector.broadcast %3 : vector<1x128xf32> to vector<8x128xf32>
    %5 = arith.addf %2, %4 : vector<8x128xf32>
    %c0_5 = arith.constant 0 : index
    %c0_6 = arith.constant 0 : index
    %6 = vector.load %arg5[%c0_5, %c0_6] : memref<8x128xf32, #tpu.memory_space<vmem>>, vector<8x128xf32>
    tpu.vector_store %arg5[%c0_5, %c0_6], %5 {strides = array<i32>} : memref<8x128xf32, #tpu.memory_space<vmem>>, vector<8x128xf32>,
    return
  }
  func.func @transform_0(%arg0: i32, %arg1: i32) -> (i32, i32) {
    %c0_i32 = arith.constant 0 : i32
    %c0_i32_0 = arith.constant 0 : i32
    return %arg1, %c0_i32 : i32, i32
  }
  func.func @transform_1(%arg0: i32, %arg1: i32) -> (i32, i32) {
    %c0_i32 = arith.constant 0 : i32
    %c0_i32_0 = arith.constant 0 : i32
    return %c0_i32, %arg0 : i32, i32
  }
  func.func @transform_2(%arg0: i32, %arg1: i32) -> (i32, i32) {
    %c0_i32 = arith.constant 0 : i32
    %c0_i32_0 = arith.constant 0 : i32
    return %c0_i32, %arg0 : i32, i32
  }
  func.func @transform_3(%arg0: i32, %arg1: i32) -> (i32, i32) {
    %c0_i32 = arith.constant 0 : i32
    return %arg1, %arg0 : i32, i32
  }
}

</mosaic_0001>

<llo_original>
// kernel: model_forward.7
$region0: #{model_forward.7}
  #allocation0 [shape = 'u32[]', space=smem, size = 0x4, offset = 0x4, fixed_abs, tag = 'smem constant byte address 0x4 - core index']
  #allocation1 [shape = 'u32[144,128]{1,0:T(1,128)}', space=vmem, size = 0x12000, scoped, tag = 'internal scratch']
  %s0 = inlined_call_operand.vmem [shape: f32[64,128], index: 0, kind: input, shape index: {}]
  %s1 = inlined_call_operand.vmem [shape: f32[128,384], index: 1, kind: input, shape index: {}]
  %s2 = inlined_call_operand.vmem [shape: f32[1,384], index: 2, kind: input, shape index: {}]
  %s3 = inlined_call_operand.vmem [shape: f32[64,384], index: 3, kind: output, shape index: {}]
  %s4 = sld [smem:[#allocation0]]
  $region22: #{model_forward.7} parent=0
    _
  %s6 = ssub.s32 1, %s4
  %s7 = scalar_select 0, %s6, %s4
  // Predicated region
  $region2: #{model_forward.7} parent=0 // pred_check
    _
  $region3: #{model_forward.7} parent=0 // pred_check_branch
    %9 = sbr.rel (0) target = $region5
  $region4: #{model_forward.7} parent=0 // pred_region
    _
  $region5: #{model_forward.7} parent=0 // pred_fallthru
    _
  // Predicated region
  $region6: #{model_forward.7} parent=0 // pred_check
    _
  $region7: #{model_forward.7} parent=0 // pred_check_branch
    %11 = sbr.rel (0) target = $region9
  $region8: #{model_forward.7} parent=0 // pred_region
    _
  $region9: #{model_forward.7} parent=0 // pred_fallthru
    _
  // Predicated region
  $region10: #{model_forward.7} parent=0 // pred_check
    _
  $region11: #{model_forward.7} parent=0 // pred_check_branch
    %13 = sbr.rel (0) target = $region13
  $region12: #{model_forward.7} parent=0 // pred_region
    _
  $region13: #{model_forward.7} parent=0 // pred_fallthru
    _
  %v14 = vld [vmem:[%s0] sm:$0xff]
  %v15 = vld [vmem:[%s0 + $0x8] sm:$0xff]
  %v16 = vld [vmem:[%s0 + $0x10] sm:$0xff]
  %v17 = vld [vmem:[%s0 + $0x18] sm:$0xff]
  %v18 = vld [vmem:[%s0 + $0x20] sm:$0xff]
  %v19 = vld [vmem:[%s0 + $0x28] sm:$0xff]
  %v20 = vld [vmem:[%s0 + $0x30] sm:$0xff]
  %v21 = vld [vmem:[%s0 + $0x38] sm:$0xff]
  %v22 = vld [vmem:[%s1] sm:$0xff]
  %v23 = vld [vmem:[%s1 + $0x8] sm:$0xff]
  %v24 = vld [vmem:[%s1 + $0x10] sm:$0xff]
  %v25 = vld [vmem:[%s1 + $0x18] sm:$0xff]
  %v26 = vld [vmem:[%s1 + $0x20] sm:$0xff]
  %v27 = vld [vmem:[%s1 + $0x28] sm:$0xff]
  %v28 = vld [vmem:[%s1 + $0x30] sm:$0xff]
  %v29 = vld [vmem:[%s1 + $0x38] sm:$0xff]
  %v30 = vld [vmem:[%s1 + $0x40] sm:$0xff]
  %v31 = vld [vmem:[%s1 + $0x48] sm:$0xff]
  %v32 = vld [vmem:[%s1 + $0x50] sm:$0xff]
  %v33 = vld [vmem:[%s1 + $0x58] sm:$0xff]
  %v34 = vld [vmem:[%s1 + $0x60] sm:$0xff]
  %v35 = vld [vmem:[%s1 + $0x68] sm:$0xff]
  %v36 = vld [vmem:[%s1 + $0x70] sm:$0xff]
  %v37 = vld [vmem:[%s1 + $0x78] sm:$0xff]
  %v38 = vld [vmem:[%s1 + $0x80] sm:$0xff]
  %v39 = vld [vmem:[%s1 + $0x88] sm:$0xff]
  %v40 = vld [vmem:[%s1 + $0x90] sm:$0xff]
  %v41 = vld [vmem:[%s1 + $0x98] sm:$0xff]
  %v42 = vld [vmem:[%s1 + $0xa0] sm:$0xff]
  %v43 = vld [vmem:[%s1 + $0xa8] sm:$0xff]
  %v44 = vld [vmem:[%s1 + $0xb0] sm:$0xff]
  %v45 = vld [vmem:[%s1 + $0xb8] sm:$0xff]
  %v46 = vld [vmem:[%s1 + $0xc0] sm:$0xff]
  %v47 = vld [vmem:[%s1 + $0xc8] sm:$0xff]
  %v48 = vld [vmem:[%s1 + $0xd0] sm:$0xff]
  %v49 = vld [vmem:[%s1 + $0xd8] sm:$0xff]
  %v50 = vld [vmem:[%s1 + $0xe0] sm:$0xff]
  %v51 = vld [vmem:[%s1 + $0xe8] sm:$0xff]
  %v52 = vld [vmem:[%s1 + $0xf0] sm:$0xff]
  %v53 = vld [vmem:[%s1 + $0xf8] sm:$0xff]
  %v54 = vld [vmem:[%s1 + $0x100] sm:$0xff]
  %v55 = vld [vmem:[%s1 + $0x108] sm:$0xff]
  %v56 = vld [vmem:[%s1 + $0x110] sm:$0xff]
  %v57 = vld [vmem:[%s1 + $0x118] sm:$0xff]
  %v58 = vld [vmem:[%s1 + $0x120] sm:$0xff]
  %v59 = vld [vmem:[%s1 + $0x128] sm:$0xff]
  %v60 = vld [vmem:[%s1 + $0x130] sm:$0xff]
  %v61 = vld [vmem:[%s1 + $0x138] sm:$0xff]
  %v62 = vld [vmem:[%s1 + $0x140] sm:$0xff]
  %v63 = vld [vmem:[%s1 + $0x148] sm:$0xff]
  %v64 = vld [vmem:[%s1 + $0x150] sm:$0xff]
  %v65 = vld [vmem:[%s1 + $0x158] sm:$0xff]
  %v66 = vld [vmem:[%s1 + $0x160] sm:$0xff]
  %v67 = vld [vmem:[%s1 + $0x168] sm:$0xff]
  %v68 = vld [vmem:[%s1 + $0x170] sm:$0xff]
  %v69 = vld [vmem:[%s1 + $0x178] sm:$0xff]
  %v70 = vld [vmem:[%s2] sm:$0x7]
  %v72 = vlaneseq
  %v73 = vshrl.u32 %v72, 7
  %v74 = vsub.s32 0, %v73
  %v75 = vrot.slane %v70, %v74
  %v76 = vlaneseq
  %v77 = vshrl.u32 %v76, 7
  %v78 = vsub.s32 1, %v77
  %v79 = vrot.slane %v70, %v78
  %v80 = vlaneseq
  %v81 = vshrl.u32 %v80, 7
  %v82 = vsub.s32 2, %v81
  %v83 = vrot.slane %v70, %v82
  %87 = vmatprep.subr.mxu0 %v23
  %88 = vmatpush1.msra.mxu0 %v22
  %89 = vmatprep.subr.mxu0 %v26
  %90 = vmatpush1.msra.mxu0 %v25
  %91 = vmatprep.subr.mxu0 %v29
  %92 = vmatpush1.msra.mxu0 %v28
  %93 = vmatprep.subr.mxu0 %v32
  %94 = vmatpush1.msra.mxu0 %v31
  %95 = vmatprep.subr.mxu0 %v35
  %96 = vmatpush1.msra.mxu0 %v34
  %97 = vmatprep.subr.mxu0 %v38
  %98 = vmatpush1.msra.mxu0 %v37
  %99 = vmatprep.subr.mxu0 %v41
  %100 = vmatpush1.msra.mxu0 %v40
  %101 = vmatprep.subr.mxu0 %v44
  %102 = vmatpush1.msra.mxu0 %v43
  %103 = vmatprep.subr.mxu0 %v47
  %104 = vmatpush1.msra.mxu0 %v46
  %105 = vmatprep.subr.mxu0 %v50
  %106 = vmatpush1.msra.mxu0 %v49
  %107 = vmatprep.subr.mxu0 %v53
  %108 = vmatpush1.msra.mxu0 %v52
  %109 = vmatprep.subr.mxu0 %v56
  %110 = vmatpush1.msra.mxu0 %v55
  %111 = vmatprep.subr.mxu0 %v59
  %112 = vmatpush1.msra.mxu0 %v58
  %113 = vmatprep.subr.mxu0 %v62
  %114 = vmatpush1.msra.mxu0 %v61
  %115 = vmatprep.subr.mxu0 %v65
  %116 = vmatpush1.msra.mxu0 %v64
  %117 = vmatprep.subr.mxu0 %v68
  %118 = vmatpush1.msra.mxu0 %v67
  %119 = vmatprep.subr.mxu0 0.0
  %120 = vmatpush1.msra.mxu0 0.0
  %121 = vmatprep.subr.mxu0 0.0
  %122 = vmatpush1.msra.mxu0 0.0
  %123 = vmatprep.subr.mxu0 0.0
  %124 = vmatpush1.msra.mxu0 0.0
  %125 = vmatprep.subr.mxu0 0.0
  %126 = vmatpush1.msra.mxu0 0.0
  %127 = vmatprep.subr.mxu0 0.0
  %128 = vmatpush1.msra.mxu0 0.0
  %129 = vmatprep.subr.mxu0 0.0
  %130 = vmatpush1.msra.mxu0 0.0
  %131 = vmatprep.subr.mxu0 0.0
  %132 = vmatpush1.msra.mxu0 0.0
  %133 = vmatprep.subr.mxu0 0.0
  %134 = vmatpush1.msra.mxu0 0.0
  %135 = vmatprep.subr.mxu0 0.0
  %136 = vmatpush1.msra.mxu0 0.0
  %137 = vmatprep.subr.mxu0 0.0
  %138 = vmatpush1.msra.mxu0 0.0
  %139 = vmatprep.subr.mxu0 0.0
  %140 = vmatpush1.msra.mxu0 0.0
  %141 = vmatprep.subr.mxu0 0.0
  %142 = vmatpush1.msra.mxu0 0.0
  %143 = vmatprep.subr.mxu0 0.0
  %144 = vmatpush1.msra.mxu0 0.0
  %145 = vmatprep.subr.mxu0 0.0
  %146 = vmatpush1.msra.mxu0 0.0
  %147 = vmatprep.subr.mxu0 0.0
  %148 = vmatpush1.msra.mxu0 0.0
  %149 = vmatprep.subr.mxu0 0.0
  %150 = vmatpush1.msra.mxu0 0.0
  %151 = vmatprep.mubr.f32.mxu0 0.0
  %152 = vmatmul.mubr.f32.gmra.mrb[0].mxu0 %v14
  %v153 = vpop.f32.mrb[0].mxu0
  %v154 = vadd.f32 %v75, %v153
  %v155 = vpop.f32.mrb[0].mxu0
  %v156 = vadd.f32 %v79, %v155
  %157 = vmatprep.mubr.f32.mxu0 0.0
  %158 = vmatmul.mubr.f32.gmra.mrb[0].mxu0 %v15
  %v159 = vpop.f32.mrb[0].mxu0
  %v160 = vadd.f32 %v75, %v159
  %v161 = vpop.f32.mrb[0].mxu0
  %v162 = vadd.f32 %v79, %v161
  %163 = vmatprep.mubr.f32.mxu0 0.0
  %164 = vmatmul.mubr.f32.gmra.mrb[0].mxu0 %v16
  %v165 = vpop.f32.mrb[0].mxu0
  %v166 = vadd.f32 %v75, %v165
  %v167 = vpop.f32.mrb[0].mxu0
  %v168 = vadd.f32 %v79, %v167
  %169 = vmatprep.mubr.f32.mxu0 0.0
  %170 = vmatmul.mubr.f32.gmra.mrb[0].mxu0 %v17
  %v171 = vpop.f32.mrb[0].mxu0
  %v172 = vadd.f32 %v75, %v171
  %v173 = vpop.f32.mrb[0].mxu0
  %v174 = vadd.f32 %v79, %v173
  %175 = vmatprep.mubr.f32.mxu0 0.0
  %176 = vmatmul.mubr.f32.gmra.mrb[0].mxu0 %v18
  %v177 = vpop.f32.mrb[0].mxu0
  %v178 = vadd.f32 %v75, %v177
  %v179 = vpop.f32.mrb[0].mxu0
  %v180 = vadd.f32 %v79, %v179
  %181 = vmatprep.mubr.f32.mxu0 0.0
  %182 = vmatmul.mubr.f32.gmra.mrb[0].mxu0 %v19
  %v183 = vpop.f32.mrb[0].mxu0
  %v184 = vadd.f32 %v75, %v183
  %v185 = vpop.f32.mrb[0].mxu0
  %v186 = vadd.f32 %v79, %v185
  %187 = vmatprep.mubr.f32.mxu0 0.0
  %188 = vmatmul.mubr.f32.gmra.mrb[0].mxu0 %v20
  %v189 = vpop.f32.mrb[0].mxu0
  %v190 = vadd.f32 %v75, %v189
  %v191 = vpop.f32.mrb[0].mxu0
  %v192 = vadd.f32 %v79, %v191
  %193 = vmatprep.mubr.f32.mxu0 0.0
  %194 = vmatmul.mubr.f32.gmra.mrb[0].mxu0 %v21
  %v195 = vpop.f32.mrb[0].mxu0
  %v196 = vadd.f32 %v75, %v195
  %v197 = vpop.f32.mrb[0].mxu0
  %v198 = vadd.f32 %v79, %v197
  %199 = vdwg.mxu0
  %200 = vmatprep.subr.mxu0 0.0
  %201 = vmatpush1.msra.mxu0 %v24
  %202 = vmatprep.subr.mxu0 0.0
  %203 = vmatpush1.msra.mxu0 %v27
  %204 = vmatprep.subr.mxu0 0.0
  %205 = vmatpush1.msra.mxu0 %v30
  %206 = vmatprep.subr.mxu0 0.0
  %207 = vmatpush1.msra.mxu0 %v33
  %208 = vmatprep.subr.mxu0 0.0
  %209 = vmatpush1.msra.mxu0 %v36
  %210 = vmatprep.subr.mxu0 0.0
  %211 = vmatpush1.msra.mxu0 %v39
  %212 = vmatprep.subr.mxu0 0.0
  %213 = vmatpush1.msra.mxu0 %v42
  %214 = vmatprep.subr.mxu0 0.0
  %215 = vmatpush1.msra.mxu0 %v45
  %216 = vmatprep.subr.mxu0 0.0
  %217 = vmatpush1.msra.mxu0 %v48
  %218 = vmatprep.subr.mxu0 0.0
  %219 = vmatpush1.msra.mxu0 %v51
  %220 = vmatprep.subr.mxu0 0.0
  %221 = vmatpush1.msra.mxu0 %v54
  %222 = vmatprep.subr.mxu0 0.0
  %223 = vmatpush1.msra.mxu0 %v57
  %224 = vmatprep.subr.mxu0 0.0
  %225 = vmatpush1.msra.mxu0 %v60
  %226 = vmatprep.subr.mxu0 0.0
  %227 = vmatpush1.msra.mxu0 %v63
  %228 = vmatprep.subr.mxu0 0.0
  %229 = vmatpush1.msra.mxu0 %v66
  %230 = vmatprep.subr.mxu0 0.0
  %231 = vmatpush1.msra.mxu0 %v69
  %232 = vmatprep.subr.mxu0 0.0
  %233 = vmatpush1.msra.mxu0 0.0
  %234 = vmatprep.subr.mxu0 0.0
  %235 = vmatpush1.msra.mxu0 0.0
  %236 = vmatprep.subr.mxu0 0.0
  %237 = vmatpush1.msra.mxu0 0.0
  %238 = vmatprep.subr.mxu0 0.0
  %239 = vmatpush1.msra.mxu0 0.0
  %240 = vmatprep.subr.mxu0 0.0
  %241 = vmatpush1.msra.mxu0 0.0
  %242 = vmatprep.subr.mxu0 0.0
  %243 = vmatpush1.msra.mxu0 0.0
  %244 = vmatprep.subr.mxu0 0.0
  %245 = vmatpush1.msra.mxu0 0.0
  %246 = vmatprep.subr.mxu0 0.0
  %247 = vmatpush1.msra.mxu0 0.0
  %248 = vmatprep.subr.mxu0 0.0
  %249 = vmatpush1.msra.mxu0 0.0
  %250 = vmatprep.subr.mxu0 0.0
  %251 = vmatpush1.msra.mxu0 0.0
  %252 = vmatprep.subr.mxu0 0.0
  %253 = vmatpush1.msra.mxu0 0.0
  %254 = vmatprep.subr.mxu0 0.0
  %255 = vmatpush1.msra.mxu0 0.0
  %256 = vmatprep.subr.mxu0 0.0
  %257 = vmatpush1.msra.mxu0 0.0
  %258 = vmatprep.subr.mxu0 0.0
  %259 = vmatpush1.msra.mxu0 0.0
  %260 = vmatprep.subr.mxu0 0.0
  %261 = vmatpush1.msra.mxu0 0.0
  %262 = vmatprep.subr.mxu0 0.0
  %263 = vmatpush1.msra.mxu0 0.0
  %264 = vmatprep.mubr.f32.mxu0 0.0
  %265 = vmatmul.mubr.f32.gmra.mrb[0].mxu0 %v14
  %v266 = vpop.f32.mrb[0].mxu0
  %v267 = vadd.f32 %v83, %v266
  %v268 = vpop.f32.mrb[0].mxu0
  %269 = vmatprep.mubr.f32.mxu0 0.0
  %270 = vmatmul.mubr.f32.gmra.mrb[0].mxu0 %v15
  %v271 = vpop.f32.mrb[0].mxu0
  %v272 = vadd.f32 %v83, %v271
  %v273 = vpop.f32.mrb[0].mxu0
  %274 = vmatprep.mubr.f32.mxu0 0.0
  %275 = vmatmul.mubr.f32.gmra.mrb[0].mxu0 %v16
  %v276 = vpop.f32.mrb[0].mxu0
  %v277 = vadd.f32 %v83, %v276
  %v278 = vpop.f32.mrb[0].mxu0
  %279 = vmatprep.mubr.f32.mxu0 0.0
  %280 = vmatmul.mubr.f32.gmra.mrb[0].mxu0 %v17
  %v281 = vpop.f32.mrb[0].mxu0
  %v282 = vadd.f32 %v83, %v281
  %v283 = vpop.f32.mrb[0].mxu0
  %284 = vmatprep.mubr.f32.mxu0 0.0
  %285 = vmatmul.mubr.f32.gmra.mrb[0].mxu0 %v18
  %v286 = vpop.f32.mrb[0].mxu0
  %v287 = vadd.f32 %v83, %v286
  %v288 = vpop.f32.mrb[0].mxu0
  %289 = vmatprep.mubr.f32.mxu0 0.0
  %290 = vmatmul.mubr.f32.gmra.mrb[0].mxu0 %v19
  %v291 = vpop.f32.mrb[0].mxu0
  %v292 = vadd.f32 %v83, %v291
  %v293 = vpop.f32.mrb[0].mxu0
  %294 = vmatprep.mubr.f32.mxu0 0.0
  %295 = vmatmul.mubr.f32.gmra.mrb[0].mxu0 %v20
  %v296 = vpop.f32.mrb[0].mxu0
  %v297 = vadd.f32 %v83, %v296
  %v298 = vpop.f32.mrb[0].mxu0
  %299 = vmatprep.mubr.f32.mxu0 0.0
  %300 = vmatmul.mubr.f32.gmra.mrb[0].mxu0 %v21
  %v301 = vpop.f32.mrb[0].mxu0
  %v302 = vadd.f32 %v83, %v301
  %v303 = vpop.f32.mrb[0].mxu0
  %304 = vdwg.mxu0
  %305 = vst [vmem:[%s3] sm:$0xff] %v154
  %306 = vst [vmem:[%s3 + $0x8] sm:$0xff] %v156
  %307 = vst [vmem:[%s3 + $0x10] sm:$0xff] %v267
  %308 = vst [vmem:[%s3 + $0x18] sm:$0xff] %v160
  %309 = vst [vmem:[%s3 + $0x20] sm:$0xff] %v162
  %310 = vst [vmem:[%s3 + $0x28] sm:$0xff] %v272
  %311 = vst [vmem:[%s3 + $0x30] sm:$0xff] %v166
  %312 = vst [vmem:[%s3 + $0x38] sm:$0xff] %v168
  %313 = vst [vmem:[%s3 + $0x40] sm:$0xff] %v277
  %314 = vst [vmem:[%s3 + $0x48] sm:$0xff] %v172
  %315 = vst [vmem:[%s3 + $0x50] sm:$0xff] %v174
  %316 = vst [vmem:[%s3 + $0x58] sm:$0xff] %v282
  %317 = vst [vmem:[%s3 + $0x60] sm:$0xff] %v178
  %318 = vst [vmem:[%s3 + $0x68] sm:$0xff] %v180
  %319 = vst [vmem:[%s3 + $0x70] sm:$0xff] %v287
  %320 = vst [vmem:[%s3 + $0x78] sm:$0xff] %v184
  %321 = vst [vmem:[%s3 + $0x80] sm:$0xff] %v186
  %322 = vst [vmem:[%s3 + $0x88] sm:$0xff] %v292
  %323 = vst [vmem:[%s3 + $0x90] sm:$0xff] %v190
  %324 = vst [vmem:[%s3 + $0x98] sm:$0xff] %v192
  %325 = vst [vmem:[%s3 + $0xa0] sm:$0xff] %v297
  %326 = vst [vmem:[%s3 + $0xa8] sm:$0xff] %v196
  %327 = vst [vmem:[%s3 + $0xb0] sm:$0xff] %v198
  %328 = vst [vmem:[%s3 + $0xb8] sm:$0xff] %v302
  // Predicated region
  $region14: #{model_forward.7} parent=0 // pred_check
    _
  $region15: #{model_forward.7} parent=0 // pred_check_branch
    %330 = sbr.rel (0) target = $region17
  $region16: #{model_forward.7} parent=0 // pred_region
    _
  $region17: #{model_forward.7} parent=0 // pred_fallthru
    _
  // Predicated region
  $region18: #{model_forward.7} parent=0 // pred_check
    _
  $region19: #{model_forward.7} parent=0 // pred_check_branch
    %332 = sbr.rel (0) target = $region21
  $region20: #{model_forward.7} parent=0 // pred_region
    _
  $region21: #{model_forward.7} parent=0 // pred_fallthru
    _

// kernel: model_forward.5
$region0: #{model_forward.5}
  #allocation0 [shape = 'u32[]', space=smem, size = 0x4, offset = 0x4, fixed_abs, tag = 'smem constant byte address 0x4 - core index']
  #allocation1 [shape = 'u32[144,128]{1,0:T(1,128)}', space=vmem, size = 0x12000, scoped, tag = 'internal scratch']
  %s0 = inlined_call_operand.vmem [shape: f32[64,128], index: 0, kind: input, shape index: {}]
  %s1 = inlined_call_operand.hbm [shape: f32[128,384], index: 1, kind: input, shape index: {}]
  %s2 = inlined_call_operand.vmem [shape: f32[1,384], index: 2, kind: input, shape index: {}]
  %s3 = inlined_call_operand.vmem [shape: f32[64,384], index: 3, kind: output, shape index: {}]
  %s4 = sld [smem:[#allocation0]]
  $region26: #{model_forward.5} parent=0
    _
  %s6 = ssub.s32 1, %s4
  %s7 = scalar_select 0, %s6, %s4
  $region1: #{model_forward.5} parent=0
    #allocation2 [shape = 'u8[196608]{0}', space=vmem, size = 0x30000, scoped, tag = 'input window, operand 1, single buffered']
    #allocation3 [shape = 's32[1]{0}', space=sflag, size = 0x4, scoped, tag = 'scoped memory for model_forward.5']
    %8 = vsyncpa [#allocation3], 0
    // Predicated region
    $region2: #{model_forward.5} parent=1 // pred_check
      _
    $region3: #{model_forward.5} parent=1 // pred_check_branch
      %10 = sbr.rel (0) target = $region5
    $region4: #{model_forward.5} parent=1 // pred_region
      _
    $region5: #{model_forward.5} parent=1 // pred_fallthru
      _
    // Predicated region
    $region6: #{model_forward.5} parent=1 // pred_check
      _
    $region7: #{model_forward.5} parent=1 // pred_check_branch
      %12 = sbr.rel (0) target = $region9
    $region8: #{model_forward.5} parent=1 // pred_region
      %s14 = ssub.s32 6144, 6144
      %15 = vsyncadd [#allocation3], %s14
      %s16 = sshll.u32 [#allocation2], 4
      %s17 = int_to_ptr.vmem [resolvable:$true] %s16
      %22 = dma.hbm_to_vmem [thread:$0]  %s1, 6144, %s17, [#allocation3], 384, 384, 24
    $region9: #{model_forward.5} parent=1 // pred_fallthru
      _
    // Predicated region
    $region10: #{model_forward.5} parent=1 // pred_check
      _
    $region11: #{model_forward.5} parent=1 // pred_check_branch
      %24 = sbr.rel (0) target = $region13
    $region12: #{model_forward.5} parent=1 // pred_region
      _
    $region13: #{model_forward.5} parent=1 // pred_fallthru
      _
    // Predicated region
    $region14: #{model_forward.5} parent=1 // pred_check
      _
    $region15: #{model_forward.5} parent=1 // pred_check_branch
      %26 = sbr.rel (0) target = $region17
    $region16: #{model_forward.5} parent=1 // pred_region
      %27 = dma.done [#allocation3], 6144
    $region17: #{model_forward.5} parent=1 // pred_fallthru
      _
    %v28 = vld [vmem:[%s0] sm:$0xff]
    %v29 = vld [vmem:[%s0 + $0x8] sm:$0xff]
    %v30 = vld [vmem:[%s0 + $0x10] sm:$0xff]
    %v31 = vld [vmem:[%s0 + $0x18] sm:$0xff]
    %v32 = vld [vmem:[%s0 + $0x20] sm:$0xff]
    %v33 = vld [vmem:[%s0 + $0x28] sm:$0xff]
    %v34 = vld [vmem:[%s0 + $0x30] sm:$0xff]
    %v35 = vld [vmem:[%s0 + $0x38] sm:$0xff]
    %v36 = vld [vmem:[#allocation2] sm:$0xff]
    %v37 = vld [vmem:[#allocation2 + $0x8] sm:$0xff]
    %v38 = vld [vmem:[#allocation2 + $0x10] sm:$0xff]
    %v39 = vld [vmem:[#allocation2 + $0x18] sm:$0xff]
    %v40 = vld [vmem:[#allocation2 + $0x20] sm:$0xff]
    %v41 = vld [vmem:[#allocation2 + $0x28] sm:$0xff]
    %v42 = vld [vmem:[#allocation2 + $0x30] sm:$0xff]
    %v43 = vld [vmem:[#allocation2 + $0x38] sm:$0xff]
    %v44 = vld [vmem:[#allocation2 + $0x40] sm:$0xff]
    %v45 = vld [vmem:[#allocation2 + $0x48] sm:$0xff]
    %v46 = vld [vmem:[#allocation2 + $0x50] sm:$0xff]
    %v47 = vld [vmem:[#allocation2 + $0x58] sm:$0xff]
    %v48 = vld [vmem:[#allocation2 + $0x60] sm:$0xff]
    %v49 = vld [vmem:[#allocation2 + $0x68] sm:$0xff]
    %v50 = vld [vmem:[#allocation2 + $0x70] sm:$0xff]
    %v51 = vld [vmem:[#allocation2 + $0x78] sm:$0xff]
    %v52 = vld [vmem:[#allocation2 + $0x80] sm:$0xff]
    %v53 = vld [vmem:[#allocation2 + $0x88] sm:$0xff]
    %v54 = vld [vmem:[#allocation2 + $0x90] sm:$0xff]
    %v55 = vld [vmem:[#allocation2 + $0x98] sm:$0xff]
    %v56 = vld [vmem:[#allocation2 + $0xa0] sm:$0xff]
    %v57 = vld [vmem:[#allocation2 + $0xa8] sm:$0xff]
    %v58 = vld [vmem:[#allocation2 + $0xb0] sm:$0xff]
    %v59 = vld [vmem:[#allocation2 + $0xb8] sm:$0xff]
    %v60 = vld [vmem:[#allocation2 + $0xc0] sm:$0xff]
    %v61 = vld [vmem:[#allocation2 + $0xc8] sm:$0xff]
    %v62 = vld [vmem:[#allocation2 + $0xd0] sm:$0xff]
    %v63 = vld [vmem:[#allocation2 + $0xd8] sm:$0xff]
    %v64 = vld [vmem:[#allocation2 + $0xe0] sm:$0xff]
    %v65 = vld [vmem:[#allocation2 + $0xe8] sm:$0xff]
    %v66 = vld [vmem:[#allocation2 + $0xf0] sm:$0xff]
    %v67 = vld [vmem:[#allocation2 + $0xf8] sm:$0xff]
    %v68 = vld [vmem:[#allocation2 + $0x100] sm:$0xff]
    %v69 = vld [vmem:[#allocation2 + $0x108] sm:$0xff]
    %v70 = vld [vmem:[#allocation2 + $0x110] sm:$0xff]
    %v71 = vld [vmem:[#allocation2 + $0x118] sm:$0xff]
    %v72 = vld [vmem:[#allocation2 + $0x120] sm:$0xff]
    %v73 = vld [vmem:[#allocation2 + $0x128] sm:$0xff]
    %v74 = vld [vmem:[#allocation2 + $0x130] sm:$0xff]
    %v75 = vld [vmem:[#allocation2 + $0x138] sm:$0xff]
    %v76 = vld [vmem:[#allocation2 + $0x140] sm:$0xff]
    %v77 = vld [vmem:[#allocation2 + $0x148] sm:$0xff]
    %v78 = vld [vmem:[#allocation2 + $0x150] sm:$0xff]
    %v79 = vld [vmem:[#allocation2 + $0x158] sm:$0xff]
    %v80 = vld [vmem:[#allocation2 + $0x160] sm:$0xff]
    %v81 = vld [vmem:[#allocation2 + $0x168] sm:$0xff]
    %v82 = vld [vmem:[#allocation2 + $0x170] sm:$0xff]
    %v83 = vld [vmem:[#allocation2 + $0x178] sm:$0xff]
    %v84 = vld [vmem:[%s2] sm:$0x7]
    %v86 = vlaneseq
    %v87 = vshrl.u32 %v86, 7
    %v88 = vsub.s32 0, %v87
    %v89 = vrot.slane %v84, %v88
    %v90 = vlaneseq
    %v91 = vshrl.u32 %v90, 7
    %v92 = vsub.s32 1, %v91
    %v93 = vrot.slane %v84, %v92
    %v94 = vlaneseq
    %v95 = vshrl.u32 %v94, 7
    %v96 = vsub.s32 2, %v95
    %v97 = vrot.slane %v84, %v96
    %101 = vmatprep.subr.mxu0 %v37
    %102 = vmatpush1.msra.mxu0 %v36
    %103 = vmatprep.subr.mxu0 %v40
    %104 = vmatpush1.msra.mxu0 %v39
    %105 = vmatprep.subr.mxu0 %v43
    %106 = vmatpush1.msra.mxu0 %v42
    %107 = vmatprep.subr.mxu0 %v46
    %108 = vmatpush1.msra.mxu0 %v45
    %109 = vmatprep.subr.mxu0 %v49
    %110 = vmatpush1.msra.mxu0 %v48
    %111 = vmatprep.subr.mxu0 %v52
    %112 = vmatpush1.msra.mxu0 %v51
    %113 = vmatprep.subr.mxu0 %v55
    %114 = vmatpush1.msra.mxu0 %v54
    %115 = vmatprep.subr.mxu0 %v58
    %116 = vmatpush1.msra.mxu0 %v57
    %117 = vmatprep.subr.mxu0 %v61
    %118 = vmatpush1.msra.mxu0 %v60
    %119 = vmatprep.subr.mxu0 %v64
    %120 = vmatpush1.msra.mxu0 %v63
    %121 = vmatprep.subr.mxu0 %v67
    %122 = vmatpush1.msra.mxu0 %v66
    %123 = vmatprep.subr.mxu0 %v70
    %124 = vmatpush1.msra.mxu0 %v69
    %125 = vmatprep.subr.mxu0 %v73
    %126 = vmatpush1.msra.mxu0 %v72
    %127 = vmatprep.subr.mxu0 %v76
    %128 = vmatpush1.msra.mxu0 %v75
    %129 = vmatprep.subr.mxu0 %v79
    %130 = vmatpush1.msra.mxu0 %v78
    %131 = vmatprep.subr.mxu0 %v82
    %132 = vmatpush1.msra.mxu0 %v81
    %133 = vmatprep.subr.mxu0 0.0
    %134 = vmatpush1.msra.mxu0 0.0
    %135 = vmatprep.subr.mxu0 0.0
    %136 = vmatpush1.msra.mxu0 0.0
    %137 = vmatprep.subr.mxu0 0.0
    %138 = vmatpush1.msra.mxu0 0.0
    %139 = vmatprep.subr.mxu0 0.0
    %140 = vmatpush1.msra.mxu0 0.0
    %141 = vmatprep.subr.mxu0 0.0
    %142 = vmatpush1.msra.mxu0 0.0
    %143 = vmatprep.subr.mxu0 0.0
    %144 = vmatpush1.msra.mxu0 0.0
    %145 = vmatprep.subr.mxu0 0.0
    %146 = vmatpush1.msra.mxu0 0.0
    %147 = vmatprep.subr.mxu0 0.0
    %148 = vmatpush1.msra.mxu0 0.0
    %149 = vmatprep.subr.mxu0 0.0
    %150 = vmatpush1.msra.mxu0 0.0
    %151 = vmatprep.subr.mxu0 0.0
    %152 = vmatpush1.msra.mxu0 0.0
    %153 = vmatprep.subr.mxu0 0.0
    %154 = vmatpush1.msra.mxu0 0.0
    %155 = vmatprep.subr.mxu0 0.0
    %156 = vmatpush1.msra.mxu0 0.0
    %157 = vmatprep.subr.mxu0 0.0
    %158 = vmatpush1.msra.mxu0 0.0
    %159 = vmatprep.subr.mxu0 0.0
    %160 = vmatpush1.msra.mxu0 0.0
    %161 = vmatprep.subr.mxu0 0.0
    %162 = vmatpush1.msra.mxu0 0.0
    %163 = vmatprep.subr.mxu0 0.0
    %164 = vmatpush1.msra.mxu0 0.0
    %165 = vmatprep.mubr.f32.mxu0 0.0
    %166 = vmatmul.mubr.f32.gmra.mrb[0].mxu0 %v28
    %v167 = vpop.f32.mrb[0].mxu0
    %v168 = vadd.f32 %v89, %v167
    %v169 = vpop.f32.mrb[0].mxu0
    %v170 = vadd.f32 %v93, %v169
    %171 = vmatprep.mubr.f32.mxu0 0.0
    %172 = vmatmul.mubr.f32.gmra.mrb[0].mxu0 %v29
    %v173 = vpop.f32.mrb[0].mxu0
    %v174 = vadd.f32 %v89, %v173
    %v175 = vpop.f32.mrb[0].mxu0
    %v176 = vadd.f32 %v93, %v175
    %177 = vmatprep.mubr.f32.mxu0 0.0
    %178 = vmatmul.mubr.f32.gmra.mrb[0].mxu0 %v30
    %v179 = vpop.f32.mrb[0].mxu0
    %v180 = vadd.f32 %v89, %v179
    %v181 = vpop.f32.mrb[0].mxu0
    %v182 = vadd.f32 %v93, %v181
    %183 = vmatprep.mubr.f32.mxu0 0.0
    %184 = vmatmul.mubr.f32.gmra.mrb[0].mxu0 %v31
    %v185 = vpop.f32.mrb[0].mxu0
    %v186 = vadd.f32 %v89, %v185
    %v187 = vpop.f32.mrb[0].mxu0
    %v188 = vadd.f32 %v93, %v187
    %189 = vmatprep.mubr.f32.mxu0 0.0
    %190 = vmatmul.mubr.f32.gmra.mrb[0].mxu0 %v32
    %v191 = vpop.f32.mrb[0].mxu0
    %v192 = vadd.f32 %v89, %v191
    %v193 = vpop.f32.mrb[0].mxu0
    %v194 = vadd.f32 %v93, %v193
    %195 = vmatprep.mubr.f32.mxu0 0.0
    %196 = vmatmul.mubr.f32.gmra.mrb[0].mxu0 %v33
    %v197 = vpop.f32.mrb[0].mxu0
    %v198 = vadd.f32 %v89, %v197
    %v199 = vpop.f32.mrb[0].mxu0
    %v200 = vadd.f32 %v93, %v199
    %201 = vmatprep.mubr.f32.mxu0 0.0
    %202 = vmatmul.mubr.f32.gmra.mrb[0].mxu0 %v34
    %v203 = vpop.f32.mrb[0].mxu0
    %v204 = vadd.f32 %v89, %v203
    %v205 = vpop.f32.mrb[0].mxu0
    %v206 = vadd.f32 %v93, %v205
    %207 = vmatprep.mubr.f32.mxu0 0.0
    %208 = vmatmul.mubr.f32.gmra.mrb[0].mxu0 %v35
    %v209 = vpop.f32.mrb[0].mxu0
    %v210 = vadd.f32 %v89, %v209
    %v211 = vpop.f32.mrb[0].mxu0
    %v212 = vadd.f32 %v93, %v211
    %213 = vdwg.mxu0
    %214 = vmatprep.subr.mxu0 0.0
    %215 = vmatpush1.msra.mxu0 %v38
    %216 = vmatprep.subr.mxu0 0.0
    %217 = vmatpush1.msra.mxu0 %v41
    %218 = vmatprep.subr.mxu0 0.0
    %219 = vmatpush1.msra.mxu0 %v44
    %220 = vmatprep.subr.mxu0 0.0
    %221 = vmatpush1.msra.mxu0 %v47
    %222 = vmatprep.subr.mxu0 0.0
    %223 = vmatpush1.msra.mxu0 %v50
    %224 = vmatprep.subr.mxu0 0.0
    %225 = vmatpush1.msra.mxu0 %v53
    %226 = vmatprep.subr.mxu0 0.0
    %227 = vmatpush1.msra.mxu0 %v56
    %228 = vmatprep.subr.mxu0 0.0
    %229 = vmatpush1.msra.mxu0 %v59
    %230 = vmatprep.subr.mxu0 0.0
    %231 = vmatpush1.msra.mxu0 %v62
    %232 = vmatprep.subr.mxu0 0.0
    %233 = vmatpush1.msra.mxu0 %v65
    %234 = vmatprep.subr.mxu0 0.0
    %235 = vmatpush1.msra.mxu0 %v68
    %236 = vmatprep.subr.mxu0 0.0
    %237 = vmatpush1.msra.mxu0 %v71
    %238 = vmatprep.subr.mxu0 0.0
    %239 = vmatpush1.msra.mxu0 %v74
    %240 = vmatprep.subr.mxu0 0.0
    %241 = vmatpush1.msra.mxu0 %v77
    %242 = vmatprep.subr.mxu0 0.0
    %243 = vmatpush1.msra.mxu0 %v80
    %244 = vmatprep.subr.mxu0 0.0
    %245 = vmatpush1.msra.mxu0 %v83
    %246 = vmatprep.subr.mxu0 0.0
    %247 = vmatpush1.msra.mxu0 0.0
    %248 = vmatprep.subr.mxu0 0.0
    %249 = vmatpush1.msra.mxu0 0.0
    %250 = vmatprep.subr.mxu0 0.0
    %251 = vmatpush1.msra.mxu0 0.0
    %252 = vmatprep.subr.mxu0 0.0
    %253 = vmatpush1.msra.mxu0 0.0
    %254 = vmatprep.subr.mxu0 0.0
    %255 = vmatpush1.msra.mxu0 0.0
    %256 = vmatprep.subr.mxu0 0.0
    %257 = vmatpush1.msra.mxu0 0.0
    %258 = vmatprep.subr.mxu0 0.0
    %259 = vmatpush1.msra.mxu0 0.0
    %260 = vmatprep.subr.mxu0 0.0
    %261 = vmatpush1.msra.mxu0 0.0
    %262 = vmatprep.subr.mxu0 0.0
    %263 = vmatpush1.msra.mxu0 0.0
    %264 = vmatprep.subr.mxu0 0.0
    %265 = vmatpush1.msra.mxu0 0.0
    %266 = vmatprep.subr.mxu0 0.0
    %267 = vmatpush1.msra.mxu0 0.0
    %268 = vmatprep.subr.mxu0 0.0
    %269 = vmatpush1.msra.mxu0 0.0
    %270 = vmatprep.subr.mxu0 0.0
    %271 = vmatpush1.msra.mxu0 0.0
    %272 = vmatprep.subr.mxu0 0.0
    %273 = vmatpush1.msra.mxu0 0.0
    %274 = vmatprep.subr.mxu0 0.0
    %275 = vmatpush1.msra.mxu0 0.0
    %276 = vmatprep.subr.mxu0 0.0
    %277 = vmatpush1.msra.mxu0 0.0
    %278 = vmatprep.mubr.f32.mxu0 0.0
    %279 = vmatmul.mubr.f32.gmra.mrb[0].mxu0 %v28
    %v280 = vpop.f32.mrb[0].mxu0
    %v281 = vadd.f32 %v97, %v280
    %v282 = vpop.f32.mrb[0].mxu0
    %283 = vmatprep.mubr.f32.mxu0 0.0
    %284 = vmatmul.mubr.f32.gmra.mrb[0].mxu0 %v29
    %v285 = vpop.f32.mrb[0].mxu0
    %v286 = vadd.f32 %v97, %v285
    %v287 = vpop.f32.mrb[0].mxu0
    %288 = vmatprep.mubr.f32.mxu0 0.0
    %289 = vmatmul.mubr.f32.gmra.mrb[0].mxu0 %v30
    %v290 = vpop.f32.mrb[0].mxu0
    %v291 = vadd.f32 %v97, %v290
    %v292 = vpop.f32.mrb[0].mxu0
    %293 = vmatprep.mubr.f32.mxu0 0.0
    %294 = vmatmul.mubr.f32.gmra.mrb[0].mxu0 %v31
    %v295 = vpop.f32.mrb[0].mxu0
    %v296 = vadd.f32 %v97, %v295
    %v297 = vpop.f32.mrb[0].mxu0
    %298 = vmatprep.mubr.f32.mxu0 0.0
    %299 = vmatmul.mubr.f32.gmra.mrb[0].mxu0 %v32
    %v300 = vpop.f32.mrb[0].mxu0
    %v301 = vadd.f32 %v97, %v300
    %v302 = vpop.f32.mrb[0].mxu0
    %303 = vmatprep.mubr.f32.mxu0 0.0
    %304 = vmatmul.mubr.f32.gmra.mrb[0].mxu0 %v33
    %v305 = vpop.f32.mrb[0].mxu0
    %v306 = vadd.f32 %v97, %v305
    %v307 = vpop.f32.mrb[0].mxu0
    %308 = vmatprep.mubr.f32.mxu0 0.0
    %309 = vmatmul.mubr.f32.gmra.mrb[0].mxu0 %v34
    %v310 = vpop.f32.mrb[0].mxu0
    %v311 = vadd.f32 %v97, %v310
    %v312 = vpop.f32.mrb[0].mxu0
    %313 = vmatprep.mubr.f32.mxu0 0.0
    %314 = vmatmul.mubr.f32.gmra.mrb[0].mxu0 %v35
    %v315 = vpop.f32.mrb[0].mxu0
    %v316 = vadd.f32 %v97, %v315
    %v317 = vpop.f32.mrb[0].mxu0
    %318 = vdwg.mxu0
    %319 = vst [vmem:[%s3] sm:$0xff] %v168
    %320 = vst [vmem:[%s3 + $0x8] sm:$0xff] %v170
    %321 = vst [vmem:[%s3 + $0x10] sm:$0xff] %v281
    %322 = vst [vmem:[%s3 + $0x18] sm:$0xff] %v174
    %323 = vst [vmem:[%s3 + $0x20] sm:$0xff] %v176
    %324 = vst [vmem:[%s3 + $0x28] sm:$0xff] %v286
    %325 = vst [vmem:[%s3 + $0x30] sm:$0xff] %v180
    %326 = vst [vmem:[%s3 + $0x38] sm:$0xff] %v182
    %327 = vst [vmem:[%s3 + $0x40] sm:$0xff] %v291
    %328 = vst [vmem:[%s3 + $0x48] sm:$0xff] %v186
    %329 = vst [vmem:[%s3 + $0x50] sm:$0xff] %v188
    %330 = vst [vmem:[%s3 + $0x58] sm:$0xff] %v296
    %331 = vst [vmem:[%s3 + $0x60] sm:$0xff] %v192
    %332 = vst [vmem:[%s3 + $0x68] sm:$0xff] %v194
    %333 = vst [vmem:[%s3 + $0x70] sm:$0xff] %v301
    %334 = vst [vmem:[%s3 + $0x78] sm:$0xff] %v198
    %335 = vst [vmem:[%s3 + $0x80] sm:$0xff] %v200
    %336 = vst [vmem:[%s3 + $0x88] sm:$0xff] %v306
    %337 = vst [vmem:[%s3 + $0x90] sm:$0xff] %v204
    %338 = vst [vmem:[%s3 + $0x98] sm:$0xff] %v206
    %339 = vst [vmem:[%s3 + $0xa0] sm:$0xff] %v311
    %340 = vst [vmem:[%s3 + $0xa8] sm:$0xff] %v210
    %341 = vst [vmem:[%s3 + $0xb0] sm:$0xff] %v212
    %342 = vst [vmem:[%s3 + $0xb8] sm:$0xff] %v316
    // Predicated region
    $region18: #{model_forward.5} parent=1 // pred_check
      _
    $region19: #{model_forward.5} parent=1 // pred_check_branch
      %344 = sbr.rel (0) target = $region21
    $region20: #{model_forward.5} parent=1 // pred_region
      _
    $region21: #{model_forward.5} parent=1 // pred_fallthru
      _
    // Predicated region
    $region22: #{model_forward.5} parent=1 // pred_check
      _
    $region23: #{model_forward.5} parent=1 // pred_check_branch
      %346 = sbr.rel (0) target = $region25
    $region24: #{model_forward.5} parent=1 // pred_region
      _
    $region25: #{model_forward.5} parent=1 // pred_fallthru
      _
    %347 = vsyncpa [#allocation3], 1

// kernel: model_forward.8
$region0: #{model_forward.8}
  #allocation0 [shape = 'u32[]', space=smem, size = 0x4, offset = 0x4, fixed_abs, tag = 'smem constant byte address 0x4 - core index']
  #allocation1 [shape = 'u32[144,128]{1,0:T(1,128)}', space=vmem, size = 0x12000, scoped, tag = 'internal scratch']
  #allocation2 [shape = 'f32[8,128]{1,0:T(8,128)}', space=vmem, size = 0x1000, scoped, tag = 'scratch operand']
  %s0 = inlined_call_operand.vmem [shape: f32[8,8,384], index: 0, kind: input, shape index: {}]
  %s1 = inlined_call_operand.vmem [shape: f32[128,384], index: 1, kind: input, shape index: {}]
  %s2 = inlined_call_operand.vmem [shape: f32[1,384], index: 2, kind: input, shape index: {}]
  %s3 = inlined_call_operand.vmem [shape: f32[8,128], index: 3, kind: input, shape index: {}]
  %s4 = inlined_call_operand.vmem [shape: f32[8,128], index: 4, kind: output, shape index: {}]
  %s5 = sld [smem:[#allocation0]]
  $region34: #{model_forward.8} parent=0
    _
  %s7 = ssub.s32 1, %s5
  %s8 = scalar_select 0, %s7, %s5
  // Predicated region
  $region2: #{model_forward.8} parent=0 // pred_check
    _
  $region3: #{model_forward.8} parent=0 // pred_check_branch
    %10 = sbr.rel (0) target = $region5
  $region4: #{model_forward.8} parent=0 // pred_region
    _
  $region5: #{model_forward.8} parent=0 // pred_fallthru
    _
  // Predicated region
  $region6: #{model_forward.8} parent=0 // pred_check
    _
  $region7: #{model_forward.8} parent=0 // pred_check_branch
    %12 = sbr.rel (0) target = $region9
  $region8: #{model_forward.8} parent=0 // pred_region
    _
  $region9: #{model_forward.8} parent=0 // pred_fallthru
    _
  // Predicated region
  $region10: #{model_forward.8} parent=0 // pred_check
    _
  $region11: #{model_forward.8} parent=0 // pred_check_branch
    %14 = sbr.rel (0) target = $region13
  $region12: #{model_forward.8} parent=0 // pred_region
    _
  $region13: #{model_forward.8} parent=0 // pred_fallthru
    _
  // Predicated region
  $region14: #{model_forward.8} parent=0 // pred_check
    _
  $region15: #{model_forward.8} parent=0 // pred_check_branch
    %16 = sbr.rel (0) target = $region17
  $region16: #{model_forward.8} parent=0 // pred_region
    _
  $region17: #{model_forward.8} parent=0 // pred_fallthru
    _
  %p17 = scmp.eq.s32.totalorder 0, 0
  // Predicated region
  $region18: #{model_forward.8} parent=0 // pred_check
    %p18 = pneg %p17
  $region19: #{model_forward.8} parent=0 // pred_check_branch
    %20 = sbr.rel (%p18) target = $region21
  $region20: #{model_forward.8} parent=0 // pred_region
    %v21 = vld [vmem:[%s3] sm:$0xff]
    %22 = vst [vmem:[#allocation2] sm:$0xff] %v21
  $region21: #{model_forward.8} parent=0 // pred_fallthru
    _
  %v23 = vld [vmem:[#allocation2] sm:$0xff]
  %v24 = vld [vmem:[%s0] sm:$0xff]
  %v25 = vld [vmem:[%s0 + $0x8] sm:$0xff]
  %v26 = vld [vmem:[%s0 + $0x10] sm:$0xff]
  %v27 = vld [vmem:[%s1] sm:$0xff]
  %v28 = vld [vmem:[%s1 + $0x8] sm:$0xff]
  %v29 = vld [vmem:[%s1 + $0x10] sm:$0xff]
  %v30 = vld [vmem:[%s1 + $0x18] sm:$0xff]
  %v31 = vld [vmem:[%s1 + $0x20] sm:$0xff]
  %v32 = vld [vmem:[%s1 + $0x28] sm:$0xff]
  %v33 = vld [vmem:[%s1 + $0x30] sm:$0xff]
  %v34 = vld [vmem:[%s1 + $0x38] sm:$0xff]
  %v35 = vld [vmem:[%s1 + $0x40] sm:$0xff]
  %v36 = vld [vmem:[%s1 + $0x48] sm:$0xff]
  %v37 = vld [vmem:[%s1 + $0x50] sm:$0xff]
  %v38 = vld [vmem:[%s1 + $0x58] sm:$0xff]
  %v39 = vld [vmem:[%s1 + $0x60] sm:$0xff]
  %v40 = vld [vmem:[%s1 + $0x68] sm:$0xff]
  %v41 = vld [vmem:[%s1 + $0x70] sm:$0xff]
  %v42 = vld [vmem:[%s1 + $0x78] sm:$0xff]
  %v43 = vld [vmem:[%s1 + $0x80] sm:$0xff]
  %v44 = vld [vmem:[%s1 + $0x88] sm:$0xff]
  %v45 = vld [vmem:[%s1 + $0x90] sm:$0xff]
  %v46 = vld [vmem:[%s1 + $0x98] sm:$0xff]
  %v47 = vld [vmem:[%s1 + $0xa0] sm:$0xff]
  %v48 = vld [vmem:[%s1 + $0xa8] sm:$0xff]
  %v49 = vld [vmem:[%s1 + $0xb0] sm:$0xff]
  %v50 = vld [vmem:[%s1 + $0xb8] sm:$0xff]
  %v51 = vld [vmem:[%s1 + $0xc0] sm:$0xff]
  %v52 = vld [vmem:[%s1 + $0xc8] sm:$0xff]
  %v53 = vld [vmem:[%s1 + $0xd0] sm:$0xff]
  %v54 = vld [vmem:[%s1 + $0xd8] sm:$0xff]
  %v55 = vld [vmem:[%s1 + $0xe0] sm:$0xff]
  %v56 = vld [vmem:[%s1 + $0xe8] sm:$0xff]
  %v57 = vld [vmem:[%s1 + $0xf0] sm:$0xff]
  %v58 = vld [vmem:[%s1 + $0xf8] sm:$0xff]
  %v59 = vld [vmem:[%s1 + $0x100] sm:$0xff]
  %v60 = vld [vmem:[%s1 + $0x108] sm:$0xff]
  %v61 = vld [vmem:[%s1 + $0x110] sm:$0xff]
  %v62 = vld [vmem:[%s1 + $0x118] sm:$0xff]
  %v63 = vld [vmem:[%s1 + $0x120] sm:$0xff]
  %v64 = vld [vmem:[%s1 + $0x128] sm:$0xff]
  %v65 = vld [vmem:[%s1 + $0x130] sm:$0xff]
  %v66 = vld [vmem:[%s1 + $0x138] sm:$0xff]
  %v67 = vld [vmem:[%s1 + $0x140] sm:$0xff]
  %v68 = vld [vmem:[%s1 + $0x148] sm:$0xff]
  %v69 = vld [vmem:[%s1 + $0x150] sm:$0xff]
  %v70 = vld [vmem:[%s1 + $0x158] sm:$0xff]
  %v71 = vld [vmem:[%s1 + $0x160] sm:$0xff]
  %v72 = vld [vmem:[%s1 + $0x168] sm:$0xff]
  %v73 = vld [vmem:[%s1 + $0x170] sm:$0xff]
  %v74 = vld [vmem:[%s1 + $0x178] sm:$0xff]
  %v75 = vld [vmem:[%s2] sm:$0x7]
  %v77 = vlaneseq
  %v78 = vshrl.u32 %v77, 7
  %v79 = vsub.s32 0, %v78
  %v80 = vrot.slane %v75, %v79
  %v81 = vlaneseq
  %v82 = vshrl.u32 %v81, 7
  %v83 = vsub.s32 1, %v82
  %v84 = vrot.slane %v75, %v83
  %v85 = vlaneseq
  %v86 = vshrl.u32 %v85, 7
  %v87 = vsub.s32 2, %v86
  %v88 = vrot.slane %v75, %v87
  %92 = vmatprep.subr.mxu0 %v28
  %93 = vmatpush1.msra.mxu0 %v27
  %94 = vmatprep.subr.mxu0 %v31
  %95 = vmatpush1.msra.mxu0 %v30
  %96 = vmatprep.subr.mxu0 %v34
  %97 = vmatpush1.msra.mxu0 %v33
  %98 = vmatprep.subr.mxu0 %v37
  %99 = vmatpush1.msra.mxu0 %v36
  %100 = vmatprep.subr.mxu0 %v40
  %101 = vmatpush1.msra.mxu0 %v39
  %102 = vmatprep.subr.mxu0 %v43
  %103 = vmatpush1.msra.mxu0 %v42
  %104 = vmatprep.subr.mxu0 %v46
  %105 = vmatpush1.msra.mxu0 %v45
  %106 = vmatprep.subr.mxu0 %v49
  %107 = vmatpush1.msra.mxu0 %v48
  %108 = vmatprep.subr.mxu0 %v52
  %109 = vmatpush1.msra.mxu0 %v51
  %110 = vmatprep.subr.mxu0 %v55
  %111 = vmatpush1.msra.mxu0 %v54
  %112 = vmatprep.subr.mxu0 %v58
  %113 = vmatpush1.msra.mxu0 %v57
  %114 = vmatprep.subr.mxu0 %v61
  %115 = vmatpush1.msra.mxu0 %v60
  %116 = vmatprep.subr.mxu0 %v64
  %117 = vmatpush1.msra.mxu0 %v63
  %118 = vmatprep.subr.mxu0 %v67
  %119 = vmatpush1.msra.mxu0 %v66
  %120 = vmatprep.subr.mxu0 %v70
  %121 = vmatpush1.msra.mxu0 %v69
  %122 = vmatprep.subr.mxu0 %v73
  %123 = vmatpush1.msra.mxu0 %v72
  %124 = vmatprep.subr.mxu0 0.0
  %125 = vmatpush1.msra.mxu0 0.0
  %126 = vmatprep.subr.mxu0 0.0
  %127 = vmatpush1.msra.mxu0 0.0
  %128 = vmatprep.subr.mxu0 0.0
  %129 = vmatpush1.msra.mxu0 0.0
  %130 = vmatprep.subr.mxu0 0.0
  %131 = vmatpush1.msra.mxu0 0.0
  %132 = vmatprep.subr.mxu0 0.0
  %133 = vmatpush1.msra.mxu0 0.0
  %134 = vmatprep.subr.mxu0 0.0
  %135 = vmatpush1.msra.mxu0 0.0
  %136 = vmatprep.subr.mxu0 0.0
  %137 = vmatpush1.msra.mxu0 0.0
  %138 = vmatprep.subr.mxu0 0.0
  %139 = vmatpush1.msra.mxu0 0.0
  %140 = vmatprep.subr.mxu0 0.0
  %141 = vmatpush1.msra.mxu0 0.0
  %142 = vmatprep.subr.mxu0 0.0
  %143 = vmatpush1.msra.mxu0 0.0
  %144 = vmatprep.subr.mxu0 0.0
  %145 = vmatpush1.msra.mxu0 0.0
  %146 = vmatprep.subr.mxu0 0.0
  %147 = vmatpush1.msra.mxu0 0.0
  %148 = vmatprep.subr.mxu0 0.0
  %149 = vmatpush1.msra.mxu0 0.0
  %150 = vmatprep.subr.mxu0 0.0
  %151 = vmatpush1.msra.mxu0 0.0
  %152 = vmatprep.subr.mxu0 0.0
  %153 = vmatpush1.msra.mxu0 0.0
  %154 = vmatprep.subr.mxu0 0.0
  %155 = vmatpush1.msra.mxu0 0.0
  %156 = vmatprep.mubr.f32.mxu0 0.0
  %157 = vmatmul.mubr.f32.gmra.mrb[0].mxu0 %v23
  %v158 = vpop.f32.mrb[0].mxu0
  %v159 = vadd.f32 %v80, %v158
  %v160 = vpop.f32.mrb[0].mxu0
  %v161 = vadd.f32 %v84, %v160
  %162 = vdwg.mxu0
  %163 = vmatprep.subr.mxu0 0.0
  %164 = vmatpush1.msra.mxu0 %v29
  %165 = vmatprep.subr.mxu0 0.0
  %166 = vmatpush1.msra.mxu0 %v32
  %167 = vmatprep.subr.mxu0 0.0
  %168 = vmatpush1.msra.mxu0 %v35
  %169 = vmatprep.subr.mxu0 0.0
  %170 = vmatpush1.msra.mxu0 %v38
  %171 = vmatprep.subr.mxu0 0.0
  %172 = vmatpush1.msra.mxu0 %v41
  %173 = vmatprep.subr.mxu0 0.0
  %174 = vmatpush1.msra.mxu0 %v44
  %175 = vmatprep.subr.mxu0 0.0
  %176 = vmatpush1.msra.mxu0 %v47
  %177 = vmatprep.subr.mxu0 0.0
  %178 = vmatpush1.msra.mxu0 %v50
  %179 = vmatprep.subr.mxu0 0.0
  %180 = vmatpush1.msra.mxu0 %v53
  %181 = vmatprep.subr.mxu0 0.0
  %182 = vmatpush1.msra.mxu0 %v56
  %183 = vmatprep.subr.mxu0 0.0
  %184 = vmatpush1.msra.mxu0 %v59
  %185 = vmatprep.subr.mxu0 0.0
  %186 = vmatpush1.msra.mxu0 %v62
  %187 = vmatprep.subr.mxu0 0.0
  %188 = vmatpush1.msra.mxu0 %v65
  %189 = vmatprep.subr.mxu0 0.0
  %190 = vmatpush1.msra.mxu0 %v68
  %191 = vmatprep.subr.mxu0 0.0
  %192 = vmatpush1.msra.mxu0 %v71
  %193 = vmatprep.subr.mxu0 0.0
  %194 = vmatpush1.msra.mxu0 %v74
  %195 = vmatprep.subr.mxu0 0.0
  %196 = vmatpush1.msra.mxu0 0.0
  %197 = vmatprep.subr.mxu0 0.0
  %198 = vmatpush1.msra.mxu0 0.0
  %199 = vmatprep.subr.mxu0 0.0
  %200 = vmatpush1.msra.mxu0 0.0
  %201 = vmatprep.subr.mxu0 0.0
  %202 = vmatpush1.msra.mxu0 0.0
  %203 = vmatprep.subr.mxu0 0.0
  %204 = vmatpush1.msra.mxu0 0.0
  %205 = vmatprep.subr.mxu0 0.0
  %206 = vmatpush1.msra.mxu0 0.0
  %207 = vmatprep.subr.mxu0 0.0
  %208 = vmatpush1.msra.mxu0 0.0
  %209 = vmatprep.subr.mxu0 0.0
  %210 = vmatpush1.msra.mxu0 0.0
  %211 = vmatprep.subr.mxu0 0.0
  %212 = vmatpush1.msra.mxu0 0.0
  %213 = vmatprep.subr.mxu0 0.0
  %214 = vmatpush1.msra.mxu0 0.0
  %215 = vmatprep.subr.mxu0 0.0
  %216 = vmatpush1.msra.mxu0 0.0
  %217 = vmatprep.subr.mxu0 0.0
  %218 = vmatpush1.msra.mxu0 0.0
  %219 = vmatprep.subr.mxu0 0.0
  %220 = vmatpush1.msra.mxu0 0.0
  %221 = vmatprep.subr.mxu0 0.0
  %222 = vmatpush1.msra.mxu0 0.0
  %223 = vmatprep.subr.mxu0 0.0
  %224 = vmatpush1.msra.mxu0 0.0
  %225 = vmatprep.subr.mxu0 0.0
  %226 = vmatpush1.msra.mxu0 0.0
  %227 = vmatprep.mubr.f32.mxu0 0.0
  %228 = vmatmul.mubr.f32.gmra.mrb[0].mxu0 %v23
  %v229 = vpop.f32.mrb[0].mxu0
  %v230 = vadd.f32 %v88, %v229
  %v231 = vpop.f32.mrb[0].mxu0
  %232 = vdwg.mxu0
  %v233 = vadd.f32 %v24, %v159
  %v234 = vxor.u32 %v233, 2147483648
  %v235 = vmul.f32 %v234, 1.442695
  %v236 = vpow.pop %v235
  %v237 = vadd.f32 %v236, 1.0
  %v238 = vrcp.pop %v237
  %v239 = vmul.f32 1.0, %v238
  %v240 = vadd.f32 %v25, %v161
  %v241 = vxor.u32 %v240, 2147483648
  %v242 = vmul.f32 %v241, 1.442695
  %v243 = vpow.pop %v242
  %v244 = vadd.f32 %v243, 1.0
  %v245 = vrcp.pop %v244
  %v246 = vmul.f32 1.0, %v245
  %v247 = vmul.f32 %v239, %v230
  %v248 = vadd.f32 %v26, %v247
  %v249 = vtanh.pop %v248
  %v250 = vsub.f32 1.0, %v246
  %v251 = vmul.f32 %v250, %v249
  %v252 = vmul.f32 %v246, %v23
  %v253 = vadd.f32 %v251, %v252
  %s254 = scalar_lea.vmem %s0, 24
  %v255 = vld [vmem:[%s254] sm:$0xff]
  %v256 = vld [vmem:[%s254 + $0x8] sm:$0xff]
  %v257 = vld [vmem:[%s254 + $0x10] sm:$0xff]
  %258 = vmatprep.subr.mxu0 %v28
  %259 = vmatpush1.msra.mxu0 %v27
  %260 = vmatprep.subr.mxu0 %v31
  %261 = vmatpush1.msra.mxu0 %v30
  %262 = vmatprep.subr.mxu0 %v34
  %263 = vmatpush1.msra.mxu0 %v33
  %264 = vmatprep.subr.mxu0 %v37
  %265 = vmatpush1.msra.mxu0 %v36
  %266 = vmatprep.subr.mxu0 %v40
  %267 = vmatpush1.msra.mxu0 %v39
  %268 = vmatprep.subr.mxu0 %v43
  %269 = vmatpush1.msra.mxu0 %v42
  %270 = vmatprep.subr.mxu0 %v46
  %271 = vmatpush1.msra.mxu0 %v45
  %272 = vmatprep.subr.mxu0 %v49
  %273 = vmatpush1.msra.mxu0 %v48
  %274 = vmatprep.subr.mxu0 %v52
  %275 = vmatpush1.msra.mxu0 %v51
  %276 = vmatprep.subr.mxu0 %v55
  %277 = vmatpush1.msra.mxu0 %v54
  %278 = vmatprep.subr.mxu0 %v58
  %279 = vmatpush1.msra.mxu0 %v57
  %280 = vmatprep.subr.mxu0 %v61
  %281 = vmatpush1.msra.mxu0 %v60
  %282 = vmatprep.subr.mxu0 %v64
  %283 = vmatpush1.msra.mxu0 %v63
  %284 = vmatprep.subr.mxu0 %v67
  %285 = vmatpush1.msra.mxu0 %v66
  %286 = vmatprep.subr.mxu0 %v70
  %287 = vmatpush1.msra.mxu0 %v69
  %288 = vmatprep.subr.mxu0 %v73
  %289 = vmatpush1.msra.mxu0 %v72
  %290 = vmatprep.subr.mxu0 0.0
  %291 = vmatpush1.msra.mxu0 0.0
  %292 = vmatprep.subr.mxu0 0.0
  %293 = vmatpush1.msra.mxu0 0.0
  %294 = vmatprep.subr.mxu0 0.0
  %295 = vmatpush1.msra.mxu0 0.0
  %296 = vmatprep.subr.mxu0 0.0
  %297 = vmatpush1.msra.mxu0 0.0
  %298 = vmatprep.subr.mxu0 0.0
  %299 = vmatpush1.msra.mxu0 0.0
  %300 = vmatprep.subr.mxu0 0.0
  %301 = vmatpush1.msra.mxu0 0.0
  %302 = vmatprep.subr.mxu0 0.0
  %303 = vmatpush1.msra.mxu0 0.0
  %304 = vmatprep.subr.mxu0 0.0
  %305 = vmatpush1.msra.mxu0 0.0
  %306 = vmatprep.subr.mxu0 0.0
  %307 = vmatpush1.msra.mxu0 0.0
  %308 = vmatprep.subr.mxu0 0.0
  %309 = vmatpush1.msra.mxu0 0.0
  %310 = vmatprep.subr.mxu0 0.0
  %311 = vmatpush1.msra.mxu0 0.0
  %312 = vmatprep.subr.mxu0 0.0
  %313 = vmatpush1.msra.mxu0 0.0
  %314 = vmatprep.subr.mxu0 0.0
  %315 = vmatpush1.msra.mxu0 0.0
  %316 = vmatprep.subr.mxu0 0.0
  %317 = vmatpush1.msra.mxu0 0.0
  %318 = vmatprep.subr.mxu0 0.0
  %319 = vmatpush1.msra.mxu0 0.0
  %320 = vmatprep.subr.mxu0 0.0
  %321 = vmatpush1.msra.mxu0 0.0
  %322 = vmatprep.mubr.f32.mxu0 0.0
  %323 = vmatmul.mubr.f32.gmra.mrb[0].mxu0 %v253
  %v324 = vpop.f32.mrb[0].mxu0
  %v325 = vadd.f32 %v80, %v324
  %v326 = vpop.f32.mrb[0].mxu0
  %v327 = vadd.f32 %v84, %v326
  %328 = vdwg.mxu0
  %329 = vmatprep.subr.mxu0 0.0
  %330 = vmatpush1.msra.mxu0 %v29
  %331 = vmatprep.subr.mxu0 0.0
  %332 = vmatpush1.msra.mxu0 %v32
  %333 = vmatprep.subr.mxu0 0.0
  %334 = vmatpush1.msra.mxu0 %v35
  %335 = vmatprep.subr.mxu0 0.0
  %336 = vmatpush1.msra.mxu0 %v38
  %337 = vmatprep.subr.mxu0 0.0
  %338 = vmatpush1.msra.mxu0 %v41
  %339 = vmatprep.subr.mxu0 0.0
  %340 = vmatpush1.msra.mxu0 %v44
  %341 = vmatprep.subr.mxu0 0.0
  %342 = vmatpush1.msra.mxu0 %v47
  %343 = vmatprep.subr.mxu0 0.0
  %344 = vmatpush1.msra.mxu0 %v50
  %345 = vmatprep.subr.mxu0 0.0
  %346 = vmatpush1.msra.mxu0 %v53
  %347 = vmatprep.subr.mxu0 0.0
  %348 = vmatpush1.msra.mxu0 %v56
  %349 = vmatprep.subr.mxu0 0.0
  %350 = vmatpush1.msra.mxu0 %v59
  %351 = vmatprep.subr.mxu0 0.0
  %352 = vmatpush1.msra.mxu0 %v62
  %353 = vmatprep.subr.mxu0 0.0
  %354 = vmatpush1.msra.mxu0 %v65
  %355 = vmatprep.subr.mxu0 0.0
  %356 = vmatpush1.msra.mxu0 %v68
  %357 = vmatprep.subr.mxu0 0.0
  %358 = vmatpush1.msra.mxu0 %v71
  %359 = vmatprep.subr.mxu0 0.0
  %360 = vmatpush1.msra.mxu0 %v74
  %361 = vmatprep.subr.mxu0 0.0
  %362 = vmatpush1.msra.mxu0 0.0
  %363 = vmatprep.subr.mxu0 0.0
  %364 = vmatpush1.msra.mxu0 0.0
  %365 = vmatprep.subr.mxu0 0.0
  %366 = vmatpush1.msra.mxu0 0.0
  %367 = vmatprep.subr.mxu0 0.0
  %368 = vmatpush1.msra.mxu0 0.0
  %369 = vmatprep.subr.mxu0 0.0
  %370 = vmatpush1.msra.mxu0 0.0
  %371 = vmatprep.subr.mxu0 0.0
  %372 = vmatpush1.msra.mxu0 0.0
  %373 = vmatprep.subr.mxu0 0.0
  %374 = vmatpush1.msra.mxu0 0.0
  %375 = vmatprep.subr.mxu0 0.0
  %376 = vmatpush1.msra.mxu0 0.0
  %377 = vmatprep.subr.mxu0 0.0
  %378 = vmatpush1.msra.mxu0 0.0
  %379 = vmatprep.subr.mxu0 0.0
  %380 = vmatpush1.msra.mxu0 0.0
  %381 = vmatprep.subr.mxu0 0.0
  %382 = vmatpush1.msra.mxu0 0.0
  %383 = vmatprep.subr.mxu0 0.0
  %384 = vmatpush1.msra.mxu0 0.0
  %385 = vmatprep.subr.mxu0 0.0
  %386 = vmatpush1.msra.mxu0 0.0
  %387 = vmatprep.subr.mxu0 0.0
  %388 = vmatpush1.msra.mxu0 0.0
  %389 = vmatprep.subr.mxu0 0.0
  %390 = vmatpush1.msra.mxu0 0.0
  %391 = vmatprep.subr.mxu0 0.0
  %392 = vmatpush1.msra.mxu0 0.0
  %393 = vmatprep.mubr.f32.mxu0 0.0
  %394 = vmatmul.mubr.f32.gmra.mrb[0].mxu0 %v253
  %v395 = vpop.f32.mrb[0].mxu0
  %v396 = vadd.f32 %v88, %v395
  %v397 = vpop.f32.mrb[0].mxu0
  %398 = vdwg.mxu0
  %v399 = vadd.f32 %v255, %v325
  %v400 = vxor.u32 %v399, 2147483648
  %v401 = vmul.f32 %v400, 1.442695
  %v402 = vpow.pop %v401
  %v403 = vadd.f32 %v402, 1.0
  %v404 = vrcp.pop %v403
  %v405 = vmul.f32 1.0, %v404
  %v406 = vadd.f32 %v256, %v327
  %v407 = vxor.u32 %v406, 2147483648
  %v408 = vmul.f32 %v407, 1.442695
  %v409 = vpow.pop %v408
  %v410 = vadd.f32 %v409, 1.0
  %v411 = vrcp.pop %v410
  %v412 = vmul.f32 1.0, %v411
  %v413 = vmul.f32 %v405, %v396
  %v414 = vadd.f32 %v257, %v413
  %v415 = vtanh.pop %v414
  %v416 = vsub.f32 1.0, %v412
  %v417 = vmul.f32 %v416, %v415
  %v418 = vmul.f32 %v412, %v253
  %v419 = vadd.f32 %v417, %v418
  %s420 = scalar_lea.vmem %s0, 48
  %v421 = vld [vmem:[%s420] sm:$0xff]
  %v422 = vld [vmem:[%s420 + $0x8] sm:$0xff]
  %v423 = vld [vmem:[%s420 + $0x10] sm:$0xff]
  %424 = vmatprep.subr.mxu0 %v28
  %425 = vmatpush1.msra.mxu0 %v27
  %426 = vmatprep.subr.mxu0 %v31
  %427 = vmatpush1.msra.mxu0 %v30
  %428 = vmatprep.subr.mxu0 %v34
  %429 = vmatpush1.msra.mxu0 %v33
  %430 = vmatprep.subr.mxu0 %v37
  %431 = vmatpush1.msra.mxu0 %v36
  %432 = vmatprep.subr.mxu0 %v40
  %433 = vmatpush1.msra.mxu0 %v39
  %434 = vmatprep.subr.mxu0 %v43
  %435 = vmatpush1.msra.mxu0 %v42
  %436 = vmatprep.subr.mxu0 %v46
  %437 = vmatpush1.msra.mxu0 %v45
  %438 = vmatprep.subr.mxu0 %v49
  %439 = vmatpush1.msra.mxu0 %v48
  %440 = vmatprep.subr.mxu0 %v52
  %441 = vmatpush1.msra.mxu0 %v51
  %442 = vmatprep.subr.mxu0 %v55
  %443 = vmatpush1.msra.mxu0 %v54
  %444 = vmatprep.subr.mxu0 %v58
  %445 = vmatpush1.msra.mxu0 %v57
  %446 = vmatprep.subr.mxu0 %v61
  %447 = vmatpush1.msra.mxu0 %v60
  %448 = vmatprep.subr.mxu0 %v64
  %449 = vmatpush1.msra.mxu0 %v63
  %450 = vmatprep.subr.mxu0 %v67
  %451 = vmatpush1.msra.mxu0 %v66
  %452 = vmatprep.subr.mxu0 %v70
  %453 = vmatpush1.msra.mxu0 %v69
  %454 = vmatprep.subr.mxu0 %v73
  %455 = vmatpush1.msra.mxu0 %v72
  %456 = vmatprep.subr.mxu0 0.0
  %457 = vmatpush1.msra.mxu0 0.0
  %458 = vmatprep.subr.mxu0 0.0
  %459 = vmatpush1.msra.mxu0 0.0
  %460 = vmatprep.subr.mxu0 0.0
  %461 = vmatpush1.msra.mxu0 0.0
  %462 = vmatprep.subr.mxu0 0.0
  %463 = vmatpush1.msra.mxu0 0.0
  %464 = vmatprep.subr.mxu0 0.0
  %465 = vmatpush1.msra.mxu0 0.0
  %466 = vmatprep.subr.mxu0 0.0
  %467 = vmatpush1.msra.mxu0 0.0
  %468 = vmatprep.subr.mxu0 0.0
  %469 = vmatpush1.msra.mxu0 0.0
  %470 = vmatprep.subr.mxu0 0.0
  %471 = vmatpush1.msra.mxu0 0.0
  %472 = vmatprep.subr.mxu0 0.0
  %473 = vmatpush1.msra.mxu0 0.0
  %474 = vmatprep.subr.mxu0 0.0
  %475 = vmatpush1.msra.mxu0 0.0
  %476 = vmatprep.subr.mxu0 0.0
  %477 = vmatpush1.msra.mxu0 0.0
  %478 = vmatprep.subr.mxu0 0.0
  %479 = vmatpush1.msra.mxu0 0.0
  %480 = vmatprep.subr.mxu0 0.0
  %481 = vmatpush1.msra.mxu0 0.0
  %482 = vmatprep.subr.mxu0 0.0
  %483 = vmatpush1.msra.mxu0 0.0
  %484 = vmatprep.subr.mxu0 0.0
  %485 = vmatpush1.msra.mxu0 0.0
  %486 = vmatprep.subr.mxu0 0.0
  %487 = vmatpush1.msra.mxu0 0.0
  %488 = vmatprep.mubr.f32.mxu0 0.0
  %489 = vmatmul.mubr.f32.gmra.mrb[0].mxu0 %v419
  %v490 = vpop.f32.mrb[0].mxu0
  %v491 = vadd.f32 %v80, %v490
  %v492 = vpop.f32.mrb[0].mxu0
  %v493 = vadd.f32 %v84, %v492
  %494 = vdwg.mxu0
  %495 = vmatprep.subr.mxu0 0.0
  %496 = vmatpush1.msra.mxu0 %v29
  %497 = vmatprep.subr.mxu0 0.0
  %498 = vmatpush1.msra.mxu0 %v32
  %499 = vmatprep.subr.mxu0 0.0
  %500 = vmatpush1.msra.mxu0 %v35
  %501 = vmatprep.subr.mxu0 0.0
  %502 = vmatpush1.msra.mxu0 %v38
  %503 = vmatprep.subr.mxu0 0.0
  %504 = vmatpush1.msra.mxu0 %v41
  %505 = vmatprep.subr.mxu0 0.0
  %506 = vmatpush1.msra.mxu0 %v44
  %507 = vmatprep.subr.mxu0 0.0
  %508 = vmatpush1.msra.mxu0 %v47
  %509 = vmatprep.subr.mxu0 0.0
  %510 = vmatpush1.msra.mxu0 %v50
  %511 = vmatprep.subr.mxu0 0.0
  %512 = vmatpush1.msra.mxu0 %v53
  %513 = vmatprep.subr.mxu0 0.0
  %514 = vmatpush1.msra.mxu0 %v56
  %515 = vmatprep.subr.mxu0 0.0
  %516 = vmatpush1.msra.mxu0 %v59
  %517 = vmatprep.subr.mxu0 0.0
  %518 = vmatpush1.msra.mxu0 %v62
  %519 = vmatprep.subr.mxu0 0.0
  %520 = vmatpush1.msra.mxu0 %v65
  %521 = vmatprep.subr.mxu0 0.0
  %522 = vmatpush1.msra.mxu0 %v68
  %523 = vmatprep.subr.mxu0 0.0
  %524 = vmatpush1.msra.mxu0 %v71
  %525 = vmatprep.subr.mxu0 0.0
  %526 = vmatpush1.msra.mxu0 %v74
  %527 = vmatprep.subr.mxu0 0.0
  %528 = vmatpush1.msra.mxu0 0.0
  %529 = vmatprep.subr.mxu0 0.0
  %530 = vmatpush1.msra.mxu0 0.0
  %531 = vmatprep.subr.mxu0 0.0
  %532 = vmatpush1.msra.mxu0 0.0
  %533 = vmatprep.subr.mxu0 0.0
  %534 = vmatpush1.msra.mxu0 0.0
  %535 = vmatprep.subr.mxu0 0.0
  %536 = vmatpush1.msra.mxu0 0.0
  %537 = vmatprep.subr.mxu0 0.0
  %538 = vmatpush1.msra.mxu0 0.0
  %539 = vmatprep.subr.mxu0 0.0
  %540 = vmatpush1.msra.mxu0 0.0
  %541 = vmatprep.subr.mxu0 0.0
  %542 = vmatpush1.msra.mxu0 0.0
  %543 = vmatprep.subr.mxu0 0.0
  %544 = vmatpush1.msra.mxu0 0.0
  %545 = vmatprep.subr.mxu0 0.0
  %546 = vmatpush1.msra.mxu0 0.0
  %547 = vmatprep.subr.mxu0 0.0
  %548 = vmatpush1.msra.mxu0 0.0
  %549 = vmatprep.subr.mxu0 0.0
  %550 = vmatpush1.msra.mxu0 0.0
  %551 = vmatprep.subr.mxu0 0.0
  %552 = vmatpush1.msra.mxu0 0.0
  %553 = vmatprep.subr.mxu0 0.0
  %554 = vmatpush1.msra.mxu0 0.0
  %555 = vmatprep.subr.mxu0 0.0
  %556 = vmatpush1.msra.mxu0 0.0
  %557 = vmatprep.subr.mxu0 0.0
  %558 = vmatpush1.msra.mxu0 0.0
  %559 = vmatprep.mubr.f32.mxu0 0.0
  %560 = vmatmul.mubr.f32.gmra.mrb[0].mxu0 %v419
  %v561 = vpop.f32.mrb[0].mxu0
  %v562 = vadd.f32 %v88, %v561
  %v563 = vpop.f32.mrb[0].mxu0
  %564 = vdwg.mxu0
  %v565 = vadd.f32 %v421, %v491
  %v566 = vxor.u32 %v565, 2147483648
  %v567 = vmul.f32 %v566, 1.442695
  %v568 = vpow.pop %v567
  %v569 = vadd.f32 %v568, 1.0
  %v570 = vrcp.pop %v569
  %v571 = vmul.f32 1.0, %v570
  %v572 = vadd.f32 %v422, %v493
  %v573 = vxor.u32 %v572, 2147483648
  %v574 = vmul.f32 %v573, 1.442695
  %v575 = vpow.pop %v574
  %v576 = vadd.f32 %v575, 1.0
  %v577 = vrcp.pop %v576
  %v578 = vmul.f32 1.0, %v577
  %v579 = vmul.f32 %v571, %v562
  %v580 = vadd.f32 %v423, %v579
  %v581 = vtanh.pop %v580
  %v582 = vsub.f32 1.0, %v578
  %v583 = vmul.f32 %v582, %v581
  %v584 = vmul.f32 %v578, %v419
  %v585 = vadd.f32 %v583, %v584
  %s586 = scalar_lea.vmem %s0, 72
  %v587 = vld [vmem:[%s586] sm:$0xff]
  %v588 = vld [vmem:[%s586 + $0x8] sm:$0xff]
  %v589 = vld [vmem:[%s586 + $0x10] sm:$0xff]
  %590 = vmatprep.subr.mxu0 %v28
  %591 = vmatpush1.msra.mxu0 %v27
  %592 = vmatprep.subr.mxu0 %v31
  %593 = vmatpush1.msra.mxu0 %v30
  %594 = vmatprep.subr.mxu0 %v34
  %595 = vmatpush1.msra.mxu0 %v33
  %596 = vmatprep.subr.mxu0 %v37
  %597 = vmatpush1.msra.mxu0 %v36
  %598 = vmatprep.subr.mxu0 %v40
  %599 = vmatpush1.msra.mxu0 %v39
  %600 = vmatprep.subr.mxu0 %v43
  %601 = vmatpush1.msra.mxu0 %v42
  %602 = vmatprep.subr.mxu0 %v46
  %603 = vmatpush1.msra.mxu0 %v45
  %604 = vmatprep.subr.mxu0 %v49
  %605 = vmatpush1.msra.mxu0 %v48
  %606 = vmatprep.subr.mxu0 %v52
  %607 = vmatpush1.msra.mxu0 %v51
  %608 = vmatprep.subr.mxu0 %v55
  %609 = vmatpush1.msra.mxu0 %v54
  %610 = vmatprep.subr.mxu0 %v58
  %611 = vmatpush1.msra.mxu0 %v57
  %612 = vmatprep.subr.mxu0 %v61
  %613 = vmatpush1.msra.mxu0 %v60
  %614 = vmatprep.subr.mxu0 %v64
  %615 = vmatpush1.msra.mxu0 %v63
  %616 = vmatprep.subr.mxu0 %v67
  %617 = vmatpush1.msra.mxu0 %v66
  %618 = vmatprep.subr.mxu0 %v70
  %619 = vmatpush1.msra.mxu0 %v69
  %620 = vmatprep.subr.mxu0 %v73
  %621 = vmatpush1.msra.mxu0 %v72
  %622 = vmatprep.subr.mxu0 0.0
  %623 = vmatpush1.msra.mxu0 0.0
  %624 = vmatprep.subr.mxu0 0.0
  %625 = vmatpush1.msra.mxu0 0.0
  %626 = vmatprep.subr.mxu0 0.0
  %627 = vmatpush1.msra.mxu0 0.0
  %628 = vmatprep.subr.mxu0 0.0
  %629 = vmatpush1.msra.mxu0 0.0
  %630 = vmatprep.subr.mxu0 0.0
  %631 = vmatpush1.msra.mxu0 0.0
  %632 = vmatprep.subr.mxu0 0.0
  %633 = vmatpush1.msra.mxu0 0.0
  %634 = vmatprep.subr.mxu0 0.0
  %635 = vmatpush1.msra.mxu0 0.0
  %636 = vmatprep.subr.mxu0 0.0
  %637 = vmatpush1.msra.mxu0 0.0
  %638 = vmatprep.subr.mxu0 0.0
  %639 = vmatpush1.msra.mxu0 0.0
  %640 = vmatprep.subr.mxu0 0.0
  %641 = vmatpush1.msra.mxu0 0.0
  %642 = vmatprep.subr.mxu0 0.0
  %643 = vmatpush1.msra.mxu0 0.0
  %644 = vmatprep.subr.mxu0 0.0
  %645 = vmatpush1.msra.mxu0 0.0
  %646 = vmatprep.subr.mxu0 0.0
  %647 = vmatpush1.msra.mxu0 0.0
  %648 = vmatprep.subr.mxu0 0.0
  %649 = vmatpush1.msra.mxu0 0.0
  %650 = vmatprep.subr.mxu0 0.0
  %651 = vmatpush1.msra.mxu0 0.0
  %652 = vmatprep.subr.mxu0 0.0
  %653 = vmatpush1.msra.mxu0 0.0
  %654 = vmatprep.mubr.f32.mxu0 0.0
  %655 = vmatmul.mubr.f32.gmra.mrb[0].mxu0 %v585
  %v656 = vpop.f32.mrb[0].mxu0
  %v657 = vadd.f32 %v80, %v656
  %v658 = vpop.f32.mrb[0].mxu0
  %v659 = vadd.f32 %v84, %v658
  %660 = vdwg.mxu0
  %661 = vmatprep.subr.mxu0 0.0
  %662 = vmatpush1.msra.mxu0 %v29
  %663 = vmatprep.subr.mxu0 0.0
  %664 = vmatpush1.msra.mxu0 %v32
  %665 = vmatprep.subr.mxu0 0.0
  %666 = vmatpush1.msra.mxu0 %v35
  %667 = vmatprep.subr.mxu0 0.0
  %668 = vmatpush1.msra.mxu0 %v38
  %669 = vmatprep.subr.mxu0 0.0
  %670 = vmatpush1.msra.mxu0 %v41
  %671 = vmatprep.subr.mxu0 0.0
  %672 = vmatpush1.msra.mxu0 %v44
  %673 = vmatprep.subr.mxu0 0.0
  %674 = vmatpush1.msra.mxu0 %v47
  %675 = vmatprep.subr.mxu0 0.0
  %676 = vmatpush1.msra.mxu0 %v50
  %677 = vmatprep.subr.mxu0 0.0
  %678 = vmatpush1.msra.mxu0 %v53
  %679 = vmatprep.subr.mxu0 0.0
  %680 = vmatpush1.msra.mxu0 %v56
  %681 = vmatprep.subr.mxu0 0.0
  %682 = vmatpush1.msra.mxu0 %v59
  %683 = vmatprep.subr.mxu0 0.0
  %684 = vmatpush1.msra.mxu0 %v62
  %685 = vmatprep.subr.mxu0 0.0
  %686 = vmatpush1.msra.mxu0 %v65
  %687 = vmatprep.subr.mxu0 0.0
  %688 = vmatpush1.msra.mxu0 %v68
  %689 = vmatprep.subr.mxu0 0.0
  %690 = vmatpush1.msra.mxu0 %v71
  %691 = vmatprep.subr.mxu0 0.0
  %692 = vmatpush1.msra.mxu0 %v74
  %693 = vmatprep.subr.mxu0 0.0
  %694 = vmatpush1.msra.mxu0 0.0
  %695 = vmatprep.subr.mxu0 0.0
  %696 = vmatpush1.msra.mxu0 0.0
  %697 = vmatprep.subr.mxu0 0.0
  %698 = vmatpush1.msra.mxu0 0.0
  %699 = vmatprep.subr.mxu0 0.0
  %700 = vmatpush1.msra.mxu0 0.0
  %701 = vmatprep.subr.mxu0 0.0
  %702 = vmatpush1.msra.mxu0 0.0
  %703 = vmatprep.subr.mxu0 0.0
  %704 = vmatpush1.msra.mxu0 0.0
  %705 = vmatprep.subr.mxu0 0.0
  %706 = vmatpush1.msra.mxu0 0.0
  %707 = vmatprep.subr.mxu0 0.0
  %708 = vmatpush1.msra.mxu0 0.0
  %709 = vmatprep.subr.mxu0 0.0
  %710 = vmatpush1.msra.mxu0 0.0
  %711 = vmatprep.subr.mxu0 0.0
  %712 = vmatpush1.msra.mxu0 0.0
  %713 = vmatprep.subr.mxu0 0.0
  %714 = vmatpush1.msra.mxu0 0.0
  %715 = vmatprep.subr.mxu0 0.0
  %716 = vmatpush1.msra.mxu0 0.0
  %717 = vmatprep.subr.mxu0 0.0
  %718 = vmatpush1.msra.mxu0 0.0
  %719 = vmatprep.subr.mxu0 0.0
  %720 = vmatpush1.msra.mxu0 0.0
  %721 = vmatprep.subr.mxu0 0.0
  %722 = vmatpush1.msra.mxu0 0.0
  %723 = vmatprep.subr.mxu0 0.0
  %724 = vmatpush1.msra.mxu0 0.0
  %725 = vmatprep.mubr.f32.mxu0 0.0
  %726 = vmatmul.mubr.f32.gmra.mrb[0].mxu0 %v585
  %v727 = vpop.f32.mrb[0].mxu0
  %v728 = vadd.f32 %v88, %v727
  %v729 = vpop.f32.mrb[0].mxu0
  %730 = vdwg.mxu0
  %v731 = vadd.f32 %v587, %v657
  %v732 = vxor.u32 %v731, 2147483648
  %v733 = vmul.f32 %v732, 1.442695
  %v734 = vpow.pop %v733
  %v735 = vadd.f32 %v734, 1.0
  %v736 = vrcp.pop %v735
  %v737 = vmul.f32 1.0, %v736
  %v738 = vadd.f32 %v588, %v659
  %v739 = vxor.u32 %v738, 2147483648
  %v740 = vmul.f32 %v739, 1.442695
  %v741 = vpow.pop %v740
  %v742 = vadd.f32 %v741, 1.0
  %v743 = vrcp.pop %v742
  %v744 = vmul.f32 1.0, %v743
  %v745 = vmul.f32 %v737, %v728
  %v746 = vadd.f32 %v589, %v745
  %v747 = vtanh.pop %v746
  %v748 = vsub.f32 1.0, %v744
  %v749 = vmul.f32 %v748, %v747
  %v750 = vmul.f32 %v744, %v585
  %v751 = vadd.f32 %v749, %v750
  %s752 = scalar_lea.vmem %s0, 96
  %v753 = vld [vmem:[%s752] sm:$0xff]
  %v754 = vld [vmem:[%s752 + $0x8] sm:$0xff]
  %v755 = vld [vmem:[%s752 + $0x10] sm:$0xff]
  %756 = vmatprep.subr.mxu0 %v28
  %757 = vmatpush1.msra.mxu0 %v27
  %758 = vmatprep.subr.mxu0 %v31
  %759 = vmatpush1.msra.mxu0 %v30
  %760 = vmatprep.subr.mxu0 %v34
  %761 = vmatpush1.msra.mxu0 %v33
  %762 = vmatprep.subr.mxu0 %v37
  %763 = vmatpush1.msra.mxu0 %v36
  %764 = vmatprep.subr.mxu0 %v40
  %765 = vmatpush1.msra.mxu0 %v39
  %766 = vmatprep.subr.mxu0 %v43
  %767 = vmatpush1.msra.mxu0 %v42
  %768 = vmatprep.subr.mxu0 %v46
  %769 = vmatpush1.msra.mxu0 %v45
  %770 = vmatprep.subr.mxu0 %v49
  %771 = vmatpush1.msra.mxu0 %v48
  %772 = vmatprep.subr.mxu0 %v52
  %773 = vmatpush1.msra.mxu0 %v51
  %774 = vmatprep.subr.mxu0 %v55
  %775 = vmatpush1.msra.mxu0 %v54
  %776 = vmatprep.subr.mxu0 %v58
  %777 = vmatpush1.msra.mxu0 %v57
  %778 = vmatprep.subr.mxu0 %v61
  %779 = vmatpush1.msra.mxu0 %v60
  %780 = vmatprep.subr.mxu0 %v64
  %781 = vmatpush1.msra.mxu0 %v63
  %782 = vmatprep.subr.mxu0 %v67
  %783 = vmatpush1.msra.mxu0 %v66
  %784 = vmatprep.subr.mxu0 %v70
  %785 = vmatpush1.msra.mxu0 %v69
  %786 = vmatprep.subr.mxu0 %v73
  %787 = vmatpush1.msra.mxu0 %v72
  %788 = vmatprep.subr.mxu0 0.0
  %789 = vmatpush1.msra.mxu0 0.0
  %790 = vmatprep.subr.mxu0 0.0
  %791 = vmatpush1.msra.mxu0 0.0
  %792 = vmatprep.subr.mxu0 0.0
  %793 = vmatpush1.msra.mxu0 0.0
  %794 = vmatprep.subr.mxu0 0.0
  %795 = vmatpush1.msra.mxu0 0.0
  %796 = vmatprep.subr.mxu0 0.0
  %797 = vmatpush1.msra.mxu0 0.0
  %798 = vmatprep.subr.mxu0 0.0
  %799 = vmatpush1.msra.mxu0 0.0
  %800 = vmatprep.subr.mxu0 0.0
  %801 = vmatpush1.msra.mxu0 0.0
  %802 = vmatprep.subr.mxu0 0.0
  %803 = vmatpush1.msra.mxu0 0.0
  %804 = vmatprep.subr.mxu0 0.0
  %805 = vmatpush1.msra.mxu0 0.0
  %806 = vmatprep.subr.mxu0 0.0
  %807 = vmatpush1.msra.mxu0 0.0
  %808 = vmatprep.subr.mxu0 0.0
  %809 = vmatpush1.msra.mxu0 0.0
  %810 = vmatprep.subr.mxu0 0.0
  %811 = vmatpush1.msra.mxu0 0.0
  %812 = vmatprep.subr.mxu0 0.0
  %813 = vmatpush1.msra.mxu0 0.0
  %814 = vmatprep.subr.mxu0 0.0
  %815 = vmatpush1.msra.mxu0 0.0
  %816 = vmatprep.subr.mxu0 0.0
  %817 = vmatpush1.msra.mxu0 0.0
  %818 = vmatprep.subr.mxu0 0.0
  %819 = vmatpush1.msra.mxu0 0.0
  %820 = vmatprep.mubr.f32.mxu0 0.0
  %821 = vmatmul.mubr.f32.gmra.mrb[0].mxu0 %v751
  %v822 = vpop.f32.mrb[0].mxu0
  %v823 = vadd.f32 %v80, %v822
  %v824 = vpop.f32.mrb[0].mxu0
  %v825 = vadd.f32 %v84, %v824
  %826 = vdwg.mxu0
  %827 = vmatprep.subr.mxu0 0.0
  %828 = vmatpush1.msra.mxu0 %v29
  %829 = vmatprep.subr.mxu0 0.0
  %830 = vmatpush1.msra.mxu0 %v32
  %831 = vmatprep.subr.mxu0 0.0
  %832 = vmatpush1.msra.mxu0 %v35
  %833 = vmatprep.subr.mxu0 0.0
  %834 = vmatpush1.msra.mxu0 %v38
  %835 = vmatprep.subr.mxu0 0.0
  %836 = vmatpush1.msra.mxu0 %v41
  %837 = vmatprep.subr.mxu0 0.0
  %838 = vmatpush1.msra.mxu0 %v44
  %839 = vmatprep.subr.mxu0 0.0
  %840 = vmatpush1.msra.mxu0 %v47
  %841 = vmatprep.subr.mxu0 0.0
  %842 = vmatpush1.msra.mxu0 %v50
  %843 = vmatprep.subr.mxu0 0.0
  %844 = vmatpush1.msra.mxu0 %v53
  %845 = vmatprep.subr.mxu0 0.0
  %846 = vmatpush1.msra.mxu0 %v56
  %847 = vmatprep.subr.mxu0 0.0
  %848 = vmatpush1.msra.mxu0 %v59
  %849 = vmatprep.subr.mxu0 0.0
  %850 = vmatpush1.msra.mxu0 %v62
  %851 = vmatprep.subr.mxu0 0.0
  %852 = vmatpush1.msra.mxu0 %v65
  %853 = vmatprep.subr.mxu0 0.0
  %854 = vmatpush1.msra.mxu0 %v68
  %855 = vmatprep.subr.mxu0 0.0
  %856 = vmatpush1.msra.mxu0 %v71
  %857 = vmatprep.subr.mxu0 0.0
  %858 = vmatpush1.msra.mxu0 %v74
  %859 = vmatprep.subr.mxu0 0.0
  %860 = vmatpush1.msra.mxu0 0.0
  %861 = vmatprep.subr.mxu0 0.0
  %862 = vmatpush1.msra.mxu0 0.0
  %863 = vmatprep.subr.mxu0 0.0
  %864 = vmatpush1.msra.mxu0 0.0
  %865 = vmatprep.subr.mxu0 0.0
  %866 = vmatpush1.msra.mxu0 0.0
  %867 = vmatprep.subr.mxu0 0.0
  %868 = vmatpush1.msra.mxu0 0.0
  %869 = vmatprep.subr.mxu0 0.0
  %870 = vmatpush1.msra.mxu0 0.0
  %871 = vmatprep.subr.mxu0 0.0
  %872 = vmatpush1.msra.mxu0 0.0
  %873 = vmatprep.subr.mxu0 0.0
  %874 = vmatpush1.msra.mxu0 0.0
  %875 = vmatprep.subr.mxu0 0.0
  %876 = vmatpush1.msra.mxu0 0.0
  %877 = vmatprep.subr.mxu0 0.0
  %878 = vmatpush1.msra.mxu0 0.0
  %879 = vmatprep.subr.mxu0 0.0
  %880 = vmatpush1.msra.mxu0 0.0
  %881 = vmatprep.subr.mxu0 0.0
  %882 = vmatpush1.msra.mxu0 0.0
  %883 = vmatprep.subr.mxu0 0.0
  %884 = vmatpush1.msra.mxu0 0.0
  %885 = vmatprep.subr.mxu0 0.0
  %886 = vmatpush1.msra.mxu0 0.0
  %887 = vmatprep.subr.mxu0 0.0
  %888 = vmatpush1.msra.mxu0 0.0
  %889 = vmatprep.subr.mxu0 0.0
  %890 = vmatpush1.msra.mxu0 0.0
  %891 = vmatprep.mubr.f32.mxu0 0.0
  %892 = vmatmul.mubr.f32.gmra.mrb[0].mxu0 %v751
  %v893 = vpop.f32.mrb[0].mxu0
  %v894 = vadd.f32 %v88, %v893
  %v895 = vpop.f32.mrb[0].mxu0
  %896 = vdwg.mxu0
  %v897 = vadd.f32 %v753, %v823
  %v898 = vxor.u32 %v897, 2147483648
  %v899 = vmul.f32 %v898, 1.442695
  %v900 = vpow.pop %v899
  %v901 = vadd.f32 %v900, 1.0
  %v902 = vrcp.pop %v901
  %v903 = vmul.f32 1.0, %v902
  %v904 = vadd.f32 %v754, %v825
  %v905 = vxor.u32 %v904, 2147483648
  %v906 = vmul.f32 %v905, 1.442695
  %v907 = vpow.pop %v906
  %v908 = vadd.f32 %v907, 1.0
  %v909 = vrcp.pop %v908
  %v910 = vmul.f32 1.0, %v909
  %v911 = vmul.f32 %v903, %v894
  %v912 = vadd.f32 %v755, %v911
  %v913 = vtanh.pop %v912
  %v914 = vsub.f32 1.0, %v910
  %v915 = vmul.f32 %v914, %v913
  %v916 = vmul.f32 %v910, %v751
  %v917 = vadd.f32 %v915, %v916
  %s918 = scalar_lea.vmem %s0, 120
  %v919 = vld [vmem:[%s918] sm:$0xff]
  %v920 = vld [vmem:[%s918 + $0x8] sm:$0xff]
  %v921 = vld [vmem:[%s918 + $0x10] sm:$0xff]
  %922 = vmatprep.subr.mxu0 %v28
  %923 = vmatpush1.msra.mxu0 %v27
  %924 = vmatprep.subr.mxu0 %v31
  %925 = vmatpush1.msra.mxu0 %v30
  %926 = vmatprep.subr.mxu0 %v34
  %927 = vmatpush1.msra.mxu0 %v33
  %928 = vmatprep.subr.mxu0 %v37
  %929 = vmatpush1.msra.mxu0 %v36
  %930 = vmatprep.subr.mxu0 %v40
  %931 = vmatpush1.msra.mxu0 %v39
  %932 = vmatprep.subr.mxu0 %v43
  %933 = vmatpush1.msra.mxu0 %v42
  %934 = vmatprep.subr.mxu0 %v46
  %935 = vmatpush1.msra.mxu0 %v45
  %936 = vmatprep.subr.mxu0 %v49
  %937 = vmatpush1.msra.mxu0 %v48
  %938 = vmatprep.subr.mxu0 %v52
  %939 = vmatpush1.msra.mxu0 %v51
  %940 = vmatprep.subr.mxu0 %v55
  %941 = vmatpush1.msra.mxu0 %v54
  %942 = vmatprep.subr.mxu0 %v58
  %943 = vmatpush1.msra.mxu0 %v57
  %944 = vmatprep.subr.mxu0 %v61
  %945 = vmatpush1.msra.mxu0 %v60
  %946 = vmatprep.subr.mxu0 %v64
  %947 = vmatpush1.msra.mxu0 %v63
  %948 = vmatprep.subr.mxu0 %v67
  %949 = vmatpush1.msra.mxu0 %v66
  %950 = vmatprep.subr.mxu0 %v70
  %951 = vmatpush1.msra.mxu0 %v69
  %952 = vmatprep.subr.mxu0 %v73
  %953 = vmatpush1.msra.mxu0 %v72
  %954 = vmatprep.subr.mxu0 0.0
  %955 = vmatpush1.msra.mxu0 0.0
  %956 = vmatprep.subr.mxu0 0.0
  %957 = vmatpush1.msra.mxu0 0.0
  %958 = vmatprep.subr.mxu0 0.0
  %959 = vmatpush1.msra.mxu0 0.0
  %960 = vmatprep.subr.mxu0 0.0
  %961 = vmatpush1.msra.mxu0 0.0
  %962 = vmatprep.subr.mxu0 0.0
  %963 = vmatpush1.msra.mxu0 0.0
  %964 = vmatprep.subr.mxu0 0.0
  %965 = vmatpush1.msra.mxu0 0.0
  %966 = vmatprep.subr.mxu0 0.0
  %967 = vmatpush1.msra.mxu0 0.0
  %968 = vmatprep.subr.mxu0 0.0
  %969 = vmatpush1.msra.mxu0 0.0
  %970 = vmatprep.subr.mxu0 0.0
  %971 = vmatpush1.msra.mxu0 0.0
  %972 = vmatprep.subr.mxu0 0.0
  %973 = vmatpush1.msra.mxu0 0.0
  %974 = vmatprep.subr.mxu0 0.0
  %975 = vmatpush1.msra.mxu0 0.0
  %976 = vmatprep.subr.mxu0 0.0
  %977 = vmatpush1.msra.mxu0 0.0
  %978 = vmatprep.subr.mxu0 0.0
  %979 = vmatpush1.msra.mxu0 0.0
  %980 = vmatprep.subr.mxu0 0.0
  %981 = vmatpush1.msra.mxu0 0.0
  %982 = vmatprep.subr.mxu0 0.0
  %983 = vmatpush1.msra.mxu0 0.0
  %984 = vmatprep.subr.mxu0 0.0
  %985 = vmatpush1.msra.mxu0 0.0
  %986 = vmatprep.mubr.f32.mxu0 0.0
  %987 = vmatmul.mubr.f32.gmra.mrb[0].mxu0 %v917
  %v988 = vpop.f32.mrb[0].mxu0
  %v989 = vadd.f32 %v80, %v988
  %v990 = vpop.f32.mrb[0].mxu0
  %v991 = vadd.f32 %v84, %v990
  %992 = vdwg.mxu0
  %993 = vmatprep.subr.mxu0 0.0
  %994 = vmatpush1.msra.mxu0 %v29
  %995 = vmatprep.subr.mxu0 0.0
  %996 = vmatpush1.msra.mxu0 %v32
  %997 = vmatprep.subr.mxu0 0.0
  %998 = vmatpush1.msra.mxu0 %v35
  %999 = vmatprep.subr.mxu0 0.0
  %1000 = vmatpush1.msra.mxu0 %v38
  %1001 = vmatprep.subr.mxu0 0.0
  %1002 = vmatpush1.msra.mxu0 %v41
  %1003 = vmatprep.subr.mxu0 0.0
  %1004 = vmatpush1.msra.mxu0 %v44
  %1005 = vmatprep.subr.mxu0 0.0
  %1006 = vmatpush1.msra.mxu0 %v47
  %1007 = vmatprep.subr.mxu0 0.0
  %1008 = vmatpush1.msra.mxu0 %v50
  %1009 = vmatprep.subr.mxu0 0.0
  %1010 = vmatpush1.msra.mxu0 %v53
  %1011 = vmatprep.subr.mxu0 0.0
  %1012 = vmatpush1.msra.mxu0 %v56
  %1013 = vmatprep.subr.mxu0 0.0
  %1014 = vmatpush1.msra.mxu0 %v59
  %1015 = vmatprep.subr.mxu0 0.0
  %1016 = vmatpush1.msra.mxu0 %v62
  %1017 = vmatprep.subr.mxu0 0.0
  %1018 = vmatpush1.msra.mxu0 %v65
  %1019 = vmatprep.subr.mxu0 0.0
  %1020 = vmatpush1.msra.mxu0 %v68
  %1021 = vmatprep.subr.mxu0 0.0
  %1022 = vmatpush1.msra.mxu0 %v71
  %1023 = vmatprep.subr.mxu0 0.0
  %1024 = vmatpush1.msra.mxu0 %v74
  %1025 = vmatprep.subr.mxu0 0.0
  %1026 = vmatpush1.msra.mxu0 0.0
  %1027 = vmatprep.subr.mxu0 0.0
  %1028 = vmatpush1.msra.mxu0 0.0
  %1029 = vmatprep.subr.mxu0 0.0
  %1030 = vmatpush1.msra.mxu0 0.0
  %1031 = vmatprep.subr.mxu0 0.0
  %1032 = vmatpush1.msra.mxu0 0.0
  %1033 = vmatprep.subr.mxu0 0.0
  %1034 = vmatpush1.msra.mxu0 0.0
  %1035 = vmatprep.subr.mxu0 0.0
  %1036 = vmatpush1.msra.mxu0 0.0
  %1037 = vmatprep.subr.mxu0 0.0
  %1038 = vmatpush1.msra.mxu0 0.0
  %1039 = vmatprep.subr.mxu0 0.0
  %1040 = vmatpush1.msra.mxu0 0.0
  %1041 = vmatprep.subr.mxu0 0.0
  %1042 = vmatpush1.msra.mxu0 0.0
  %1043 = vmatprep.subr.mxu0 0.0
  %1044 = vmatpush1.msra.mxu0 0.0
  %1045 = vmatprep.subr.mxu0 0.0
  %1046 = vmatpush1.msra.mxu0 0.0
  %1047 = vmatprep.subr.mxu0 0.0
  %1048 = vmatpush1.msra.mxu0 0.0
  %1049 = vmatprep.subr.mxu0 0.0
  %1050 = vmatpush1.msra.mxu0 0.0
  %1051 = vmatprep.subr.mxu0 0.0
  %1052 = vmatpush1.msra.mxu0 0.0
  %1053 = vmatprep.subr.mxu0 0.0
  %1054 = vmatpush1.msra.mxu0 0.0
  %1055 = vmatprep.subr.mxu0 0.0
  %1056 = vmatpush1.msra.mxu0 0.0
  %1057 = vmatprep.mubr.f32.mxu0 0.0
  %1058 = vmatmul.mubr.f32.gmra.mrb[0].mxu0 %v917
  %v1059 = vpop.f32.mrb[0].mxu0
  %v1060 = vadd.f32 %v88, %v1059
  %v1061 = vpop.f32.mrb[0].mxu0
  %1062 = vdwg.mxu0
  %v1063 = vadd.f32 %v919, %v989
  %v1064 = vxor.u32 %v1063, 2147483648
  %v1065 = vmul.f32 %v1064, 1.442695
  %v1066 = vpow.pop %v1065
  %v1067 = vadd.f32 %v1066, 1.0
  %v1068 = vrcp.pop %v1067
  %v1069 = vmul.f32 1.0, %v1068
  %v1070 = vadd.f32 %v920, %v991
  %v1071 = vxor.u32 %v1070, 2147483648
  %v1072 = vmul.f32 %v1071, 1.442695
  %v1073 = vpow.pop %v1072
  %v1074 = vadd.f32 %v1073, 1.0
  %v1075 = vrcp.pop %v1074
  %v1076 = vmul.f32 1.0, %v1075
  %v1077 = vmul.f32 %v1069, %v1060
  %v1078 = vadd.f32 %v921, %v1077
  %v1079 = vtanh.pop %v1078
  %v1080 = vsub.f32 1.0, %v1076
  %v1081 = vmul.f32 %v1080, %v1079
  %v1082 = vmul.f32 %v1076, %v917
  %v1083 = vadd.f32 %v1081, %v1082
  %s1084 = scalar_lea.vmem %s0, 144
  %v1085 = vld [vmem:[%s1084] sm:$0xff]
  %v1086 = vld [vmem:[%s1084 + $0x8] sm:$0xff]
  %v1087 = vld [vmem:[%s1084 + $0x10] sm:$0xff]
  %1088 = vmatprep.subr.mxu0 %v28
  %1089 = vmatpush1.msra.mxu0 %v27
  %1090 = vmatprep.subr.mxu0 %v31
  %1091 = vmatpush1.msra.mxu0 %v30
  %1092 = vmatprep.subr.mxu0 %v34
  %1093 = vmatpush1.msra.mxu0 %v33
  %1094 = vmatprep.subr.mxu0 %v37
  %1095 = vmatpush1.msra.mxu0 %v36
  %1096 = vmatprep.subr.mxu0 %v40
  %1097 = vmatpush1.msra.mxu0 %v39
  %1098 = vmatprep.subr.mxu0 %v43
  %1099 = vmatpush1.msra.mxu0 %v42
  %1100 = vmatprep.subr.mxu0 %v46
  %1101 = vmatpush1.msra.mxu0 %v45
  %1102 = vmatprep.subr.mxu0 %v49
  %1103 = vmatpush1.msra.mxu0 %v48
  %1104 = vmatprep.subr.mxu0 %v52
  %1105 = vmatpush1.msra.mxu0 %v51
  %1106 = vmatprep.subr.mxu0 %v55
  %1107 = vmatpush1.msra.mxu0 %v54
  %1108 = vmatprep.subr.mxu0 %v58
  %1109 = vmatpush1.msra.mxu0 %v57
  %1110 = vmatprep.subr.mxu0 %v61
  %1111 = vmatpush1.msra.mxu0 %v60
  %1112 = vmatprep.subr.mxu0 %v64
  %1113 = vmatpush1.msra.mxu0 %v63
  %1114 = vmatprep.subr.mxu0 %v67
  %1115 = vmatpush1.msra.mxu0 %v66
  %1116 = vmatprep.subr.mxu0 %v70
  %1117 = vmatpush1.msra.mxu0 %v69
  %1118 = vmatprep.subr.mxu0 %v73
  %1119 = vmatpush1.msra.mxu0 %v72
  %1120 = vmatprep.subr.mxu0 0.0
  %1121 = vmatpush1.msra.mxu0 0.0
  %1122 = vmatprep.subr.mxu0 0.0
  %1123 = vmatpush1.msra.mxu0 0.0
  %1124 = vmatprep.subr.mxu0 0.0
  %1125 = vmatpush1.msra.mxu0 0.0
  %1126 = vmatprep.subr.mxu0 0.0
  %1127 = vmatpush1.msra.mxu0 0.0
  %1128 = vmatprep.subr.mxu0 0.0
  %1129 = vmatpush1.msra.mxu0 0.0
  %1130 = vmatprep.subr.mxu0 0.0
  %1131 = vmatpush1.msra.mxu0 0.0
  %1132 = vmatprep.subr.mxu0 0.0
  %1133 = vmatpush1.msra.mxu0 0.0
  %1134 = vmatprep.subr.mxu0 0.0
  %1135 = vmatpush1.msra.mxu0 0.0
  %1136 = vmatprep.subr.mxu0 0.0
  %1137 = vmatpush1.msra.mxu0 0.0
  %1138 = vmatprep.subr.mxu0 0.0
  %1139 = vmatpush1.msra.mxu0 0.0
  %1140 = vmatprep.subr.mxu0 0.0
  %1141 = vmatpush1.msra.mxu0 0.0
  %1142 = vmatprep.subr.mxu0 0.0
  %1143 = vmatpush1.msra.mxu0 0.0
  %1144 = vmatprep.subr.mxu0 0.0
  %1145 = vmatpush1.msra.mxu0 0.0
  %1146 = vmatprep.subr.mxu0 0.0
  %1147 = vmatpush1.msra.mxu0 0.0
  %1148 = vmatprep.subr.mxu0 0.0
  %1149 = vmatpush1.msra.mxu0 0.0
  %1150 = vmatprep.subr.mxu0 0.0
  %1151 = vmatpush1.msra.mxu0 0.0
  %1152 = vmatprep.mubr.f32.mxu0 0.0
  %1153 = vmatmul.mubr.f32.gmra.mrb[0].mxu0 %v1083
  %v1154 = vpop.f32.mrb[0].mxu0
  %v1155 = vadd.f32 %v80, %v1154
  %v1156 = vpop.f32.mrb[0].mxu0
  %v1157 = vadd.f32 %v84, %v1156
  %1158 = vdwg.mxu0
  %1159 = vmatprep.subr.mxu0 0.0
  %1160 = vmatpush1.msra.mxu0 %v29
  %1161 = vmatprep.subr.mxu0 0.0
  %1162 = vmatpush1.msra.mxu0 %v32
  %1163 = vmatprep.subr.mxu0 0.0
  %1164 = vmatpush1.msra.mxu0 %v35
  %1165 = vmatprep.subr.mxu0 0.0
  %1166 = vmatpush1.msra.mxu0 %v38
  %1167 = vmatprep.subr.mxu0 0.0
  %1168 = vmatpush1.msra.mxu0 %v41
  %1169 = vmatprep.subr.mxu0 0.0
  %1170 = vmatpush1.msra.mxu0 %v44
  %1171 = vmatprep.subr.mxu0 0.0
  %1172 = vmatpush1.msra.mxu0 %v47
  %1173 = vmatprep.subr.mxu0 0.0
  %1174 = vmatpush1.msra.mxu0 %v50
  %1175 = vmatprep.subr.mxu0 0.0
  %1176 = vmatpush1.msra.mxu0 %v53
  %1177 = vmatprep.subr.mxu0 0.0
  %1178 = vmatpush1.msra.mxu0 %v56
  %1179 = vmatprep.subr.mxu0 0.0
  %1180 = vmatpush1.msra.mxu0 %v59
  %1181 = vmatprep.subr.mxu0 0.0
  %1182 = vmatpush1.msra.mxu0 %v62
  %1183 = vmatprep.subr.mxu0 0.0
  %1184 = vmatpush1.msra.mxu0 %v65
  %1185 = vmatprep.subr.mxu0 0.0
  %1186 = vmatpush1.msra.mxu0 %v68
  %1187 = vmatprep.subr.mxu0 0.0
  %1188 = vmatpush1.msra.mxu0 %v71
  %1189 = vmatprep.subr.mxu0 0.0
  %1190 = vmatpush1.msra.mxu0 %v74
  %1191 = vmatprep.subr.mxu0 0.0
  %1192 = vmatpush1.msra.mxu0 0.0
  %1193 = vmatprep.subr.mxu0 0.0
  %1194 = vmatpush1.msra.mxu0 0.0
  %1195 = vmatprep.subr.mxu0 0.0
  %1196 = vmatpush1.msra.mxu0 0.0
  %1197 = vmatprep.subr.mxu0 0.0
  %1198 = vmatpush1.msra.mxu0 0.0
  %1199 = vmatprep.subr.mxu0 0.0
  %1200 = vmatpush1.msra.mxu0 0.0
  %1201 = vmatprep.subr.mxu0 0.0
  %1202 = vmatpush1.msra.mxu0 0.0
  %1203 = vmatprep.subr.mxu0 0.0
  %1204 = vmatpush1.msra.mxu0 0.0
  %1205 = vmatprep.subr.mxu0 0.0
  %1206 = vmatpush1.msra.mxu0 0.0
  %1207 = vmatprep.subr.mxu0 0.0
  %1208 = vmatpush1.msra.mxu0 0.0
  %1209 = vmatprep.subr.mxu0 0.0
  %1210 = vmatpush1.msra.mxu0 0.0
  %1211 = vmatprep.subr.mxu0 0.0
  %1212 = vmatpush1.msra.mxu0 0.0
  %1213 = vmatprep.subr.mxu0 0.0
  %1214 = vmatpush1.msra.mxu0 0.0
  %1215 = vmatprep.subr.mxu0 0.0
  %1216 = vmatpush1.msra.mxu0 0.0
  %1217 = vmatprep.subr.mxu0 0.0
  %1218 = vmatpush1.msra.mxu0 0.0
  %1219 = vmatprep.subr.mxu0 0.0
  %1220 = vmatpush1.msra.mxu0 0.0
  %1221 = vmatprep.subr.mxu0 0.0
  %1222 = vmatpush1.msra.mxu0 0.0
  %1223 = vmatprep.mubr.f32.mxu0 0.0
  %1224 = vmatmul.mubr.f32.gmra.mrb[0].mxu0 %v1083
  %v1225 = vpop.f32.mrb[0].mxu0
  %v1226 = vadd.f32 %v88, %v1225
  %v1227 = vpop.f32.mrb[0].mxu0
  %1228 = vdwg.mxu0
  %v1229 = vadd.f32 %v1085, %v1155
  %v1230 = vxor.u32 %v1229, 2147483648
  %v1231 = vmul.f32 %v1230, 1.442695
  %v1232 = vpow.pop %v1231
  %v1233 = vadd.f32 %v1232, 1.0
  %v1234 = vrcp.pop %v1233
  %v1235 = vmul.f32 1.0, %v1234
  %v1236 = vadd.f32 %v1086, %v1157
  %v1237 = vxor.u32 %v1236, 2147483648
  %v1238 = vmul.f32 %v1237, 1.442695
  %v1239 = vpow.pop %v1238
  %v1240 = vadd.f32 %v1239, 1.0
  %v1241 = vrcp.pop %v1240
  %v1242 = vmul.f32 1.0, %v1241
  %v1243 = vmul.f32 %v1235, %v1226
  %v1244 = vadd.f32 %v1087, %v1243
  %v1245 = vtanh.pop %v1244
  %v1246 = vsub.f32 1.0, %v1242
  %v1247 = vmul.f32 %v1246, %v1245
  %v1248 = vmul.f32 %v1242, %v1083
  %v1249 = vadd.f32 %v1247, %v1248
  %s1250 = scalar_lea.vmem %s0, 168
  %v1251 = vld [vmem:[%s1250] sm:$0xff]
  %v1252 = vld [vmem:[%s1250 + $0x8] sm:$0xff]
  %v1253 = vld [vmem:[%s1250 + $0x10] sm:$0xff]
  %1254 = vmatprep.subr.mxu0 %v28
  %1255 = vmatpush1.msra.mxu0 %v27
  %1256 = vmatprep.subr.mxu0 %v31
  %1257 = vmatpush1.msra.mxu0 %v30
  %1258 = vmatprep.subr.mxu0 %v34
  %1259 = vmatpush1.msra.mxu0 %v33
  %1260 = vmatprep.subr.mxu0 %v37
  %1261 = vmatpush1.msra.mxu0 %v36
  %1262 = vmatprep.subr.mxu0 %v40
  %1263 = vmatpush1.msra.mxu0 %v39
  %1264 = vmatprep.subr.mxu0 %v43
  %1265 = vmatpush1.msra.mxu0 %v42
  %1266 = vmatprep.subr.mxu0 %v46
  %1267 = vmatpush1.msra.mxu0 %v45
  %1268 = vmatprep.subr.mxu0 %v49
  %1269 = vmatpush1.msra.mxu0 %v48
  %1270 = vmatprep.subr.mxu0 %v52
  %1271 = vmatpush1.msra.mxu0 %v51
  %1272 = vmatprep.subr.mxu0 %v55
  %1273 = vmatpush1.msra.mxu0 %v54
  %1274 = vmatprep.subr.mxu0 %v58
  %1275 = vmatpush1.msra.mxu0 %v57
  %1276 = vmatprep.subr.mxu0 %v61
  %1277 = vmatpush1.msra.mxu0 %v60
  %1278 = vmatprep.subr.mxu0 %v64
  %1279 = vmatpush1.msra.mxu0 %v63
  %1280 = vmatprep.subr.mxu0 %v67
  %1281 = vmatpush1.msra.mxu0 %v66
  %1282 = vmatprep.subr.mxu0 %v70
  %1283 = vmatpush1.msra.mxu0 %v69
  %1284 = vmatprep.subr.mxu0 %v73
  %1285 = vmatpush1.msra.mxu0 %v72
  %1286 = vmatprep.subr.mxu0 0.0
  %1287 = vmatpush1.msra.mxu0 0.0
  %1288 = vmatprep.subr.mxu0 0.0
  %1289 = vmatpush1.msra.mxu0 0.0
  %1290 = vmatprep.subr.mxu0 0.0
  %1291 = vmatpush1.msra.mxu0 0.0
  %1292 = vmatprep.subr.mxu0 0.0
  %1293 = vmatpush1.msra.mxu0 0.0
  %1294 = vmatprep.subr.mxu0 0.0
  %1295 = vmatpush1.msra.mxu0 0.0
  %1296 = vmatprep.subr.mxu0 0.0
  %1297 = vmatpush1.msra.mxu0 0.0
  %1298 = vmatprep.subr.mxu0 0.0
  %1299 = vmatpush1.msra.mxu0 0.0
  %1300 = vmatprep.subr.mxu0 0.0
  %1301 = vmatpush1.msra.mxu0 0.0
  %1302 = vmatprep.subr.mxu0 0.0
  %1303 = vmatpush1.msra.mxu0 0.0
  %1304 = vmatprep.subr.mxu0 0.0
  %1305 = vmatpush1.msra.mxu0 0.0
  %1306 = vmatprep.subr.mxu0 0.0
  %1307 = vmatpush1.msra.mxu0 0.0
  %1308 = vmatprep.subr.mxu0 0.0
  %1309 = vmatpush1.msra.mxu0 0.0
  %1310 = vmatprep.subr.mxu0 0.0
  %1311 = vmatpush1.msra.mxu0 0.0
  %1312 = vmatprep.subr.mxu0 0.0
  %1313 = vmatpush1.msra.mxu0 0.0
  %1314 = vmatprep.subr.mxu0 0.0
  %1315 = vmatpush1.msra.mxu0 0.0
  %1316 = vmatprep.subr.mxu0 0.0
  %1317 = vmatpush1.msra.mxu0 0.0
  %1318 = vmatprep.mubr.f32.mxu0 0.0
  %1319 = vmatmul.mubr.f32.gmra.mrb[0].mxu0 %v1249
  %v1320 = vpop.f32.mrb[0].mxu0
  %v1321 = vadd.f32 %v80, %v1320
  %v1322 = vpop.f32.mrb[0].mxu0
  %v1323 = vadd.f32 %v84, %v1322
  %1324 = vdwg.mxu0
  %1325 = vmatprep.subr.mxu0 0.0
  %1326 = vmatpush1.msra.mxu0 %v29
  %1327 = vmatprep.subr.mxu0 0.0
  %1328 = vmatpush1.msra.mxu0 %v32
  %1329 = vmatprep.subr.mxu0 0.0
  %1330 = vmatpush1.msra.mxu0 %v35
  %1331 = vmatprep.subr.mxu0 0.0
  %1332 = vmatpush1.msra.mxu0 %v38
  %1333 = vmatprep.subr.mxu0 0.0
  %1334 = vmatpush1.msra.mxu0 %v41
  %1335 = vmatprep.subr.mxu0 0.0
  %1336 = vmatpush1.msra.mxu0 %v44
  %1337 = vmatprep.subr.mxu0 0.0
  %1338 = vmatpush1.msra.mxu0 %v47
  %1339 = vmatprep.subr.mxu0 0.0
  %1340 = vmatpush1.msra.mxu0 %v50
  %1341 = vmatprep.subr.mxu0 0.0
  %1342 = vmatpush1.msra.mxu0 %v53
  %1343 = vmatprep.subr.mxu0 0.0
  %1344 = vmatpush1.msra.mxu0 %v56
  %1345 = vmatprep.subr.mxu0 0.0
  %1346 = vmatpush1.msra.mxu0 %v59
  %1347 = vmatprep.subr.mxu0 0.0
  %1348 = vmatpush1.msra.mxu0 %v62
  %1349 = vmatprep.subr.mxu0 0.0
  %1350 = vmatpush1.msra.mxu0 %v65
  %1351 = vmatprep.subr.mxu0 0.0
  %1352 = vmatpush1.msra.mxu0 %v68
  %1353 = vmatprep.subr.mxu0 0.0
  %1354 = vmatpush1.msra.mxu0 %v71
  %1355 = vmatprep.subr.mxu0 0.0
  %1356 = vmatpush1.msra.mxu0 %v74
  %1357 = vmatprep.subr.mxu0 0.0
  %1358 = vmatpush1.msra.mxu0 0.0
  %1359 = vmatprep.subr.mxu0 0.0
  %1360 = vmatpush1.msra.mxu0 0.0
  %1361 = vmatprep.subr.mxu0 0.0
  %1362 = vmatpush1.msra.mxu0 0.0
  %1363 = vmatprep.subr.mxu0 0.0
  %1364 = vmatpush1.msra.mxu0 0.0
  %1365 = vmatprep.subr.mxu0 0.0
  %1366 = vmatpush1.msra.mxu0 0.0
  %1367 = vmatprep.subr.mxu0 0.0
  %1368 = vmatpush1.msra.mxu0 0.0
  %1369 = vmatprep.subr.mxu0 0.0
  %1370 = vmatpush1.msra.mxu0 0.0
  %1371 = vmatprep.subr.mxu0 0.0
  %1372 = vmatpush1.msra.mxu0 0.0
  %1373 = vmatprep.subr.mxu0 0.0
  %1374 = vmatpush1.msra.mxu0 0.0
  %1375 = vmatprep.subr.mxu0 0.0
  %1376 = vmatpush1.msra.mxu0 0.0
  %1377 = vmatprep.subr.mxu0 0.0
  %1378 = vmatpush1.msra.mxu0 0.0
  %1379 = vmatprep.subr.mxu0 0.0
  %1380 = vmatpush1.msra.mxu0 0.0
  %1381 = vmatprep.subr.mxu0 0.0
  %1382 = vmatpush1.msra.mxu0 0.0
  %1383 = vmatprep.subr.mxu0 0.0
  %1384 = vmatpush1.msra.mxu0 0.0
  %1385 = vmatprep.subr.mxu0 0.0
  %1386 = vmatpush1.msra.mxu0 0.0
  %1387 = vmatprep.subr.mxu0 0.0
  %1388 = vmatpush1.msra.mxu0 0.0
  %1389 = vmatprep.mubr.f32.mxu0 0.0
  %1390 = vmatmul.mubr.f32.gmra.mrb[0].mxu0 %v1249
  %v1391 = vpop.f32.mrb[0].mxu0
  %v1392 = vadd.f32 %v88, %v1391
  %v1393 = vpop.f32.mrb[0].mxu0
  %1394 = vdwg.mxu0
  %v1395 = vadd.f32 %v1251, %v1321
  %v1396 = vxor.u32 %v1395, 2147483648
  %v1397 = vmul.f32 %v1396, 1.442695
  %v1398 = vpow.pop %v1397
  %v1399 = vadd.f32 %v1398, 1.0
  %v1400 = vrcp.pop %v1399
  %v1401 = vmul.f32 1.0, %v1400
  %v1402 = vadd.f32 %v1252, %v1323
  %v1403 = vxor.u32 %v1402, 2147483648
  %v1404 = vmul.f32 %v1403, 1.442695
  %v1405 = vpow.pop %v1404
  %v1406 = vadd.f32 %v1405, 1.0
  %v1407 = vrcp.pop %v1406
  %v1408 = vmul.f32 1.0, %v1407
  %v1409 = vmul.f32 %v1401, %v1392
  %v1410 = vadd.f32 %v1253, %v1409
  %v1411 = vtanh.pop %v1410
  %v1412 = vsub.f32 1.0, %v1408
  %v1413 = vmul.f32 %v1412, %v1411
  %v1414 = vmul.f32 %v1408, %v1249
  %v1415 = vadd.f32 %v1413, %v1414
  %1416 = vst [vmem:[#allocation2] sm:$0xff] %v1415
  // Predicated region
  $region22: #{model_forward.8} parent=0 // pred_check
    %p1417 = pneg %p17
  $region23: #{model_forward.8} parent=0 // pred_check_branch
    %1419 = sbr.rel (%p1417) target = $region25
  $region24: #{model_forward.8} parent=0 // pred_region
    %1420 = vst [vmem:[%s4] sm:$0xff] %v1415
  $region25: #{model_forward.8} parent=0 // pred_fallthru
    _
  // Predicated region
  $region26: #{model_forward.8} parent=0 // pred_check
    _
  $region27: #{model_forward.8} parent=0 // pred_check_branch
    %1422 = sbr.rel (0) target = $region29
  $region28: #{model_forward.8} parent=0 // pred_region
    _
  $region29: #{model_forward.8} parent=0 // pred_fallthru
    _
  // Predicated region
  $region30: #{model_forward.8} parent=0 // pred_check
    _
  $region31: #{model_forward.8} parent=0 // pred_check_branch
    %1424 = sbr.rel (0) target = $region33
  $region32: #{model_forward.8} parent=0 // pred_region
    _
  $region33: #{model_forward.8} parent=0 // pred_fallthru
    _

// kernel: model_forward.9
$region0: #{model_forward.9}
  #allocation0 [shape = 'u32[]', space=smem, size = 0x4, offset = 0x4, fixed_abs, tag = 'smem constant byte address 0x4 - core index']
  #allocation1 [shape = 'u32[144,128]{1,0:T(1,128)}', space=vmem, size = 0x12000, scoped, tag = 'internal scratch']
  %s0 = inlined_call_operand.vmem [shape: f32[8,128], index: 0, kind: input, shape index: {}]
  %s1 = inlined_call_operand.vmem [shape: f32[128,128], index: 1, kind: input, shape index: {}]
  %s2 = inlined_call_operand.vmem [shape: f32[1,128], index: 2, kind: input, shape index: {}]
  %s3 = inlined_call_operand.vmem [shape: f32[8,128], index: 3, kind: output, shape index: {}]
  %s4 = sld [smem:[#allocation0]]
  $region22: #{model_forward.9} parent=0
    _
  %s6 = ssub.s32 1, %s4
  %s7 = scalar_select 0, %s6, %s4
  // Predicated region
  $region2: #{model_forward.9} parent=0 // pred_check
    _
  $region3: #{model_forward.9} parent=0 // pred_check_branch
    %9 = sbr.rel (0) target = $region5
  $region4: #{model_forward.9} parent=0 // pred_region
    _
  $region5: #{model_forward.9} parent=0 // pred_fallthru
    _
  // Predicated region
  $region6: #{model_forward.9} parent=0 // pred_check
    _
  $region7: #{model_forward.9} parent=0 // pred_check_branch
    %11 = sbr.rel (0) target = $region9
  $region8: #{model_forward.9} parent=0 // pred_region
    _
  $region9: #{model_forward.9} parent=0 // pred_fallthru
    _
  // Predicated region
  $region10: #{model_forward.9} parent=0 // pred_check
    _
  $region11: #{model_forward.9} parent=0 // pred_check_branch
    %13 = sbr.rel (0) target = $region13
  $region12: #{model_forward.9} parent=0 // pred_region
    _
  $region13: #{model_forward.9} parent=0 // pred_fallthru
    _
  %v14 = vld [vmem:[%s0] sm:$0xff]
  %v15 = vld [vmem:[%s1] sm:$0xff]
  %v16 = vld [vmem:[%s1 + $0x8] sm:$0xff]
  %v17 = vld [vmem:[%s1 + $0x10] sm:$0xff]
  %v18 = vld [vmem:[%s1 + $0x18] sm:$0xff]
  %v19 = vld [vmem:[%s1 + $0x20] sm:$0xff]
  %v20 = vld [vmem:[%s1 + $0x28] sm:$0xff]
  %v21 = vld [vmem:[%s1 + $0x30] sm:$0xff]
  %v22 = vld [vmem:[%s1 + $0x38] sm:$0xff]
  %v23 = vld [vmem:[%s1 + $0x40] sm:$0xff]
  %v24 = vld [vmem:[%s1 + $0x48] sm:$0xff]
  %v25 = vld [vmem:[%s1 + $0x50] sm:$0xff]
  %v26 = vld [vmem:[%s1 + $0x58] sm:$0xff]
  %v27 = vld [vmem:[%s1 + $0x60] sm:$0xff]
  %v28 = vld [vmem:[%s1 + $0x68] sm:$0xff]
  %v29 = vld [vmem:[%s1 + $0x70] sm:$0xff]
  %v30 = vld [vmem:[%s1 + $0x78] sm:$0xff]
  %v31 = vld [vmem:[%s2] sm:$0x1]
  %v33 = vlaneseq
  %v34 = vshrl.u32 %v33, 7
  %v35 = vsub.s32 0, %v34
  %v36 = vrot.slane %v31, %v35
  %38 = vmatprep.subr.mxu0 0.0
  %39 = vmatpush1.msra.mxu0 %v15
  %40 = vmatprep.subr.mxu0 0.0
  %41 = vmatpush1.msra.mxu0 %v16
  %42 = vmatprep.subr.mxu0 0.0
  %43 = vmatpush1.msra.mxu0 %v17
  %44 = vmatprep.subr.mxu0 0.0
  %45 = vmatpush1.msra.mxu0 %v18
  %46 = vmatprep.subr.mxu0 0.0
  %47 = vmatpush1.msra.mxu0 %v19
  %48 = vmatprep.subr.mxu0 0.0
  %49 = vmatpush1.msra.mxu0 %v20
  %50 = vmatprep.subr.mxu0 0.0
  %51 = vmatpush1.msra.mxu0 %v21
  %52 = vmatprep.subr.mxu0 0.0
  %53 = vmatpush1.msra.mxu0 %v22
  %54 = vmatprep.subr.mxu0 0.0
  %55 = vmatpush1.msra.mxu0 %v23
  %56 = vmatprep.subr.mxu0 0.0
  %57 = vmatpush1.msra.mxu0 %v24
  %58 = vmatprep.subr.mxu0 0.0
  %59 = vmatpush1.msra.mxu0 %v25
  %60 = vmatprep.subr.mxu0 0.0
  %61 = vmatpush1.msra.mxu0 %v26
  %62 = vmatprep.subr.mxu0 0.0
  %63 = vmatpush1.msra.mxu0 %v27
  %64 = vmatprep.subr.mxu0 0.0
  %65 = vmatpush1.msra.mxu0 %v28
  %66 = vmatprep.subr.mxu0 0.0
  %67 = vmatpush1.msra.mxu0 %v29
  %68 = vmatprep.subr.mxu0 0.0
  %69 = vmatpush1.msra.mxu0 %v30
  %70 = vmatprep.subr.mxu0 0.0
  %71 = vmatpush1.msra.mxu0 0.0
  %72 = vmatprep.subr.mxu0 0.0
  %73 = vmatpush1.msra.mxu0 0.0
  %74 = vmatprep.subr.mxu0 0.0
  %75 = vmatpush1.msra.mxu0 0.0
  %76 = vmatprep.subr.mxu0 0.0
  %77 = vmatpush1.msra.mxu0 0.0
  %78 = vmatprep.subr.mxu0 0.0
  %79 = vmatpush1.msra.mxu0 0.0
  %80 = vmatprep.subr.mxu0 0.0
  %81 = vmatpush1.msra.mxu0 0.0
  %82 = vmatprep.subr.mxu0 0.0
  %83 = vmatpush1.msra.mxu0 0.0
  %84 = vmatprep.subr.mxu0 0.0
  %85 = vmatpush1.msra.mxu0 0.0
  %86 = vmatprep.subr.mxu0 0.0
  %87 = vmatpush1.msra.mxu0 0.0
  %88 = vmatprep.subr.mxu0 0.0
  %89 = vmatpush1.msra.mxu0 0.0
  %90 = vmatprep.subr.mxu0 0.0
  %91 = vmatpush1.msra.mxu0 0.0
  %92 = vmatprep.subr.mxu0 0.0
  %93 = vmatpush1.msra.mxu0 0.0
  %94 = vmatprep.subr.mxu0 0.0
  %95 = vmatpush1.msra.mxu0 0.0
  %96 = vmatprep.subr.mxu0 0.0
  %97 = vmatpush1.msra.mxu0 0.0
  %98 = vmatprep.subr.mxu0 0.0
  %99 = vmatpush1.msra.mxu0 0.0
  %100 = vmatprep.subr.mxu0 0.0
  %101 = vmatpush1.msra.mxu0 0.0
  %102 = vmatprep.mubr.f32.mxu0 0.0
  %103 = vmatmul.mubr.f32.gmra.mrb[0].mxu0 %v14
  %v104 = vpop.f32.mrb[0].mxu0
  %v105 = vadd.f32 %v36, %v104
  %v106 = vpop.f32.mrb[0].mxu0
  %107 = vdwg.mxu0
  %108 = vst [vmem:[%s3] sm:$0xff] %v105
  // Predicated region
  $region14: #{model_forward.9} parent=0 // pred_check
    _
  $region15: #{model_forward.9} parent=0 // pred_check_branch
    %110 = sbr.rel (0) target = $region17
  $region16: #{model_forward.9} parent=0 // pred_region
    _
  $region17: #{model_forward.9} parent=0 // pred_fallthru
    _
  // Predicated region
  $region18: #{model_forward.9} parent=0 // pred_check
    _
  $region19: #{model_forward.9} parent=0 // pred_check_branch
    %112 = sbr.rel (0) target = $region21
  $region20: #{model_forward.9} parent=0 // pred_region
    _
  $region21: #{model_forward.9} parent=0 // pred_fallthru
    _

// kernel: model_forward.6
$region0: #{model_forward.6}
  #allocation0 [shape = 'u32[]', space=smem, size = 0x4, offset = 0x4, fixed_abs, tag = 'smem constant byte address 0x4 - core index']
  #allocation1 [shape = 'u32[144,128]{1,0:T(1,128)}', space=vmem, size = 0x12000, scoped, tag = 'internal scratch']
  #allocation2 [shape = 'f32[8,128]{1,0:T(8,128)}', space=vmem, size = 0x1000, scoped, tag = 'scratch operand']
  %s0 = inlined_call_operand.vmem [shape: f32[8,8,384], index: 0, kind: input, shape index: {}]
  %s1 = inlined_call_operand.vmem [shape: f32[128,384], index: 1, kind: input, shape index: {}]
  %s2 = inlined_call_operand.vmem [shape: f32[1,384], index: 2, kind: input, shape index: {}]
  %s3 = inlined_call_operand.vmem [shape: f32[8,128], index: 3, kind: input, shape index: {}]
  %s4 = inlined_call_operand.vmem [shape: f32[8,8,128], index: 4, kind: output, shape index: {0}]
  %s5 = inlined_call_operand.vmem [shape: f32[8,128], index: 5, kind: output, shape index: {1}]
  %6 = xla_tuple %s4, %s5
  %s7 = sld [smem:[#allocation0]]
  $region42: #{model_forward.6} parent=0
    _
  %s9 = ssub.s32 1, %s7
  %s10 = scalar_select 0, %s9, %s7
  // Predicated region
  $region2: #{model_forward.6} parent=0 // pred_check
    _
  $region3: #{model_forward.6} parent=0 // pred_check_branch
    %12 = sbr.rel (0) target = $region5
  $region4: #{model_forward.6} parent=0 // pred_region
    _
  $region5: #{model_forward.6} parent=0 // pred_fallthru
    _
  // Predicated region
  $region6: #{model_forward.6} parent=0 // pred_check
    _
  $region7: #{model_forward.6} parent=0 // pred_check_branch
    %14 = sbr.rel (0) target = $region9
  $region8: #{model_forward.6} parent=0 // pred_region
    _
  $region9: #{model_forward.6} parent=0 // pred_fallthru
    _
  // Predicated region
  $region10: #{model_forward.6} parent=0 // pred_check
    _
  $region11: #{model_forward.6} parent=0 // pred_check_branch
    %16 = sbr.rel (0) target = $region13
  $region12: #{model_forward.6} parent=0 // pred_region
    _
  $region13: #{model_forward.6} parent=0 // pred_fallthru
    _
  // Predicated region
  $region14: #{model_forward.6} parent=0 // pred_check
    _
  $region15: #{model_forward.6} parent=0 // pred_check_branch
    %18 = sbr.rel (0) target = $region17
  $region16: #{model_forward.6} parent=0 // pred_region
    _
  $region17: #{model_forward.6} parent=0 // pred_fallthru
    _
  %p19 = scmp.eq.s32.totalorder 0, 0
  // Predicated region
  $region18: #{model_forward.6} parent=0 // pred_check
    %p20 = pneg %p19
  $region19: #{model_forward.6} parent=0 // pred_check_branch
    %22 = sbr.rel (%p20) target = $region21
  $region20: #{model_forward.6} parent=0 // pred_region
    %v23 = vld [vmem:[%s3] sm:$0xff]
    %24 = vst [vmem:[#allocation2] sm:$0xff] %v23
  $region21: #{model_forward.6} parent=0 // pred_fallthru
    _
  %v25 = vld [vmem:[#allocation2] sm:$0xff]
  %v26 = vld [vmem:[%s0] sm:$0xff]
  %v27 = vld [vmem:[%s0 + $0x8] sm:$0xff]
  %v28 = vld [vmem:[%s0 + $0x10] sm:$0xff]
  %v29 = vld [vmem:[%s1] sm:$0xff]
  %v30 = vld [vmem:[%s1 + $0x8] sm:$0xff]
  %v31 = vld [vmem:[%s1 + $0x10] sm:$0xff]
  %v32 = vld [vmem:[%s1 + $0x18] sm:$0xff]
  %v33 = vld [vmem:[%s1 + $0x20] sm:$0xff]
  %v34 = vld [vmem:[%s1 + $0x28] sm:$0xff]
  %v35 = vld [vmem:[%s1 + $0x30] sm:$0xff]
  %v36 = vld [vmem:[%s1 + $0x38] sm:$0xff]
  %v37 = vld [vmem:[%s1 + $0x40] sm:$0xff]
  %v38 = vld [vmem:[%s1 + $0x48] sm:$0xff]
  %v39 = vld [vmem:[%s1 + $0x50] sm:$0xff]
  %v40 = vld [vmem:[%s1 + $0x58] sm:$0xff]
  %v41 = vld [vmem:[%s1 + $0x60] sm:$0xff]
  %v42 = vld [vmem:[%s1 + $0x68] sm:$0xff]
  %v43 = vld [vmem:[%s1 + $0x70] sm:$0xff]
  %v44 = vld [vmem:[%s1 + $0x78] sm:$0xff]
  %v45 = vld [vmem:[%s1 + $0x80] sm:$0xff]
  %v46 = vld [vmem:[%s1 + $0x88] sm:$0xff]
  %v47 = vld [vmem:[%s1 + $0x90] sm:$0xff]
  %v48 = vld [vmem:[%s1 + $0x98] sm:$0xff]
  %v49 = vld [vmem:[%s1 + $0xa0] sm:$0xff]
  %v50 = vld [vmem:[%s1 + $0xa8] sm:$0xff]
  %v51 = vld [vmem:[%s1 + $0xb0] sm:$0xff]
  %v52 = vld [vmem:[%s1 + $0xb8] sm:$0xff]
  %v53 = vld [vmem:[%s1 + $0xc0] sm:$0xff]
  %v54 = vld [vmem:[%s1 + $0xc8] sm:$0xff]
  %v55 = vld [vmem:[%s1 + $0xd0] sm:$0xff]
  %v56 = vld [vmem:[%s1 + $0xd8] sm:$0xff]
  %v57 = vld [vmem:[%s1 + $0xe0] sm:$0xff]
  %v58 = vld [vmem:[%s1 + $0xe8] sm:$0xff]
  %v59 = vld [vmem:[%s1 + $0xf0] sm:$0xff]
  %v60 = vld [vmem:[%s1 + $0xf8] sm:$0xff]
  %v61 = vld [vmem:[%s1 + $0x100] sm:$0xff]
  %v62 = vld [vmem:[%s1 + $0x108] sm:$0xff]
  %v63 = vld [vmem:[%s1 + $0x110] sm:$0xff]
  %v64 = vld [vmem:[%s1 + $0x118] sm:$0xff]
  %v65 = vld [vmem:[%s1 + $0x120] sm:$0xff]
  %v66 = vld [vmem:[%s1 + $0x128] sm:$0xff]
  %v67 = vld [vmem:[%s1 + $0x130] sm:$0xff]
  %v68 = vld [vmem:[%s1 + $0x138] sm:$0xff]
  %v69 = vld [vmem:[%s1 + $0x140] sm:$0xff]
  %v70 = vld [vmem:[%s1 + $0x148] sm:$0xff]
  %v71 = vld [vmem:[%s1 + $0x150] sm:$0xff]
  %v72 = vld [vmem:[%s1 + $0x158] sm:$0xff]
  %v73 = vld [vmem:[%s1 + $0x160] sm:$0xff]
  %v74 = vld [vmem:[%s1 + $0x168] sm:$0xff]
  %v75 = vld [vmem:[%s1 + $0x170] sm:$0xff]
  %v76 = vld [vmem:[%s1 + $0x178] sm:$0xff]
  %v77 = vld [vmem:[%s2] sm:$0x7]
  %v79 = vlaneseq
  %v80 = vshrl.u32 %v79, 7
  %v81 = vsub.s32 0, %v80
  %v82 = vrot.slane %v77, %v81
  %v83 = vlaneseq
  %v84 = vshrl.u32 %v83, 7
  %v85 = vsub.s32 1, %v84
  %v86 = vrot.slane %v77, %v85
  %v87 = vlaneseq
  %v88 = vshrl.u32 %v87, 7
  %v89 = vsub.s32 2, %v88
  %v90 = vrot.slane %v77, %v89
  %94 = vmatprep.subr.mxu0 %v30
  %95 = vmatpush1.msra.mxu0 %v29
  %96 = vmatprep.subr.mxu0 %v33
  %97 = vmatpush1.msra.mxu0 %v32
  %98 = vmatprep.subr.mxu0 %v36
  %99 = vmatpush1.msra.mxu0 %v35
  %100 = vmatprep.subr.mxu0 %v39
  %101 = vmatpush1.msra.mxu0 %v38
  %102 = vmatprep.subr.mxu0 %v42
  %103 = vmatpush1.msra.mxu0 %v41
  %104 = vmatprep.subr.mxu0 %v45
  %105 = vmatpush1.msra.mxu0 %v44
  %106 = vmatprep.subr.mxu0 %v48
  %107 = vmatpush1.msra.mxu0 %v47
  %108 = vmatprep.subr.mxu0 %v51
  %109 = vmatpush1.msra.mxu0 %v50
  %110 = vmatprep.subr.mxu0 %v54
  %111 = vmatpush1.msra.mxu0 %v53
  %112 = vmatprep.subr.mxu0 %v57
  %113 = vmatpush1.msra.mxu0 %v56
  %114 = vmatprep.subr.mxu0 %v60
  %115 = vmatpush1.msra.mxu0 %v59
  %116 = vmatprep.subr.mxu0 %v63
  %117 = vmatpush1.msra.mxu0 %v62
  %118 = vmatprep.subr.mxu0 %v66
  %119 = vmatpush1.msra.mxu0 %v65
  %120 = vmatprep.subr.mxu0 %v69
  %121 = vmatpush1.msra.mxu0 %v68
  %122 = vmatprep.subr.mxu0 %v72
  %123 = vmatpush1.msra.mxu0 %v71
  %124 = vmatprep.subr.mxu0 %v75
  %125 = vmatpush1.msra.mxu0 %v74
  %126 = vmatprep.subr.mxu0 0.0
  %127 = vmatpush1.msra.mxu0 0.0
  %128 = vmatprep.subr.mxu0 0.0
  %129 = vmatpush1.msra.mxu0 0.0
  %130 = vmatprep.subr.mxu0 0.0
  %131 = vmatpush1.msra.mxu0 0.0
  %132 = vmatprep.subr.mxu0 0.0
  %133 = vmatpush1.msra.mxu0 0.0
  %134 = vmatprep.subr.mxu0 0.0
  %135 = vmatpush1.msra.mxu0 0.0
  %136 = vmatprep.subr.mxu0 0.0
  %137 = vmatpush1.msra.mxu0 0.0
  %138 = vmatprep.subr.mxu0 0.0
  %139 = vmatpush1.msra.mxu0 0.0
  %140 = vmatprep.subr.mxu0 0.0
  %141 = vmatpush1.msra.mxu0 0.0
  %142 = vmatprep.subr.mxu0 0.0
  %143 = vmatpush1.msra.mxu0 0.0
  %144 = vmatprep.subr.mxu0 0.0
  %145 = vmatpush1.msra.mxu0 0.0
  %146 = vmatprep.subr.mxu0 0.0
  %147 = vmatpush1.msra.mxu0 0.0
  %148 = vmatprep.subr.mxu0 0.0
  %149 = vmatpush1.msra.mxu0 0.0
  %150 = vmatprep.subr.mxu0 0.0
  %151 = vmatpush1.msra.mxu0 0.0
  %152 = vmatprep.subr.mxu0 0.0
  %153 = vmatpush1.msra.mxu0 0.0
  %154 = vmatprep.subr.mxu0 0.0
  %155 = vmatpush1.msra.mxu0 0.0
  %156 = vmatprep.subr.mxu0 0.0
  %157 = vmatpush1.msra.mxu0 0.0
  %158 = vmatprep.mubr.f32.mxu0 0.0
  %159 = vmatmul.mubr.f32.gmra.mrb[0].mxu0 %v25
  %v160 = vpop.f32.mrb[0].mxu0
  %v161 = vadd.f32 %v82, %v160
  %v162 = vpop.f32.mrb[0].mxu0
  %v163 = vadd.f32 %v86, %v162
  %164 = vdwg.mxu0
  %165 = vmatprep.subr.mxu0 0.0
  %166 = vmatpush1.msra.mxu0 %v31
  %167 = vmatprep.subr.mxu0 0.0
  %168 = vmatpush1.msra.mxu0 %v34
  %169 = vmatprep.subr.mxu0 0.0
  %170 = vmatpush1.msra.mxu0 %v37
  %171 = vmatprep.subr.mxu0 0.0
  %172 = vmatpush1.msra.mxu0 %v40
  %173 = vmatprep.subr.mxu0 0.0
  %174 = vmatpush1.msra.mxu0 %v43
  %175 = vmatprep.subr.mxu0 0.0
  %176 = vmatpush1.msra.mxu0 %v46
  %177 = vmatprep.subr.mxu0 0.0
  %178 = vmatpush1.msra.mxu0 %v49
  %179 = vmatprep.subr.mxu0 0.0
  %180 = vmatpush1.msra.mxu0 %v52
  %181 = vmatprep.subr.mxu0 0.0
  %182 = vmatpush1.msra.mxu0 %v55
  %183 = vmatprep.subr.mxu0 0.0
  %184 = vmatpush1.msra.mxu0 %v58
  %185 = vmatprep.subr.mxu0 0.0
  %186 = vmatpush1.msra.mxu0 %v61
  %187 = vmatprep.subr.mxu0 0.0
  %188 = vmatpush1.msra.mxu0 %v64
  %189 = vmatprep.subr.mxu0 0.0
  %190 = vmatpush1.msra.mxu0 %v67
  %191 = vmatprep.subr.mxu0 0.0
  %192 = vmatpush1.msra.mxu0 %v70
  %193 = vmatprep.subr.mxu0 0.0
  %194 = vmatpush1.msra.mxu0 %v73
  %195 = vmatprep.subr.mxu0 0.0
  %196 = vmatpush1.msra.mxu0 %v76
  %197 = vmatprep.subr.mxu0 0.0
  %198 = vmatpush1.msra.mxu0 0.0
  %199 = vmatprep.subr.mxu0 0.0
  %200 = vmatpush1.msra.mxu0 0.0
  %201 = vmatprep.subr.mxu0 0.0
  %202 = vmatpush1.msra.mxu0 0.0
  %203 = vmatprep.subr.mxu0 0.0
  %204 = vmatpush1.msra.mxu0 0.0
  %205 = vmatprep.subr.mxu0 0.0
  %206 = vmatpush1.msra.mxu0 0.0
  %207 = vmatprep.subr.mxu0 0.0
  %208 = vmatpush1.msra.mxu0 0.0
  %209 = vmatprep.subr.mxu0 0.0
  %210 = vmatpush1.msra.mxu0 0.0
  %211 = vmatprep.subr.mxu0 0.0
  %212 = vmatpush1.msra.mxu0 0.0
  %213 = vmatprep.subr.mxu0 0.0
  %214 = vmatpush1.msra.mxu0 0.0
  %215 = vmatprep.subr.mxu0 0.0
  %216 = vmatpush1.msra.mxu0 0.0
  %217 = vmatprep.subr.mxu0 0.0
  %218 = vmatpush1.msra.mxu0 0.0
  %219 = vmatprep.subr.mxu0 0.0
  %220 = vmatpush1.msra.mxu0 0.0
  %221 = vmatprep.subr.mxu0 0.0
  %222 = vmatpush1.msra.mxu0 0.0
  %223 = vmatprep.subr.mxu0 0.0
  %224 = vmatpush1.msra.mxu0 0.0
  %225 = vmatprep.subr.mxu0 0.0
  %226 = vmatpush1.msra.mxu0 0.0
  %227 = vmatprep.subr.mxu0 0.0
  %228 = vmatpush1.msra.mxu0 0.0
  %229 = vmatprep.mubr.f32.mxu0 0.0
  %230 = vmatmul.mubr.f32.gmra.mrb[0].mxu0 %v25
  %v231 = vpop.f32.mrb[0].mxu0
  %v232 = vadd.f32 %v90, %v231
  %v233 = vpop.f32.mrb[0].mxu0
  %234 = vdwg.mxu0
  %v235 = vadd.f32 %v26, %v161
  %v236 = vxor.u32 %v235, 2147483648
  %v237 = vmul.f32 %v236, 1.442695
  %v238 = vpow.pop %v237
  %v239 = vadd.f32 %v238, 1.0
  %v240 = vrcp.pop %v239
  %v241 = vmul.f32 1.0, %v240
  %v242 = vadd.f32 %v27, %v163
  %v243 = vxor.u32 %v242, 2147483648
  %v244 = vmul.f32 %v243, 1.442695
  %v245 = vpow.pop %v244
  %v246 = vadd.f32 %v245, 1.0
  %v247 = vrcp.pop %v246
  %v248 = vmul.f32 1.0, %v247
  %v249 = vmul.f32 %v241, %v232
  %v250 = vadd.f32 %v28, %v249
  %v251 = vtanh.pop %v250
  %v252 = vsub.f32 1.0, %v248
  %v253 = vmul.f32 %v252, %v251
  %v254 = vmul.f32 %v248, %v25
  %v255 = vadd.f32 %v253, %v254
  %256 = vst [vmem:[%s4] sm:$0xff] %v255
  %s257 = scalar_lea.vmem %s0, 24
  %v258 = vld [vmem:[%s257] sm:$0xff]
  %v259 = vld [vmem:[%s257 + $0x8] sm:$0xff]
  %v260 = vld [vmem:[%s257 + $0x10] sm:$0xff]
  %v261 = vld [vmem:[%s1] sm:$0xff]
  %v262 = vld [vmem:[%s1 + $0x8] sm:$0xff]
  %v263 = vld [vmem:[%s1 + $0x10] sm:$0xff]
  %v264 = vld [vmem:[%s1 + $0x18] sm:$0xff]
  %v265 = vld [vmem:[%s1 + $0x20] sm:$0xff]
  %v266 = vld [vmem:[%s1 + $0x28] sm:$0xff]
  %v267 = vld [vmem:[%s1 + $0x30] sm:$0xff]
  %v268 = vld [vmem:[%s1 + $0x38] sm:$0xff]
  %v269 = vld [vmem:[%s1 + $0x40] sm:$0xff]
  %v270 = vld [vmem:[%s1 + $0x48] sm:$0xff]
  %v271 = vld [vmem:[%s1 + $0x50] sm:$0xff]
  %v272 = vld [vmem:[%s1 + $0x58] sm:$0xff]
  %v273 = vld [vmem:[%s1 + $0x60] sm:$0xff]
  %v274 = vld [vmem:[%s1 + $0x68] sm:$0xff]
  %v275 = vld [vmem:[%s1 + $0x70] sm:$0xff]
  %v276 = vld [vmem:[%s1 + $0x78] sm:$0xff]
  %v277 = vld [vmem:[%s1 + $0x80] sm:$0xff]
  %v278 = vld [vmem:[%s1 + $0x88] sm:$0xff]
  %v279 = vld [vmem:[%s1 + $0x90] sm:$0xff]
  %v280 = vld [vmem:[%s1 + $0x98] sm:$0xff]
  %v281 = vld [vmem:[%s1 + $0xa0] sm:$0xff]
  %v282 = vld [vmem:[%s1 + $0xa8] sm:$0xff]
  %v283 = vld [vmem:[%s1 + $0xb0] sm:$0xff]
  %v284 = vld [vmem:[%s1 + $0xb8] sm:$0xff]
  %v285 = vld [vmem:[%s1 + $0xc0] sm:$0xff]
  %v286 = vld [vmem:[%s1 + $0xc8] sm:$0xff]
  %v287 = vld [vmem:[%s1 + $0xd0] sm:$0xff]
  %v288 = vld [vmem:[%s1 + $0xd8] sm:$0xff]
  %v289 = vld [vmem:[%s1 + $0xe0] sm:$0xff]
  %v290 = vld [vmem:[%s1 + $0xe8] sm:$0xff]
  %v291 = vld [vmem:[%s1 + $0xf0] sm:$0xff]
  %v292 = vld [vmem:[%s1 + $0xf8] sm:$0xff]
  %v293 = vld [vmem:[%s1 + $0x100] sm:$0xff]
  %v294 = vld [vmem:[%s1 + $0x108] sm:$0xff]
  %v295 = vld [vmem:[%s1 + $0x110] sm:$0xff]
  %v296 = vld [vmem:[%s1 + $0x118] sm:$0xff]
  %v297 = vld [vmem:[%s1 + $0x120] sm:$0xff]
  %v298 = vld [vmem:[%s1 + $0x128] sm:$0xff]
  %v299 = vld [vmem:[%s1 + $0x130] sm:$0xff]
  %v300 = vld [vmem:[%s1 + $0x138] sm:$0xff]
  %v301 = vld [vmem:[%s1 + $0x140] sm:$0xff]
  %v302 = vld [vmem:[%s1 + $0x148] sm:$0xff]
  %v303 = vld [vmem:[%s1 + $0x150] sm:$0xff]
  %v304 = vld [vmem:[%s1 + $0x158] sm:$0xff]
  %v305 = vld [vmem:[%s1 + $0x160] sm:$0xff]
  %v306 = vld [vmem:[%s1 + $0x168] sm:$0xff]
  %v307 = vld [vmem:[%s1 + $0x170] sm:$0xff]
  %v308 = vld [vmem:[%s1 + $0x178] sm:$0xff]
  %v309 = vld [vmem:[%s2] sm:$0x7]
  %v311 = vlaneseq
  %v312 = vshrl.u32 %v311, 7
  %v313 = vsub.s32 0, %v312
  %v314 = vrot.slane %v309, %v313
  %v315 = vlaneseq
  %v316 = vshrl.u32 %v315, 7
  %v317 = vsub.s32 1, %v316
  %v318 = vrot.slane %v309, %v317
  %v319 = vlaneseq
  %v320 = vshrl.u32 %v319, 7
  %v321 = vsub.s32 2, %v320
  %v322 = vrot.slane %v309, %v321
  %326 = vmatprep.subr.mxu0 %v262
  %327 = vmatpush1.msra.mxu0 %v261
  %328 = vmatprep.subr.mxu0 %v265
  %329 = vmatpush1.msra.mxu0 %v264
  %330 = vmatprep.subr.mxu0 %v268
  %331 = vmatpush1.msra.mxu0 %v267
  %332 = vmatprep.subr.mxu0 %v271
  %333 = vmatpush1.msra.mxu0 %v270
  %334 = vmatprep.subr.mxu0 %v274
  %335 = vmatpush1.msra.mxu0 %v273
  %336 = vmatprep.subr.mxu0 %v277
  %337 = vmatpush1.msra.mxu0 %v276
  %338 = vmatprep.subr.mxu0 %v280
  %339 = vmatpush1.msra.mxu0 %v279
  %340 = vmatprep.subr.mxu0 %v283
  %341 = vmatpush1.msra.mxu0 %v282
  %342 = vmatprep.subr.mxu0 %v286
  %343 = vmatpush1.msra.mxu0 %v285
  %344 = vmatprep.subr.mxu0 %v289
  %345 = vmatpush1.msra.mxu0 %v288
  %346 = vmatprep.subr.mxu0 %v292
  %347 = vmatpush1.msra.mxu0 %v291
  %348 = vmatprep.subr.mxu0 %v295
  %349 = vmatpush1.msra.mxu0 %v294
  %350 = vmatprep.subr.mxu0 %v298
  %351 = vmatpush1.msra.mxu0 %v297
  %352 = vmatprep.subr.mxu0 %v301
  %353 = vmatpush1.msra.mxu0 %v300
  %354 = vmatprep.subr.mxu0 %v304
  %355 = vmatpush1.msra.mxu0 %v303
  %356 = vmatprep.subr.mxu0 %v307
  %357 = vmatpush1.msra.mxu0 %v306
  %358 = vmatprep.subr.mxu0 0.0
  %359 = vmatpush1.msra.mxu0 0.0
  %360 = vmatprep.subr.mxu0 0.0
  %361 = vmatpush1.msra.mxu0 0.0
  %362 = vmatprep.subr.mxu0 0.0
  %363 = vmatpush1.msra.mxu0 0.0
  %364 = vmatprep.subr.mxu0 0.0
  %365 = vmatpush1.msra.mxu0 0.0
  %366 = vmatprep.subr.mxu0 0.0
  %367 = vmatpush1.msra.mxu0 0.0
  %368 = vmatprep.subr.mxu0 0.0
  %369 = vmatpush1.msra.mxu0 0.0
  %370 = vmatprep.subr.mxu0 0.0
  %371 = vmatpush1.msra.mxu0 0.0
  %372 = vmatprep.subr.mxu0 0.0
  %373 = vmatpush1.msra.mxu0 0.0
  %374 = vmatprep.subr.mxu0 0.0
  %375 = vmatpush1.msra.mxu0 0.0
  %376 = vmatprep.subr.mxu0 0.0
  %377 = vmatpush1.msra.mxu0 0.0
  %378 = vmatprep.subr.mxu0 0.0
  %379 = vmatpush1.msra.mxu0 0.0
  %380 = vmatprep.subr.mxu0 0.0
  %381 = vmatpush1.msra.mxu0 0.0
  %382 = vmatprep.subr.mxu0 0.0
  %383 = vmatpush1.msra.mxu0 0.0
  %384 = vmatprep.subr.mxu0 0.0
  %385 = vmatpush1.msra.mxu0 0.0
  %386 = vmatprep.subr.mxu0 0.0
  %387 = vmatpush1.msra.mxu0 0.0
  %388 = vmatprep.subr.mxu0 0.0
  %389 = vmatpush1.msra.mxu0 0.0
  %390 = vmatprep.mubr.f32.mxu0 0.0
  %391 = vmatmul.mubr.f32.gmra.mrb[0].mxu0 %v255
  %v392 = vpop.f32.mrb[0].mxu0
  %v393 = vadd.f32 %v314, %v392
  %v394 = vpop.f32.mrb[0].mxu0
  %v395 = vadd.f32 %v318, %v394
  %396 = vdwg.mxu0
  %397 = vmatprep.subr.mxu0 0.0
  %398 = vmatpush1.msra.mxu0 %v263
  %399 = vmatprep.subr.mxu0 0.0
  %400 = vmatpush1.msra.mxu0 %v266
  %401 = vmatprep.subr.mxu0 0.0
  %402 = vmatpush1.msra.mxu0 %v269
  %403 = vmatprep.subr.mxu0 0.0
  %404 = vmatpush1.msra.mxu0 %v272
  %405 = vmatprep.subr.mxu0 0.0
  %406 = vmatpush1.msra.mxu0 %v275
  %407 = vmatprep.subr.mxu0 0.0
  %408 = vmatpush1.msra.mxu0 %v278
  %409 = vmatprep.subr.mxu0 0.0
  %410 = vmatpush1.msra.mxu0 %v281
  %411 = vmatprep.subr.mxu0 0.0
  %412 = vmatpush1.msra.mxu0 %v284
  %413 = vmatprep.subr.mxu0 0.0
  %414 = vmatpush1.msra.mxu0 %v287
  %415 = vmatprep.subr.mxu0 0.0
  %416 = vmatpush1.msra.mxu0 %v290
  %417 = vmatprep.subr.mxu0 0.0
  %418 = vmatpush1.msra.mxu0 %v293
  %419 = vmatprep.subr.mxu0 0.0
  %420 = vmatpush1.msra.mxu0 %v296
  %421 = vmatprep.subr.mxu0 0.0
  %422 = vmatpush1.msra.mxu0 %v299
  %423 = vmatprep.subr.mxu0 0.0
  %424 = vmatpush1.msra.mxu0 %v302
  %425 = vmatprep.subr.mxu0 0.0
  %426 = vmatpush1.msra.mxu0 %v305
  %427 = vmatprep.subr.mxu0 0.0
  %428 = vmatpush1.msra.mxu0 %v308
  %429 = vmatprep.subr.mxu0 0.0
  %430 = vmatpush1.msra.mxu0 0.0
  %431 = vmatprep.subr.mxu0 0.0
  %432 = vmatpush1.msra.mxu0 0.0
  %433 = vmatprep.subr.mxu0 0.0
  %434 = vmatpush1.msra.mxu0 0.0
  %435 = vmatprep.subr.mxu0 0.0
  %436 = vmatpush1.msra.mxu0 0.0
  %437 = vmatprep.subr.mxu0 0.0
  %438 = vmatpush1.msra.mxu0 0.0
  %439 = vmatprep.subr.mxu0 0.0
  %440 = vmatpush1.msra.mxu0 0.0
  %441 = vmatprep.subr.mxu0 0.0
  %442 = vmatpush1.msra.mxu0 0.0
  %443 = vmatprep.subr.mxu0 0.0
  %444 = vmatpush1.msra.mxu0 0.0
  %445 = vmatprep.subr.mxu0 0.0
  %446 = vmatpush1.msra.mxu0 0.0
  %447 = vmatprep.subr.mxu0 0.0
  %448 = vmatpush1.msra.mxu0 0.0
  %449 = vmatprep.subr.mxu0 0.0
  %450 = vmatpush1.msra.mxu0 0.0
  %451 = vmatprep.subr.mxu0 0.0
  %452 = vmatpush1.msra.mxu0 0.0
  %453 = vmatprep.subr.mxu0 0.0
  %454 = vmatpush1.msra.mxu0 0.0
  %455 = vmatprep.subr.mxu0 0.0
  %456 = vmatpush1.msra.mxu0 0.0
  %457 = vmatprep.subr.mxu0 0.0
  %458 = vmatpush1.msra.mxu0 0.0
  %459 = vmatprep.subr.mxu0 0.0
  %460 = vmatpush1.msra.mxu0 0.0
  %461 = vmatprep.mubr.f32.mxu0 0.0
  %462 = vmatmul.mubr.f32.gmra.mrb[0].mxu0 %v255
  %v463 = vpop.f32.mrb[0].mxu0
  %v464 = vadd.f32 %v322, %v463
  %v465 = vpop.f32.mrb[0].mxu0
  %466 = vdwg.mxu0
  %v467 = vadd.f32 %v258, %v393
  %v468 = vxor.u32 %v467, 2147483648
  %v469 = vmul.f32 %v468, 1.442695
  %v470 = vpow.pop %v469
  %v471 = vadd.f32 %v470, 1.0
  %v472 = vrcp.pop %v471
  %v473 = vmul.f32 1.0, %v472
  %v474 = vadd.f32 %v259, %v395
  %v475 = vxor.u32 %v474, 2147483648
  %v476 = vmul.f32 %v475, 1.442695
  %v477 = vpow.pop %v476
  %v478 = vadd.f32 %v477, 1.0
  %v479 = vrcp.pop %v478
  %v480 = vmul.f32 1.0, %v479
  %v481 = vmul.f32 %v473, %v464
  %v482 = vadd.f32 %v260, %v481
  %v483 = vtanh.pop %v482
  %v484 = vsub.f32 1.0, %v480
  %v485 = vmul.f32 %v484, %v483
  %v486 = vmul.f32 %v480, %v255
  %v487 = vadd.f32 %v485, %v486
  %s488 = scalar_lea.vmem %s4, 8
  %489 = vst [vmem:[%s488] sm:$0xff] %v487
  %s490 = scalar_lea.vmem %s0, 48
  %v491 = vld [vmem:[%s490] sm:$0xff]
  %v492 = vld [vmem:[%s490 + $0x8] sm:$0xff]
  %v493 = vld [vmem:[%s490 + $0x10] sm:$0xff]
  %v494 = vld [vmem:[%s1] sm:$0xff]
  %v495 = vld [vmem:[%s1 + $0x8] sm:$0xff]
  %v496 = vld [vmem:[%s1 + $0x10] sm:$0xff]
  %v497 = vld [vmem:[%s1 + $0x18] sm:$0xff]
  %v498 = vld [vmem:[%s1 + $0x20] sm:$0xff]
  %v499 = vld [vmem:[%s1 + $0x28] sm:$0xff]
  %v500 = vld [vmem:[%s1 + $0x30] sm:$0xff]
  %v501 = vld [vmem:[%s1 + $0x38] sm:$0xff]
  %v502 = vld [vmem:[%s1 + $0x40] sm:$0xff]
  %v503 = vld [vmem:[%s1 + $0x48] sm:$0xff]
  %v504 = vld [vmem:[%s1 + $0x50] sm:$0xff]
  %v505 = vld [vmem:[%s1 + $0x58] sm:$0xff]
  %v506 = vld [vmem:[%s1 + $0x60] sm:$0xff]
  %v507 = vld [vmem:[%s1 + $0x68] sm:$0xff]
  %v508 = vld [vmem:[%s1 + $0x70] sm:$0xff]
  %v509 = vld [vmem:[%s1 + $0x78] sm:$0xff]
  %v510 = vld [vmem:[%s1 + $0x80] sm:$0xff]
  %v511 = vld [vmem:[%s1 + $0x88] sm:$0xff]
  %v512 = vld [vmem:[%s1 + $0x90] sm:$0xff]
  %v513 = vld [vmem:[%s1 + $0x98] sm:$0xff]
  %v514 = vld [vmem:[%s1 + $0xa0] sm:$0xff]
  %v515 = vld [vmem:[%s1 + $0xa8] sm:$0xff]
  %v516 = vld [vmem:[%s1 + $0xb0] sm:$0xff]
  %v517 = vld [vmem:[%s1 + $0xb8] sm:$0xff]
  %v518 = vld [vmem:[%s1 + $0xc0] sm:$0xff]
  %v519 = vld [vmem:[%s1 + $0xc8] sm:$0xff]
  %v520 = vld [vmem:[%s1 + $0xd0] sm:$0xff]
  %v521 = vld [vmem:[%s1 + $0xd8] sm:$0xff]
  %v522 = vld [vmem:[%s1 + $0xe0] sm:$0xff]
  %v523 = vld [vmem:[%s1 + $0xe8] sm:$0xff]
  %v524 = vld [vmem:[%s1 + $0xf0] sm:$0xff]
  %v525 = vld [vmem:[%s1 + $0xf8] sm:$0xff]
  %v526 = vld [vmem:[%s1 + $0x100] sm:$0xff]
  %v527 = vld [vmem:[%s1 + $0x108] sm:$0xff]
  %v528 = vld [vmem:[%s1 + $0x110] sm:$0xff]
  %v529 = vld [vmem:[%s1 + $0x118] sm:$0xff]
  %v530 = vld [vmem:[%s1 + $0x120] sm:$0xff]
  %v531 = vld [vmem:[%s1 + $0x128] sm:$0xff]
  %v532 = vld [vmem:[%s1 + $0x130] sm:$0xff]
  %v533 = vld [vmem:[%s1 + $0x138] sm:$0xff]
  %v534 = vld [vmem:[%s1 + $0x140] sm:$0xff]
  %v535 = vld [vmem:[%s1 + $0x148] sm:$0xff]
  %v536 = vld [vmem:[%s1 + $0x150] sm:$0xff]
  %v537 = vld [vmem:[%s1 + $0x158] sm:$0xff]
  %v538 = vld [vmem:[%s1 + $0x160] sm:$0xff]
  %v539 = vld [vmem:[%s1 + $0x168] sm:$0xff]
  %v540 = vld [vmem:[%s1 + $0x170] sm:$0xff]
  %v541 = vld [vmem:[%s1 + $0x178] sm:$0xff]
  %v542 = vld [vmem:[%s2] sm:$0x7]
  %v544 = vlaneseq
  %v545 = vshrl.u32 %v544, 7
  %v546 = vsub.s32 0, %v545
  %v547 = vrot.slane %v542, %v546
  %v548 = vlaneseq
  %v549 = vshrl.u32 %v548, 7
  %v550 = vsub.s32 1, %v549
  %v551 = vrot.slane %v542, %v550
  %v552 = vlaneseq
  %v553 = vshrl.u32 %v552, 7
  %v554 = vsub.s32 2, %v553
  %v555 = vrot.slane %v542, %v554
  %559 = vmatprep.subr.mxu0 %v495
  %560 = vmatpush1.msra.mxu0 %v494
  %561 = vmatprep.subr.mxu0 %v498
  %562 = vmatpush1.msra.mxu0 %v497
  %563 = vmatprep.subr.mxu0 %v501
  %564 = vmatpush1.msra.mxu0 %v500
  %565 = vmatprep.subr.mxu0 %v504
  %566 = vmatpush1.msra.mxu0 %v503
  %567 = vmatprep.subr.mxu0 %v507
  %568 = vmatpush1.msra.mxu0 %v506
  %569 = vmatprep.subr.mxu0 %v510
  %570 = vmatpush1.msra.mxu0 %v509
  %571 = vmatprep.subr.mxu0 %v513
  %572 = vmatpush1.msra.mxu0 %v512
  %573 = vmatprep.subr.mxu0 %v516
  %574 = vmatpush1.msra.mxu0 %v515
  %575 = vmatprep.subr.mxu0 %v519
  %576 = vmatpush1.msra.mxu0 %v518
  %577 = vmatprep.subr.mxu0 %v522
  %578 = vmatpush1.msra.mxu0 %v521
  %579 = vmatprep.subr.mxu0 %v525
  %580 = vmatpush1.msra.mxu0 %v524
  %581 = vmatprep.subr.mxu0 %v528
  %582 = vmatpush1.msra.mxu0 %v527
  %583 = vmatprep.subr.mxu0 %v531
  %584 = vmatpush1.msra.mxu0 %v530
  %585 = vmatprep.subr.mxu0 %v534
  %586 = vmatpush1.msra.mxu0 %v533
  %587 = vmatprep.subr.mxu0 %v537
  %588 = vmatpush1.msra.mxu0 %v536
  %589 = vmatprep.subr.mxu0 %v540
  %590 = vmatpush1.msra.mxu0 %v539
  %591 = vmatprep.subr.mxu0 0.0
  %592 = vmatpush1.msra.mxu0 0.0
  %593 = vmatprep.subr.mxu0 0.0
  %594 = vmatpush1.msra.mxu0 0.0
  %595 = vmatprep.subr.mxu0 0.0
  %596 = vmatpush1.msra.mxu0 0.0
  %597 = vmatprep.subr.mxu0 0.0
  %598 = vmatpush1.msra.mxu0 0.0
  %599 = vmatprep.subr.mxu0 0.0
  %600 = vmatpush1.msra.mxu0 0.0
  %601 = vmatprep.subr.mxu0 0.0
  %602 = vmatpush1.msra.mxu0 0.0
  %603 = vmatprep.subr.mxu0 0.0
  %604 = vmatpush1.msra.mxu0 0.0
  %605 = vmatprep.subr.mxu0 0.0
  %606 = vmatpush1.msra.mxu0 0.0
  %607 = vmatprep.subr.mxu0 0.0
  %608 = vmatpush1.msra.mxu0 0.0
  %609 = vmatprep.subr.mxu0 0.0
  %610 = vmatpush1.msra.mxu0 0.0
  %611 = vmatprep.subr.mxu0 0.0
  %612 = vmatpush1.msra.mxu0 0.0
  %613 = vmatprep.subr.mxu0 0.0
  %614 = vmatpush1.msra.mxu0 0.0
  %615 = vmatprep.subr.mxu0 0.0
  %616 = vmatpush1.msra.mxu0 0.0
  %617 = vmatprep.subr.mxu0 0.0
  %618 = vmatpush1.msra.mxu0 0.0
  %619 = vmatprep.subr.mxu0 0.0
  %620 = vmatpush1.msra.mxu0 0.0
  %621 = vmatprep.subr.mxu0 0.0
  %622 = vmatpush1.msra.mxu0 0.0
  %623 = vmatprep.mubr.f32.mxu0 0.0
  %624 = vmatmul.mubr.f32.gmra.mrb[0].mxu0 %v487
  %v625 = vpop.f32.mrb[0].mxu0
  %v626 = vadd.f32 %v547, %v625
  %v627 = vpop.f32.mrb[0].mxu0
  %v628 = vadd.f32 %v551, %v627
  %629 = vdwg.mxu0
  %630 = vmatprep.subr.mxu0 0.0
  %631 = vmatpush1.msra.mxu0 %v496
  %632 = vmatprep.subr.mxu0 0.0
  %633 = vmatpush1.msra.mxu0 %v499
  %634 = vmatprep.subr.mxu0 0.0
  %635 = vmatpush1.msra.mxu0 %v502
  %636 = vmatprep.subr.mxu0 0.0
  %637 = vmatpush1.msra.mxu0 %v505
  %638 = vmatprep.subr.mxu0 0.0
  %639 = vmatpush1.msra.mxu0 %v508
  %640 = vmatprep.subr.mxu0 0.0
  %641 = vmatpush1.msra.mxu0 %v511
  %642 = vmatprep.subr.mxu0 0.0
  %643 = vmatpush1.msra.mxu0 %v514
  %644 = vmatprep.subr.mxu0 0.0
  %645 = vmatpush1.msra.mxu0 %v517
  %646 = vmatprep.subr.mxu0 0.0
  %647 = vmatpush1.msra.mxu0 %v520
  %648 = vmatprep.subr.mxu0 0.0
  %649 = vmatpush1.msra.mxu0 %v523
  %650 = vmatprep.subr.mxu0 0.0
  %651 = vmatpush1.msra.mxu0 %v526
  %652 = vmatprep.subr.mxu0 0.0
  %653 = vmatpush1.msra.mxu0 %v529
  %654 = vmatprep.subr.mxu0 0.0
  %655 = vmatpush1.msra.mxu0 %v532
  %656 = vmatprep.subr.mxu0 0.0
  %657 = vmatpush1.msra.mxu0 %v535
  %658 = vmatprep.subr.mxu0 0.0
  %659 = vmatpush1.msra.mxu0 %v538
  %660 = vmatprep.subr.mxu0 0.0
  %661 = vmatpush1.msra.mxu0 %v541
  %662 = vmatprep.subr.mxu0 0.0
  %663 = vmatpush1.msra.mxu0 0.0
  %664 = vmatprep.subr.mxu0 0.0
  %665 = vmatpush1.msra.mxu0 0.0
  %666 = vmatprep.subr.mxu0 0.0
  %667 = vmatpush1.msra.mxu0 0.0
  %668 = vmatprep.subr.mxu0 0.0
  %669 = vmatpush1.msra.mxu0 0.0
  %670 = vmatprep.subr.mxu0 0.0
  %671 = vmatpush1.msra.mxu0 0.0
  %672 = vmatprep.subr.mxu0 0.0
  %673 = vmatpush1.msra.mxu0 0.0
  %674 = vmatprep.subr.mxu0 0.0
  %675 = vmatpush1.msra.mxu0 0.0
  %676 = vmatprep.subr.mxu0 0.0
  %677 = vmatpush1.msra.mxu0 0.0
  %678 = vmatprep.subr.mxu0 0.0
  %679 = vmatpush1.msra.mxu0 0.0
  %680 = vmatprep.subr.mxu0 0.0
  %681 = vmatpush1.msra.mxu0 0.0
  %682 = vmatprep.subr.mxu0 0.0
  %683 = vmatpush1.msra.mxu0 0.0
  %684 = vmatprep.subr.mxu0 0.0
  %685 = vmatpush1.msra.mxu0 0.0
  %686 = vmatprep.subr.mxu0 0.0
  %687 = vmatpush1.msra.mxu0 0.0
  %688 = vmatprep.subr.mxu0 0.0
  %689 = vmatpush1.msra.mxu0 0.0
  %690 = vmatprep.subr.mxu0 0.0
  %691 = vmatpush1.msra.mxu0 0.0
  %692 = vmatprep.subr.mxu0 0.0
  %693 = vmatpush1.msra.mxu0 0.0
  %694 = vmatprep.mubr.f32.mxu0 0.0
  %695 = vmatmul.mubr.f32.gmra.mrb[0].mxu0 %v487
  %v696 = vpop.f32.mrb[0].mxu0
  %v697 = vadd.f32 %v555, %v696
  %v698 = vpop.f32.mrb[0].mxu0
  %699 = vdwg.mxu0
  %v700 = vadd.f32 %v491, %v626
  %v701 = vxor.u32 %v700, 2147483648
  %v702 = vmul.f32 %v701, 1.442695
  %v703 = vpow.pop %v702
  %v704 = vadd.f32 %v703, 1.0
  %v705 = vrcp.pop %v704
  %v706 = vmul.f32 1.0, %v705
  %v707 = vadd.f32 %v492, %v628
  %v708 = vxor.u32 %v707, 2147483648
  %v709 = vmul.f32 %v708, 1.442695
  %v710 = vpow.pop %v709
  %v711 = vadd.f32 %v710, 1.0
  %v712 = vrcp.pop %v711
  %v713 = vmul.f32 1.0, %v712
  %v714 = vmul.f32 %v706, %v697
  %v715 = vadd.f32 %v493, %v714
  %v716 = vtanh.pop %v715
  %v717 = vsub.f32 1.0, %v713
  %v718 = vmul.f32 %v717, %v716
  %v719 = vmul.f32 %v713, %v487
  %v720 = vadd.f32 %v718, %v719
  %s721 = scalar_lea.vmem %s4, 16
  %722 = vst [vmem:[%s721] sm:$0xff] %v720
  %s723 = scalar_lea.vmem %s0, 72
  %v724 = vld [vmem:[%s723] sm:$0xff]
  %v725 = vld [vmem:[%s723 + $0x8] sm:$0xff]
  %v726 = vld [vmem:[%s723 + $0x10] sm:$0xff]
  %v727 = vld [vmem:[%s1] sm:$0xff]
  %v728 = vld [vmem:[%s1 + $0x8] sm:$0xff]
  %v729 = vld [vmem:[%s1 + $0x10] sm:$0xff]
  %v730 = vld [vmem:[%s1 + $0x18] sm:$0xff]
  %v731 = vld [vmem:[%s1 + $0x20] sm:$0xff]
  %v732 = vld [vmem:[%s1 + $0x28] sm:$0xff]
  %v733 = vld [vmem:[%s1 + $0x30] sm:$0xff]
  %v734 = vld [vmem:[%s1 + $0x38] sm:$0xff]
  %v735 = vld [vmem:[%s1 + $0x40] sm:$0xff]
  %v736 = vld [vmem:[%s1 + $0x48] sm:$0xff]
  %v737 = vld [vmem:[%s1 + $0x50] sm:$0xff]
  %v738 = vld [vmem:[%s1 + $0x58] sm:$0xff]
  %v739 = vld [vmem:[%s1 + $0x60] sm:$0xff]
  %v740 = vld [vmem:[%s1 + $0x68] sm:$0xff]
  %v741 = vld [vmem:[%s1 + $0x70] sm:$0xff]
  %v742 = vld [vmem:[%s1 + $0x78] sm:$0xff]
  %v743 = vld [vmem:[%s1 + $0x80] sm:$0xff]
  %v744 = vld [vmem:[%s1 + $0x88] sm:$0xff]
  %v745 = vld [vmem:[%s1 + $0x90] sm:$0xff]
  %v746 = vld [vmem:[%s1 + $0x98] sm:$0xff]
  %v747 = vld [vmem:[%s1 + $0xa0] sm:$0xff]
  %v748 = vld [vmem:[%s1 + $0xa8] sm:$0xff]
  %v749 = vld [vmem:[%s1 + $0xb0] sm:$0xff]
  %v750 = vld [vmem:[%s1 + $0xb8] sm:$0xff]
  %v751 = vld [vmem:[%s1 + $0xc0] sm:$0xff]
  %v752 = vld [vmem:[%s1 + $0xc8] sm:$0xff]
  %v753 = vld [vmem:[%s1 + $0xd0] sm:$0xff]
  %v754 = vld [vmem:[%s1 + $0xd8] sm:$0xff]
  %v755 = vld [vmem:[%s1 + $0xe0] sm:$0xff]
  %v756 = vld [vmem:[%s1 + $0xe8] sm:$0xff]
  %v757 = vld [vmem:[%s1 + $0xf0] sm:$0xff]
  %v758 = vld [vmem:[%s1 + $0xf8] sm:$0xff]
  %v759 = vld [vmem:[%s1 + $0x100] sm:$0xff]
  %v760 = vld [vmem:[%s1 + $0x108] sm:$0xff]
  %v761 = vld [vmem:[%s1 + $0x110] sm:$0xff]
  %v762 = vld [vmem:[%s1 + $0x118] sm:$0xff]
  %v763 = vld [vmem:[%s1 + $0x120] sm:$0xff]
  %v764 = vld [vmem:[%s1 + $0x128] sm:$0xff]
  %v765 = vld [vmem:[%s1 + $0x130] sm:$0xff]
  %v766 = vld [vmem:[%s1 + $0x138] sm:$0xff]
  %v767 = vld [vmem:[%s1 + $0x140] sm:$0xff]
  %v768 = vld [vmem:[%s1 + $0x148] sm:$0xff]
  %v769 = vld [vmem:[%s1 + $0x150] sm:$0xff]
  %v770 = vld [vmem:[%s1 + $0x158] sm:$0xff]
  %v771 = vld [vmem:[%s1 + $0x160] sm:$0xff]
  %v772 = vld [vmem:[%s1 + $0x168] sm:$0xff]
  %v773 = vld [vmem:[%s1 + $0x170] sm:$0xff]
  %v774 = vld [vmem:[%s1 + $0x178] sm:$0xff]
  %v775 = vld [vmem:[%s2] sm:$0x7]
  %v777 = vlaneseq
  %v778 = vshrl.u32 %v777, 7
  %v779 = vsub.s32 0, %v778
  %v780 = vrot.slane %v775, %v779
  %v781 = vlaneseq
  %v782 = vshrl.u32 %v781, 7
  %v783 = vsub.s32 1, %v782
  %v784 = vrot.slane %v775, %v783
  %v785 = vlaneseq
  %v786 = vshrl.u32 %v785, 7
  %v787 = vsub.s32 2, %v786
  %v788 = vrot.slane %v775, %v787
  %792 = vmatprep.subr.mxu0 %v728
  %793 = vmatpush1.msra.mxu0 %v727
  %794 = vmatprep.subr.mxu0 %v731
  %795 = vmatpush1.msra.mxu0 %v730
  %796 = vmatprep.subr.mxu0 %v734
  %797 = vmatpush1.msra.mxu0 %v733
  %798 = vmatprep.subr.mxu0 %v737
  %799 = vmatpush1.msra.mxu0 %v736
  %800 = vmatprep.subr.mxu0 %v740
  %801 = vmatpush1.msra.mxu0 %v739
  %802 = vmatprep.subr.mxu0 %v743
  %803 = vmatpush1.msra.mxu0 %v742
  %804 = vmatprep.subr.mxu0 %v746
  %805 = vmatpush1.msra.mxu0 %v745
  %806 = vmatprep.subr.mxu0 %v749
  %807 = vmatpush1.msra.mxu0 %v748
  %808 = vmatprep.subr.mxu0 %v752
  %809 = vmatpush1.msra.mxu0 %v751
  %810 = vmatprep.subr.mxu0 %v755
  %811 = vmatpush1.msra.mxu0 %v754
  %812 = vmatprep.subr.mxu0 %v758
  %813 = vmatpush1.msra.mxu0 %v757
  %814 = vmatprep.subr.mxu0 %v761
  %815 = vmatpush1.msra.mxu0 %v760
  %816 = vmatprep.subr.mxu0 %v764
  %817 = vmatpush1.msra.mxu0 %v763
  %818 = vmatprep.subr.mxu0 %v767
  %819 = vmatpush1.msra.mxu0 %v766
  %820 = vmatprep.subr.mxu0 %v770
  %821 = vmatpush1.msra.mxu0 %v769
  %822 = vmatprep.subr.mxu0 %v773
  %823 = vmatpush1.msra.mxu0 %v772
  %824 = vmatprep.subr.mxu0 0.0
  %825 = vmatpush1.msra.mxu0 0.0
  %826 = vmatprep.subr.mxu0 0.0
  %827 = vmatpush1.msra.mxu0 0.0
  %828 = vmatprep.subr.mxu0 0.0
  %829 = vmatpush1.msra.mxu0 0.0
  %830 = vmatprep.subr.mxu0 0.0
  %831 = vmatpush1.msra.mxu0 0.0
  %832 = vmatprep.subr.mxu0 0.0
  %833 = vmatpush1.msra.mxu0 0.0
  %834 = vmatprep.subr.mxu0 0.0
  %835 = vmatpush1.msra.mxu0 0.0
  %836 = vmatprep.subr.mxu0 0.0
  %837 = vmatpush1.msra.mxu0 0.0
  %838 = vmatprep.subr.mxu0 0.0
  %839 = vmatpush1.msra.mxu0 0.0
  %840 = vmatprep.subr.mxu0 0.0
  %841 = vmatpush1.msra.mxu0 0.0
  %842 = vmatprep.subr.mxu0 0.0
  %843 = vmatpush1.msra.mxu0 0.0
  %844 = vmatprep.subr.mxu0 0.0
  %845 = vmatpush1.msra.mxu0 0.0
  %846 = vmatprep.subr.mxu0 0.0
  %847 = vmatpush1.msra.mxu0 0.0
  %848 = vmatprep.subr.mxu0 0.0
  %849 = vmatpush1.msra.mxu0 0.0
  %850 = vmatprep.subr.mxu0 0.0
  %851 = vmatpush1.msra.mxu0 0.0
  %852 = vmatprep.subr.mxu0 0.0
  %853 = vmatpush1.msra.mxu0 0.0
  %854 = vmatprep.subr.mxu0 0.0
  %855 = vmatpush1.msra.mxu0 0.0
  %856 = vmatprep.mubr.f32.mxu0 0.0
  %857 = vmatmul.mubr.f32.gmra.mrb[0].mxu0 %v720
  %v858 = vpop.f32.mrb[0].mxu0
  %v859 = vadd.f32 %v780, %v858
  %v860 = vpop.f32.mrb[0].mxu0
  %v861 = vadd.f32 %v784, %v860
  %862 = vdwg.mxu0
  %863 = vmatprep.subr.mxu0 0.0
  %864 = vmatpush1.msra.mxu0 %v729
  %865 = vmatprep.subr.mxu0 0.0
  %866 = vmatpush1.msra.mxu0 %v732
  %867 = vmatprep.subr.mxu0 0.0
  %868 = vmatpush1.msra.mxu0 %v735
  %869 = vmatprep.subr.mxu0 0.0
  %870 = vmatpush1.msra.mxu0 %v738
  %871 = vmatprep.subr.mxu0 0.0
  %872 = vmatpush1.msra.mxu0 %v741
  %873 = vmatprep.subr.mxu0 0.0
  %874 = vmatpush1.msra.mxu0 %v744
  %875 = vmatprep.subr.mxu0 0.0
  %876 = vmatpush1.msra.mxu0 %v747
  %877 = vmatprep.subr.mxu0 0.0
  %878 = vmatpush1.msra.mxu0 %v750
  %879 = vmatprep.subr.mxu0 0.0
  %880 = vmatpush1.msra.mxu0 %v753
  %881 = vmatprep.subr.mxu0 0.0
  %882 = vmatpush1.msra.mxu0 %v756
  %883 = vmatprep.subr.mxu0 0.0
  %884 = vmatpush1.msra.mxu0 %v759
  %885 = vmatprep.subr.mxu0 0.0
  %886 = vmatpush1.msra.mxu0 %v762
  %887 = vmatprep.subr.mxu0 0.0
  %888 = vmatpush1.msra.mxu0 %v765
  %889 = vmatprep.subr.mxu0 0.0
  %890 = vmatpush1.msra.mxu0 %v768
  %891 = vmatprep.subr.mxu0 0.0
  %892 = vmatpush1.msra.mxu0 %v771
  %893 = vmatprep.subr.mxu0 0.0
  %894 = vmatpush1.msra.mxu0 %v774
  %895 = vmatprep.subr.mxu0 0.0
  %896 = vmatpush1.msra.mxu0 0.0
  %897 = vmatprep.subr.mxu0 0.0
  %898 = vmatpush1.msra.mxu0 0.0
  %899 = vmatprep.subr.mxu0 0.0
  %900 = vmatpush1.msra.mxu0 0.0
  %901 = vmatprep.subr.mxu0 0.0
  %902 = vmatpush1.msra.mxu0 0.0
  %903 = vmatprep.subr.mxu0 0.0
  %904 = vmatpush1.msra.mxu0 0.0
  %905 = vmatprep.subr.mxu0 0.0
  %906 = vmatpush1.msra.mxu0 0.0
  %907 = vmatprep.subr.mxu0 0.0
  %908 = vmatpush1.msra.mxu0 0.0
  %909 = vmatprep.subr.mxu0 0.0
  %910 = vmatpush1.msra.mxu0 0.0
  %911 = vmatprep.subr.mxu0 0.0
  %912 = vmatpush1.msra.mxu0 0.0
  %913 = vmatprep.subr.mxu0 0.0
  %914 = vmatpush1.msra.mxu0 0.0
  %915 = vmatprep.subr.mxu0 0.0
  %916 = vmatpush1.msra.mxu0 0.0
  %917 = vmatprep.subr.mxu0 0.0
  %918 = vmatpush1.msra.mxu0 0.0
  %919 = vmatprep.subr.mxu0 0.0
  %920 = vmatpush1.msra.mxu0 0.0
  %921 = vmatprep.subr.mxu0 0.0
  %922 = vmatpush1.msra.mxu0 0.0
  %923 = vmatprep.subr.mxu0 0.0
  %924 = vmatpush1.msra.mxu0 0.0
  %925 = vmatprep.subr.mxu0 0.0
  %926 = vmatpush1.msra.mxu0 0.0
  %927 = vmatprep.mubr.f32.mxu0 0.0
  %928 = vmatmul.mubr.f32.gmra.mrb[0].mxu0 %v720
  %v929 = vpop.f32.mrb[0].mxu0
  %v930 = vadd.f32 %v788, %v929
  %v931 = vpop.f32.mrb[0].mxu0
  %932 = vdwg.mxu0
  %v933 = vadd.f32 %v724, %v859
  %v934 = vxor.u32 %v933, 2147483648
  %v935 = vmul.f32 %v934, 1.442695
  %v936 = vpow.pop %v935
  %v937 = vadd.f32 %v936, 1.0
  %v938 = vrcp.pop %v937
  %v939 = vmul.f32 1.0, %v938
  %v940 = vadd.f32 %v725, %v861
  %v941 = vxor.u32 %v940, 2147483648
  %v942 = vmul.f32 %v941, 1.442695
  %v943 = vpow.pop %v942
  %v944 = vadd.f32 %v943, 1.0
  %v945 = vrcp.pop %v944
  %v946 = vmul.f32 1.0, %v945
  %v947 = vmul.f32 %v939, %v930
  %v948 = vadd.f32 %v726, %v947
  %v949 = vtanh.pop %v948
  %v950 = vsub.f32 1.0, %v946
  %v951 = vmul.f32 %v950, %v949
  %v952 = vmul.f32 %v946, %v720
  %v953 = vadd.f32 %v951, %v952
  %s954 = scalar_lea.vmem %s4, 24
  %955 = vst [vmem:[%s954] sm:$0xff] %v953
  %s956 = scalar_lea.vmem %s0, 96
  %v957 = vld [vmem:[%s956] sm:$0xff]
  %v958 = vld [vmem:[%s956 + $0x8] sm:$0xff]
  %v959 = vld [vmem:[%s956 + $0x10] sm:$0xff]
  %v960 = vld [vmem:[%s1] sm:$0xff]
  %v961 = vld [vmem:[%s1 + $0x8] sm:$0xff]
  %v962 = vld [vmem:[%s1 + $0x10] sm:$0xff]
  %v963 = vld [vmem:[%s1 + $0x18] sm:$0xff]
  %v964 = vld [vmem:[%s1 + $0x20] sm:$0xff]
  %v965 = vld [vmem:[%s1 + $0x28] sm:$0xff]
  %v966 = vld [vmem:[%s1 + $0x30] sm:$0xff]
  %v967 = vld [vmem:[%s1 + $0x38] sm:$0xff]
  %v968 = vld [vmem:[%s1 + $0x40] sm:$0xff]
  %v969 = vld [vmem:[%s1 + $0x48] sm:$0xff]
  %v970 = vld [vmem:[%s1 + $0x50] sm:$0xff]
  %v971 = vld [vmem:[%s1 + $0x58] sm:$0xff]
  %v972 = vld [vmem:[%s1 + $0x60] sm:$0xff]
  %v973 = vld [vmem:[%s1 + $0x68] sm:$0xff]
  %v974 = vld [vmem:[%s1 + $0x70] sm:$0xff]
  %v975 = vld [vmem:[%s1 + $0x78] sm:$0xff]
  %v976 = vld [vmem:[%s1 + $0x80] sm:$0xff]
  %v977 = vld [vmem:[%s1 + $0x88] sm:$0xff]
  %v978 = vld [vmem:[%s1 + $0x90] sm:$0xff]
  %v979 = vld [vmem:[%s1 + $0x98] sm:$0xff]
  %v980 = vld [vmem:[%s1 + $0xa0] sm:$0xff]
  %v981 = vld [vmem:[%s1 + $0xa8] sm:$0xff]
  %v982 = vld [vmem:[%s1 + $0xb0] sm:$0xff]
  %v983 = vld [vmem:[%s1 + $0xb8] sm:$0xff]
  %v984 = vld [vmem:[%s1 + $0xc0] sm:$0xff]
  %v985 = vld [vmem:[%s1 + $0xc8] sm:$0xff]
  %v986 = vld [vmem:[%s1 + $0xd0] sm:$0xff]
  %v987 = vld [vmem:[%s1 + $0xd8] sm:$0xff]
  %v988 = vld [vmem:[%s1 + $0xe0] sm:$0xff]
  %v989 = vld [vmem:[%s1 + $0xe8] sm:$0xff]
  %v990 = vld [vmem:[%s1 + $0xf0] sm:$0xff]
  %v991 = vld [vmem:[%s1 + $0xf8] sm:$0xff]
  %v992 = vld [vmem:[%s1 + $0x100] sm:$0xff]
  %v993 = vld [vmem:[%s1 + $0x108] sm:$0xff]
  %v994 = vld [vmem:[%s1 + $0x110] sm:$0xff]
  %v995 = vld [vmem:[%s1 + $0x118] sm:$0xff]
  %v996 = vld [vmem:[%s1 + $0x120] sm:$0xff]
  %v997 = vld [vmem:[%s1 + $0x128] sm:$0xff]
  %v998 = vld [vmem:[%s1 + $0x130] sm:$0xff]
  %v999 = vld [vmem:[%s1 + $0x138] sm:$0xff]
  %v1000 = vld [vmem:[%s1 + $0x140] sm:$0xff]
  %v1001 = vld [vmem:[%s1 + $0x148] sm:$0xff]
  %v1002 = vld [vmem:[%s1 + $0x150] sm:$0xff]
  %v1003 = vld [vmem:[%s1 + $0x158] sm:$0xff]
  %v1004 = vld [vmem:[%s1 + $0x160] sm:$0xff]
  %v1005 = vld [vmem:[%s1 + $0x168] sm:$0xff]
  %v1006 = vld [vmem:[%s1 + $0x170] sm:$0xff]
  %v1007 = vld [vmem:[%s1 + $0x178] sm:$0xff]
  %v1008 = vld [vmem:[%s2] sm:$0x7]
  %v1010 = vlaneseq
  %v1011 = vshrl.u32 %v1010, 7
  %v1012 = vsub.s32 0, %v1011
  %v1013 = vrot.slane %v1008, %v1012
  %v1014 = vlaneseq
  %v1015 = vshrl.u32 %v1014, 7
  %v1016 = vsub.s32 1, %v1015
  %v1017 = vrot.slane %v1008, %v1016
  %v1018 = vlaneseq
  %v1019 = vshrl.u32 %v1018, 7
  %v1020 = vsub.s32 2, %v1019
  %v1021 = vrot.slane %v1008, %v1020
  %1025 = vmatprep.subr.mxu0 %v961
  %1026 = vmatpush1.msra.mxu0 %v960
  %1027 = vmatprep.subr.mxu0 %v964
  %1028 = vmatpush1.msra.mxu0 %v963
  %1029 = vmatprep.subr.mxu0 %v967
  %1030 = vmatpush1.msra.mxu0 %v966
  %1031 = vmatprep.subr.mxu0 %v970
  %1032 = vmatpush1.msra.mxu0 %v969
  %1033 = vmatprep.subr.mxu0 %v973
  %1034 = vmatpush1.msra.mxu0 %v972
  %1035 = vmatprep.subr.mxu0 %v976
  %1036 = vmatpush1.msra.mxu0 %v975
  %1037 = vmatprep.subr.mxu0 %v979
  %1038 = vmatpush1.msra.mxu0 %v978
  %1039 = vmatprep.subr.mxu0 %v982
  %1040 = vmatpush1.msra.mxu0 %v981
  %1041 = vmatprep.subr.mxu0 %v985
  %1042 = vmatpush1.msra.mxu0 %v984
  %1043 = vmatprep.subr.mxu0 %v988
  %1044 = vmatpush1.msra.mxu0 %v987
  %1045 = vmatprep.subr.mxu0 %v991
  %1046 = vmatpush1.msra.mxu0 %v990
  %1047 = vmatprep.subr.mxu0 %v994
  %1048 = vmatpush1.msra.mxu0 %v993
  %1049 = vmatprep.subr.mxu0 %v997
  %1050 = vmatpush1.msra.mxu0 %v996
  %1051 = vmatprep.subr.mxu0 %v1000
  %1052 = vmatpush1.msra.mxu0 %v999
  %1053 = vmatprep.subr.mxu0 %v1003
  %1054 = vmatpush1.msra.mxu0 %v1002
  %1055 = vmatprep.subr.mxu0 %v1006
  %1056 = vmatpush1.msra.mxu0 %v1005
  %1057 = vmatprep.subr.mxu0 0.0
  %1058 = vmatpush1.msra.mxu0 0.0
  %1059 = vmatprep.subr.mxu0 0.0
  %1060 = vmatpush1.msra.mxu0 0.0
  %1061 = vmatprep.subr.mxu0 0.0
  %1062 = vmatpush1.msra.mxu0 0.0
  %1063 = vmatprep.subr.mxu0 0.0
  %1064 = vmatpush1.msra.mxu0 0.0
  %1065 = vmatprep.subr.mxu0 0.0
  %1066 = vmatpush1.msra.mxu0 0.0
  %1067 = vmatprep.subr.mxu0 0.0
  %1068 = vmatpush1.msra.mxu0 0.0
  %1069 = vmatprep.subr.mxu0 0.0
  %1070 = vmatpush1.msra.mxu0 0.0
  %1071 = vmatprep.subr.mxu0 0.0
  %1072 = vmatpush1.msra.mxu0 0.0
  %1073 = vmatprep.subr.mxu0 0.0
  %1074 = vmatpush1.msra.mxu0 0.0
  %1075 = vmatprep.subr.mxu0 0.0
  %1076 = vmatpush1.msra.mxu0 0.0
  %1077 = vmatprep.subr.mxu0 0.0
  %1078 = vmatpush1.msra.mxu0 0.0
  %1079 = vmatprep.subr.mxu0 0.0
  %1080 = vmatpush1.msra.mxu0 0.0
  %1081 = vmatprep.subr.mxu0 0.0
  %1082 = vmatpush1.msra.mxu0 0.0
  %1083 = vmatprep.subr.mxu0 0.0
  %1084 = vmatpush1.msra.mxu0 0.0
  %1085 = vmatprep.subr.mxu0 0.0
  %1086 = vmatpush1.msra.mxu0 0.0
  %1087 = vmatprep.subr.mxu0 0.0
  %1088 = vmatpush1.msra.mxu0 0.0
  %1089 = vmatprep.mubr.f32.mxu0 0.0
  %1090 = vmatmul.mubr.f32.gmra.mrb[0].mxu0 %v953
  %v1091 = vpop.f32.mrb[0].mxu0
  %v1092 = vadd.f32 %v1013, %v1091
  %v1093 = vpop.f32.mrb[0].mxu0
  %v1094 = vadd.f32 %v1017, %v1093
  %1095 = vdwg.mxu0
  %1096 = vmatprep.subr.mxu0 0.0
  %1097 = vmatpush1.msra.mxu0 %v962
  %1098 = vmatprep.subr.mxu0 0.0
  %1099 = vmatpush1.msra.mxu0 %v965
  %1100 = vmatprep.subr.mxu0 0.0
  %1101 = vmatpush1.msra.mxu0 %v968
  %1102 = vmatprep.subr.mxu0 0.0
  %1103 = vmatpush1.msra.mxu0 %v971
  %1104 = vmatprep.subr.mxu0 0.0
  %1105 = vmatpush1.msra.mxu0 %v974
  %1106 = vmatprep.subr.mxu0 0.0
  %1107 = vmatpush1.msra.mxu0 %v977
  %1108 = vmatprep.subr.mxu0 0.0
  %1109 = vmatpush1.msra.mxu0 %v980
  %1110 = vmatprep.subr.mxu0 0.0
  %1111 = vmatpush1.msra.mxu0 %v983
  %1112 = vmatprep.subr.mxu0 0.0
  %1113 = vmatpush1.msra.mxu0 %v986
  %1114 = vmatprep.subr.mxu0 0.0
  %1115 = vmatpush1.msra.mxu0 %v989
  %1116 = vmatprep.subr.mxu0 0.0
  %1117 = vmatpush1.msra.mxu0 %v992
  %1118 = vmatprep.subr.mxu0 0.0
  %1119 = vmatpush1.msra.mxu0 %v995
  %1120 = vmatprep.subr.mxu0 0.0
  %1121 = vmatpush1.msra.mxu0 %v998
  %1122 = vmatprep.subr.mxu0 0.0
  %1123 = vmatpush1.msra.mxu0 %v1001
  %1124 = vmatprep.subr.mxu0 0.0
  %1125 = vmatpush1.msra.mxu0 %v1004
  %1126 = vmatprep.subr.mxu0 0.0
  %1127 = vmatpush1.msra.mxu0 %v1007
  %1128 = vmatprep.subr.mxu0 0.0
  %1129 = vmatpush1.msra.mxu0 0.0
  %1130 = vmatprep.subr.mxu0 0.0
  %1131 = vmatpush1.msra.mxu0 0.0
  %1132 = vmatprep.subr.mxu0 0.0
  %1133 = vmatpush1.msra.mxu0 0.0
  %1134 = vmatprep.subr.mxu0 0.0
  %1135 = vmatpush1.msra.mxu0 0.0
  %1136 = vmatprep.subr.mxu0 0.0
  %1137 = vmatpush1.msra.mxu0 0.0
  %1138 = vmatprep.subr.mxu0 0.0
  %1139 = vmatpush1.msra.mxu0 0.0
  %1140 = vmatprep.subr.mxu0 0.0
  %1141 = vmatpush1.msra.mxu0 0.0
  %1142 = vmatprep.subr.mxu0 0.0
  %1143 = vmatpush1.msra.mxu0 0.0
  %1144 = vmatprep.subr.mxu0 0.0
  %1145 = vmatpush1.msra.mxu0 0.0
  %1146 = vmatprep.subr.mxu0 0.0
  %1147 = vmatpush1.msra.mxu0 0.0
  %1148 = vmatprep.subr.mxu0 0.0
  %1149 = vmatpush1.msra.mxu0 0.0
  %1150 = vmatprep.subr.mxu0 0.0
  %1151 = vmatpush1.msra.mxu0 0.0
  %1152 = vmatprep.subr.mxu0 0.0
  %1153 = vmatpush1.msra.mxu0 0.0
  %1154 = vmatprep.subr.mxu0 0.0
  %1155 = vmatpush1.msra.mxu0 0.0
  %1156 = vmatprep.subr.mxu0 0.0
  %1157 = vmatpush1.msra.mxu0 0.0
  %1158 = vmatprep.subr.mxu0 0.0
  %1159 = vmatpush1.msra.mxu0 0.0
  %1160 = vmatprep.mubr.f32.mxu0 0.0
  %1161 = vmatmul.mubr.f32.gmra.mrb[0].mxu0 %v953
  %v1162 = vpop.f32.mrb[0].mxu0
  %v1163 = vadd.f32 %v1021, %v1162
  %v1164 = vpop.f32.mrb[0].mxu0
  %1165 = vdwg.mxu0
  %v1166 = vadd.f32 %v957, %v1092
  %v1167 = vxor.u32 %v1166, 2147483648
  %v1168 = vmul.f32 %v1167, 1.442695
  %v1169 = vpow.pop %v1168
  %v1170 = vadd.f32 %v1169, 1.0
  %v1171 = vrcp.pop %v1170
  %v1172 = vmul.f32 1.0, %v1171
  %v1173 = vadd.f32 %v958, %v1094
  %v1174 = vxor.u32 %v1173, 2147483648
  %v1175 = vmul.f32 %v1174, 1.442695
  %v1176 = vpow.pop %v1175
  %v1177 = vadd.f32 %v1176, 1.0
  %v1178 = vrcp.pop %v1177
  %v1179 = vmul.f32 1.0, %v1178
  %v1180 = vmul.f32 %v1172, %v1163
  %v1181 = vadd.f32 %v959, %v1180
  %v1182 = vtanh.pop %v1181
  %v1183 = vsub.f32 1.0, %v1179
  %v1184 = vmul.f32 %v1183, %v1182
  %v1185 = vmul.f32 %v1179, %v953
  %v1186 = vadd.f32 %v1184, %v1185
  %s1187 = scalar_lea.vmem %s4, 32
  %1188 = vst [vmem:[%s1187] sm:$0xff] %v1186
  %s1189 = scalar_lea.vmem %s0, 120
  %v1190 = vld [vmem:[%s1189] sm:$0xff]
  %v1191 = vld [vmem:[%s1189 + $0x8] sm:$0xff]
  %v1192 = vld [vmem:[%s1189 + $0x10] sm:$0xff]
  %v1193 = vld [vmem:[%s1] sm:$0xff]
  %v1194 = vld [vmem:[%s1 + $0x8] sm:$0xff]
  %v1195 = vld [vmem:[%s1 + $0x10] sm:$0xff]
  %v1196 = vld [vmem:[%s1 + $0x18] sm:$0xff]
  %v1197 = vld [vmem:[%s1 + $0x20] sm:$0xff]
  %v1198 = vld [vmem:[%s1 + $0x28] sm:$0xff]
  %v1199 = vld [vmem:[%s1 + $0x30] sm:$0xff]
  %v1200 = vld [vmem:[%s1 + $0x38] sm:$0xff]
  %v1201 = vld [vmem:[%s1 + $0x40] sm:$0xff]
  %v1202 = vld [vmem:[%s1 + $0x48] sm:$0xff]
  %v1203 = vld [vmem:[%s1 + $0x50] sm:$0xff]
  %v1204 = vld [vmem:[%s1 + $0x58] sm:$0xff]
  %v1205 = vld [vmem:[%s1 + $0x60] sm:$0xff]
  %v1206 = vld [vmem:[%s1 + $0x68] sm:$0xff]
  %v1207 = vld [vmem:[%s1 + $0x70] sm:$0xff]
  %v1208 = vld [vmem:[%s1 + $0x78] sm:$0xff]
  %v1209 = vld [vmem:[%s1 + $0x80] sm:$0xff]
  %v1210 = vld [vmem:[%s1 + $0x88] sm:$0xff]
  %v1211 = vld [vmem:[%s1 + $0x90] sm:$0xff]
  %v1212 = vld [vmem:[%s1 + $0x98] sm:$0xff]
  %v1213 = vld [vmem:[%s1 + $0xa0] sm:$0xff]
  %v1214 = vld [vmem:[%s1 + $0xa8] sm:$0xff]
  %v1215 = vld [vmem:[%s1 + $0xb0] sm:$0xff]
  %v1216 = vld [vmem:[%s1 + $0xb8] sm:$0xff]
  %v1217 = vld [vmem:[%s1 + $0xc0] sm:$0xff]
  %v1218 = vld [vmem:[%s1 + $0xc8] sm:$0xff]
  %v1219 = vld [vmem:[%s1 + $0xd0] sm:$0xff]
  %v1220 = vld [vmem:[%s1 + $0xd8] sm:$0xff]
  %v1221 = vld [vmem:[%s1 + $0xe0] sm:$0xff]
  %v1222 = vld [vmem:[%s1 + $0xe8] sm:$0xff]
  %v1223 = vld [vmem:[%s1 + $0xf0] sm:$0xff]
  %v1224 = vld [vmem:[%s1 + $0xf8] sm:$0xff]
  %v1225 = vld [vmem:[%s1 + $0x100] sm:$0xff]
  %v1226 = vld [vmem:[%s1 + $0x108] sm:$0xff]
  %v1227 = vld [vmem:[%s1 + $0x110] sm:$0xff]
  %v1228 = vld [vmem:[%s1 + $0x118] sm:$0xff]
  %v1229 = vld [vmem:[%s1 + $0x120] sm:$0xff]
  %v1230 = vld [vmem:[%s1 + $0x128] sm:$0xff]
  %v1231 = vld [vmem:[%s1 + $0x130] sm:$0xff]
  %v1232 = vld [vmem:[%s1 + $0x138] sm:$0xff]
  %v1233 = vld [vmem:[%s1 + $0x140] sm:$0xff]
  %v1234 = vld [vmem:[%s1 + $0x148] sm:$0xff]
  %v1235 = vld [vmem:[%s1 + $0x150] sm:$0xff]
  %v1236 = vld [vmem:[%s1 + $0x158] sm:$0xff]
  %v1237 = vld [vmem:[%s1 + $0x160] sm:$0xff]
  %v1238 = vld [vmem:[%s1 + $0x168] sm:$0xff]
  %v1239 = vld [vmem:[%s1 + $0x170] sm:$0xff]
  %v1240 = vld [vmem:[%s1 + $0x178] sm:$0xff]
  %v1241 = vld [vmem:[%s2] sm:$0x7]
  %v1243 = vlaneseq
  %v1244 = vshrl.u32 %v1243, 7
  %v1245 = vsub.s32 0, %v1244
  %v1246 = vrot.slane %v1241, %v1245
  %v1247 = vlaneseq
  %v1248 = vshrl.u32 %v1247, 7
  %v1249 = vsub.s32 1, %v1248
  %v1250 = vrot.slane %v1241, %v1249
  %v1251 = vlaneseq
  %v1252 = vshrl.u32 %v1251, 7
  %v1253 = vsub.s32 2, %v1252
  %v1254 = vrot.slane %v1241, %v1253
  %1258 = vmatprep.subr.mxu0 %v1194
  %1259 = vmatpush1.msra.mxu0 %v1193
  %1260 = vmatprep.subr.mxu0 %v1197
  %1261 = vmatpush1.msra.mxu0 %v1196
  %1262 = vmatprep.subr.mxu0 %v1200
  %1263 = vmatpush1.msra.mxu0 %v1199
  %1264 = vmatprep.subr.mxu0 %v1203
  %1265 = vmatpush1.msra.mxu0 %v1202
  %1266 = vmatprep.subr.mxu0 %v1206
  %1267 = vmatpush1.msra.mxu0 %v1205
  %1268 = vmatprep.subr.mxu0 %v1209
  %1269 = vmatpush1.msra.mxu0 %v1208
  %1270 = vmatprep.subr.mxu0 %v1212
  %1271 = vmatpush1.msra.mxu0 %v1211
  %1272 = vmatprep.subr.mxu0 %v1215
  %1273 = vmatpush1.msra.mxu0 %v1214
  %1274 = vmatprep.subr.mxu0 %v1218
  %1275 = vmatpush1.msra.mxu0 %v1217
  %1276 = vmatprep.subr.mxu0 %v1221
  %1277 = vmatpush1.msra.mxu0 %v1220
  %1278 = vmatprep.subr.mxu0 %v1224
  %1279 = vmatpush1.msra.mxu0 %v1223
  %1280 = vmatprep.subr.mxu0 %v1227
  %1281 = vmatpush1.msra.mxu0 %v1226
  %1282 = vmatprep.subr.mxu0 %v1230
  %1283 = vmatpush1.msra.mxu0 %v1229
  %1284 = vmatprep.subr.mxu0 %v1233
  %1285 = vmatpush1.msra.mxu0 %v1232
  %1286 = vmatprep.subr.mxu0 %v1236
  %1287 = vmatpush1.msra.mxu0 %v1235
  %1288 = vmatprep.subr.mxu0 %v1239
  %1289 = vmatpush1.msra.mxu0 %v1238
  %1290 = vmatprep.subr.mxu0 0.0
  %1291 = vmatpush1.msra.mxu0 0.0
  %1292 = vmatprep.subr.mxu0 0.0
  %1293 = vmatpush1.msra.mxu0 0.0
  %1294 = vmatprep.subr.mxu0 0.0
  %1295 = vmatpush1.msra.mxu0 0.0
  %1296 = vmatprep.subr.mxu0 0.0
  %1297 = vmatpush1.msra.mxu0 0.0
  %1298 = vmatprep.subr.mxu0 0.0
  %1299 = vmatpush1.msra.mxu0 0.0
  %1300 = vmatprep.subr.mxu0 0.0
  %1301 = vmatpush1.msra.mxu0 0.0
  %1302 = vmatprep.subr.mxu0 0.0
  %1303 = vmatpush1.msra.mxu0 0.0
  %1304 = vmatprep.subr.mxu0 0.0
  %1305 = vmatpush1.msra.mxu0 0.0
  %1306 = vmatprep.subr.mxu0 0.0
  %1307 = vmatpush1.msra.mxu0 0.0
  %1308 = vmatprep.subr.mxu0 0.0
  %1309 = vmatpush1.msra.mxu0 0.0
  %1310 = vmatprep.subr.mxu0 0.0
  %1311 = vmatpush1.msra.mxu0 0.0
  %1312 = vmatprep.subr.mxu0 0.0
  %1313 = vmatpush1.msra.mxu0 0.0
  %1314 = vmatprep.subr.mxu0 0.0
  %1315 = vmatpush1.msra.mxu0 0.0
  %1316 = vmatprep.subr.mxu0 0.0
  %1317 = vmatpush1.msra.mxu0 0.0
  %1318 = vmatprep.subr.mxu0 0.0
  %1319 = vmatpush1.msra.mxu0 0.0
  %1320 = vmatprep.subr.mxu0 0.0
  %1321 = vmatpush1.msra.mxu0 0.0
  %1322 = vmatprep.mubr.f32.mxu0 0.0
  %1323 = vmatmul.mubr.f32.gmra.mrb[0].mxu0 %v1186
  %v1324 = vpop.f32.mrb[0].mxu0
  %v1325 = vadd.f32 %v1246, %v1324
  %v1326 = vpop.f32.mrb[0].mxu0
  %v1327 = vadd.f32 %v1250, %v1326
  %1328 = vdwg.mxu0
  %1329 = vmatprep.subr.mxu0 0.0
  %1330 = vmatpush1.msra.mxu0 %v1195
  %1331 = vmatprep.subr.mxu0 0.0
  %1332 = vmatpush1.msra.mxu0 %v1198
  %1333 = vmatprep.subr.mxu0 0.0
  %1334 = vmatpush1.msra.mxu0 %v1201
  %1335 = vmatprep.subr.mxu0 0.0
  %1336 = vmatpush1.msra.mxu0 %v1204
  %1337 = vmatprep.subr.mxu0 0.0
  %1338 = vmatpush1.msra.mxu0 %v1207
  %1339 = vmatprep.subr.mxu0 0.0
  %1340 = vmatpush1.msra.mxu0 %v1210
  %1341 = vmatprep.subr.mxu0 0.0
  %1342 = vmatpush1.msra.mxu0 %v1213
  %1343 = vmatprep.subr.mxu0 0.0
  %1344 = vmatpush1.msra.mxu0 %v1216
  %1345 = vmatprep.subr.mxu0 0.0
  %1346 = vmatpush1.msra.mxu0 %v1219
  %1347 = vmatprep.subr.mxu0 0.0
  %1348 = vmatpush1.msra.mxu0 %v1222
  %1349 = vmatprep.subr.mxu0 0.0
  %1350 = vmatpush1.msra.mxu0 %v1225
  %1351 = vmatprep.subr.mxu0 0.0
  %1352 = vmatpush1.msra.mxu0 %v1228
  %1353 = vmatprep.subr.mxu0 0.0
  %1354 = vmatpush1.msra.mxu0 %v1231
  %1355 = vmatprep.subr.mxu0 0.0
  %1356 = vmatpush1.msra.mxu0 %v1234
  %1357 = vmatprep.subr.mxu0 0.0
  %1358 = vmatpush1.msra.mxu0 %v1237
  %1359 = vmatprep.subr.mxu0 0.0
  %1360 = vmatpush1.msra.mxu0 %v1240
  %1361 = vmatprep.subr.mxu0 0.0
  %1362 = vmatpush1.msra.mxu0 0.0
  %1363 = vmatprep.subr.mxu0 0.0
  %1364 = vmatpush1.msra.mxu0 0.0
  %1365 = vmatprep.subr.mxu0 0.0
  %1366 = vmatpush1.msra.mxu0 0.0
  %1367 = vmatprep.subr.mxu0 0.0
  %1368 = vmatpush1.msra.mxu0 0.0
  %1369 = vmatprep.subr.mxu0 0.0
  %1370 = vmatpush1.msra.mxu0 0.0
  %1371 = vmatprep.subr.mxu0 0.0
  %1372 = vmatpush1.msra.mxu0 0.0
  %1373 = vmatprep.subr.mxu0 0.0
  %1374 = vmatpush1.msra.mxu0 0.0
  %1375 = vmatprep.subr.mxu0 0.0
  %1376 = vmatpush1.msra.mxu0 0.0
  %1377 = vmatprep.subr.mxu0 0.0
  %1378 = vmatpush1.msra.mxu0 0.0
  %1379 = vmatprep.subr.mxu0 0.0
  %1380 = vmatpush1.msra.mxu0 0.0
  %1381 = vmatprep.subr.mxu0 0.0
  %1382 = vmatpush1.msra.mxu0 0.0
  %1383 = vmatprep.subr.mxu0 0.0
  %1384 = vmatpush1.msra.mxu0 0.0
  %1385 = vmatprep.subr.mxu0 0.0
  %1386 = vmatpush1.msra.mxu0 0.0
  %1387 = vmatprep.subr.mxu0 0.0
  %1388 = vmatpush1.msra.mxu0 0.0
  %1389 = vmatprep.subr.mxu0 0.0
  %1390 = vmatpush1.msra.mxu0 0.0
  %1391 = vmatprep.subr.mxu0 0.0
  %1392 = vmatpush1.msra.mxu0 0.0
  %1393 = vmatprep.mubr.f32.mxu0 0.0
  %1394 = vmatmul.mubr.f32.gmra.mrb[0].mxu0 %v1186
  %v1395 = vpop.f32.mrb[0].mxu0
  %v1396 = vadd.f32 %v1254, %v1395
  %v1397 = vpop.f32.mrb[0].mxu0
  %1398 = vdwg.mxu0
  %v1399 = vadd.f32 %v1190, %v1325
  %v1400 = vxor.u32 %v1399, 2147483648
  %v1401 = vmul.f32 %v1400, 1.442695
  %v1402 = vpow.pop %v1401
  %v1403 = vadd.f32 %v1402, 1.0
  %v1404 = vrcp.pop %v1403
  %v1405 = vmul.f32 1.0, %v1404
  %v1406 = vadd.f32 %v1191, %v1327
  %v1407 = vxor.u32 %v1406, 2147483648
  %v1408 = vmul.f32 %v1407, 1.442695
  %v1409 = vpow.pop %v1408
  %v1410 = vadd.f32 %v1409, 1.0
  %v1411 = vrcp.pop %v1410
  %v1412 = vmul.f32 1.0, %v1411
  %v1413 = vmul.f32 %v1405, %v1396
  %v1414 = vadd.f32 %v1192, %v1413
  %v1415 = vtanh.pop %v1414
  %v1416 = vsub.f32 1.0, %v1412
  %v1417 = vmul.f32 %v1416, %v1415
  %v1418 = vmul.f32 %v1412, %v1186
  %v1419 = vadd.f32 %v1417, %v1418
  %s1420 = scalar_lea.vmem %s4, 40
  %1421 = vst [vmem:[%s1420] sm:$0xff] %v1419
  %s1422 = scalar_lea.vmem %s0, 144
  %v1423 = vld [vmem:[%s1422] sm:$0xff]
  %v1424 = vld [vmem:[%s1422 + $0x8] sm:$0xff]
  %v1425 = vld [vmem:[%s1422 + $0x10] sm:$0xff]
  %v1426 = vld [vmem:[%s1] sm:$0xff]
  %v1427 = vld [vmem:[%s1 + $0x8] sm:$0xff]
  %v1428 = vld [vmem:[%s1 + $0x10] sm:$0xff]
  %v1429 = vld [vmem:[%s1 + $0x18] sm:$0xff]
  %v1430 = vld [vmem:[%s1 + $0x20] sm:$0xff]
  %v1431 = vld [vmem:[%s1 + $0x28] sm:$0xff]
  %v1432 = vld [vmem:[%s1 + $0x30] sm:$0xff]
  %v1433 = vld [vmem:[%s1 + $0x38] sm:$0xff]
  %v1434 = vld [vmem:[%s1 + $0x40] sm:$0xff]
  %v1435 = vld [vmem:[%s1 + $0x48] sm:$0xff]
  %v1436 = vld [vmem:[%s1 + $0x50] sm:$0xff]
  %v1437 = vld [vmem:[%s1 + $0x58] sm:$0xff]
  %v1438 = vld [vmem:[%s1 + $0x60] sm:$0xff]
  %v1439 = vld [vmem:[%s1 + $0x68] sm:$0xff]
  %v1440 = vld [vmem:[%s1 + $0x70] sm:$0xff]
  %v1441 = vld [vmem:[%s1 + $0x78] sm:$0xff]
  %v1442 = vld [vmem:[%s1 + $0x80] sm:$0xff]
  %v1443 = vld [vmem:[%s1 + $0x88] sm:$0xff]
  %v1444 = vld [vmem:[%s1 + $0x90] sm:$0xff]
  %v1445 = vld [vmem:[%s1 + $0x98] sm:$0xff]
  %v1446 = vld [vmem:[%s1 + $0xa0] sm:$0xff]
  %v1447 = vld [vmem:[%s1 + $0xa8] sm:$0xff]
  %v1448 = vld [vmem:[%s1 + $0xb0] sm:$0xff]
  %v1449 = vld [vmem:[%s1 + $0xb8] sm:$0xff]
  %v1450 = vld [vmem:[%s1 + $0xc0] sm:$0xff]
  %v1451 = vld [vmem:[%s1 + $0xc8] sm:$0xff]
  %v1452 = vld [vmem:[%s1 + $0xd0] sm:$0xff]
  %v1453 = vld [vmem:[%s1 + $0xd8] sm:$0xff]
  %v1454 = vld [vmem:[%s1 + $0xe0] sm:$0xff]
  %v1455 = vld [vmem:[%s1 + $0xe8] sm:$0xff]
  %v1456 = vld [vmem:[%s1 + $0xf0] sm:$0xff]
  %v1457 = vld [vmem:[%s1 + $0xf8] sm:$0xff]
  %v1458 = vld [vmem:[%s1 + $0x100] sm:$0xff]
  %v1459 = vld [vmem:[%s1 + $0x108] sm:$0xff]
  %v1460 = vld [vmem:[%s1 + $0x110] sm:$0xff]
  %v1461 = vld [vmem:[%s1 + $0x118] sm:$0xff]
  %v1462 = vld [vmem:[%s1 + $0x120] sm:$0xff]
  %v1463 = vld [vmem:[%s1 + $0x128] sm:$0xff]
  %v1464 = vld [vmem:[%s1 + $0x130] sm:$0xff]
  %v1465 = vld [vmem:[%s1 + $0x138] sm:$0xff]
  %v1466 = vld [vmem:[%s1 + $0x140] sm:$0xff]
  %v1467 = vld [vmem:[%s1 + $0x148] sm:$0xff]
  %v1468 = vld [vmem:[%s1 + $0x150] sm:$0xff]
  %v1469 = vld [vmem:[%s1 + $0x158] sm:$0xff]
  %v1470 = vld [vmem:[%s1 + $0x160] sm:$0xff]
  %v1471 = vld [vmem:[%s1 + $0x168] sm:$0xff]
  %v1472 = vld [vmem:[%s1 + $0x170] sm:$0xff]
  %v1473 = vld [vmem:[%s1 + $0x178] sm:$0xff]
  %v1474 = vld [vmem:[%s2] sm:$0x7]
  %v1476 = vlaneseq
  %v1477 = vshrl.u32 %v1476, 7
  %v1478 = vsub.s32 0, %v1477
  %v1479 = vrot.slane %v1474, %v1478
  %v1480 = vlaneseq
  %v1481 = vshrl.u32 %v1480, 7
  %v1482 = vsub.s32 1, %v1481
  %v1483 = vrot.slane %v1474, %v1482
  %v1484 = vlaneseq
  %v1485 = vshrl.u32 %v1484, 7
  %v1486 = vsub.s32 2, %v1485
  %v1487 = vrot.slane %v1474, %v1486
  %1491 = vmatprep.subr.mxu0 %v1427
  %1492 = vmatpush1.msra.mxu0 %v1426
  %1493 = vmatprep.subr.mxu0 %v1430
  %1494 = vmatpush1.msra.mxu0 %v1429
  %1495 = vmatprep.subr.mxu0 %v1433
  %1496 = vmatpush1.msra.mxu0 %v1432
  %1497 = vmatprep.subr.mxu0 %v1436
  %1498 = vmatpush1.msra.mxu0 %v1435
  %1499 = vmatprep.subr.mxu0 %v1439
  %1500 = vmatpush1.msra.mxu0 %v1438
  %1501 = vmatprep.subr.mxu0 %v1442
  %1502 = vmatpush1.msra.mxu0 %v1441
  %1503 = vmatprep.subr.mxu0 %v1445
  %1504 = vmatpush1.msra.mxu0 %v1444
  %1505 = vmatprep.subr.mxu0 %v1448
  %1506 = vmatpush1.msra.mxu0 %v1447
  %1507 = vmatprep.subr.mxu0 %v1451
  %1508 = vmatpush1.msra.mxu0 %v1450
  %1509 = vmatprep.subr.mxu0 %v1454
  %1510 = vmatpush1.msra.mxu0 %v1453
  %1511 = vmatprep.subr.mxu0 %v1457
  %1512 = vmatpush1.msra.mxu0 %v1456
  %1513 = vmatprep.subr.mxu0 %v1460
  %1514 = vmatpush1.msra.mxu0 %v1459
  %1515 = vmatprep.subr.mxu0 %v1463
  %1516 = vmatpush1.msra.mxu0 %v1462
  %1517 = vmatprep.subr.mxu0 %v1466
  %1518 = vmatpush1.msra.mxu0 %v1465
  %1519 = vmatprep.subr.mxu0 %v1469
  %1520 = vmatpush1.msra.mxu0 %v1468
  %1521 = vmatprep.subr.mxu0 %v1472
  %1522 = vmatpush1.msra.mxu0 %v1471
  %1523 = vmatprep.subr.mxu0 0.0
  %1524 = vmatpush1.msra.mxu0 0.0
  %1525 = vmatprep.subr.mxu0 0.0
  %1526 = vmatpush1.msra.mxu0 0.0
  %1527 = vmatprep.subr.mxu0 0.0
  %1528 = vmatpush1.msra.mxu0 0.0
  %1529 = vmatprep.subr.mxu0 0.0
  %1530 = vmatpush1.msra.mxu0 0.0
  %1531 = vmatprep.subr.mxu0 0.0
  %1532 = vmatpush1.msra.mxu0 0.0
  %1533 = vmatprep.subr.mxu0 0.0
  %1534 = vmatpush1.msra.mxu0 0.0
  %1535 = vmatprep.subr.mxu0 0.0
  %1536 = vmatpush1.msra.mxu0 0.0
  %1537 = vmatprep.subr.mxu0 0.0
  %1538 = vmatpush1.msra.mxu0 0.0
  %1539 = vmatprep.subr.mxu0 0.0
  %1540 = vmatpush1.msra.mxu0 0.0
  %1541 = vmatprep.subr.mxu0 0.0
  %1542 = vmatpush1.msra.mxu0 0.0
  %1543 = vmatprep.subr.mxu0 0.0
  %1544 = vmatpush1.msra.mxu0 0.0
  %1545 = vmatprep.subr.mxu0 0.0
  %1546 = vmatpush1.msra.mxu0 0.0
  %1547 = vmatprep.subr.mxu0 0.0
  %1548 = vmatpush1.msra.mxu0 0.0
  %1549 = vmatprep.subr.mxu0 0.0
  %1550 = vmatpush1.msra.mxu0 0.0
  %1551 = vmatprep.subr.mxu0 0.0
  %1552 = vmatpush1.msra.mxu0 0.0
  %1553 = vmatprep.subr.mxu0 0.0
  %1554 = vmatpush1.msra.mxu0 0.0
  %1555 = vmatprep.mubr.f32.mxu0 0.0
  %1556 = vmatmul.mubr.f32.gmra.mrb[0].mxu0 %v1419
  %v1557 = vpop.f32.mrb[0].mxu0
  %v1558 = vadd.f32 %v1479, %v1557
  %v1559 = vpop.f32.mrb[0].mxu0
  %v1560 = vadd.f32 %v1483, %v1559
  %1561 = vdwg.mxu0
  %1562 = vmatprep.subr.mxu0 0.0
  %1563 = vmatpush1.msra.mxu0 %v1428
  %1564 = vmatprep.subr.mxu0 0.0
  %1565 = vmatpush1.msra.mxu0 %v1431
  %1566 = vmatprep.subr.mxu0 0.0
  %1567 = vmatpush1.msra.mxu0 %v1434
  %1568 = vmatprep.subr.mxu0 0.0
  %1569 = vmatpush1.msra.mxu0 %v1437
  %1570 = vmatprep.subr.mxu0 0.0
  %1571 = vmatpush1.msra.mxu0 %v1440
  %1572 = vmatprep.subr.mxu0 0.0
  %1573 = vmatpush1.msra.mxu0 %v1443
  %1574 = vmatprep.subr.mxu0 0.0
  %1575 = vmatpush1.msra.mxu0 %v1446
  %1576 = vmatprep.subr.mxu0 0.0
  %1577 = vmatpush1.msra.mxu0 %v1449
  %1578 = vmatprep.subr.mxu0 0.0
  %1579 = vmatpush1.msra.mxu0 %v1452
  %1580 = vmatprep.subr.mxu0 0.0
  %1581 = vmatpush1.msra.mxu0 %v1455
  %1582 = vmatprep.subr.mxu0 0.0
  %1583 = vmatpush1.msra.mxu0 %v1458
  %1584 = vmatprep.subr.mxu0 0.0
  %1585 = vmatpush1.msra.mxu0 %v1461
  %1586 = vmatprep.subr.mxu0 0.0
  %1587 = vmatpush1.msra.mxu0 %v1464
  %1588 = vmatprep.subr.mxu0 0.0
  %1589 = vmatpush1.msra.mxu0 %v1467
  %1590 = vmatprep.subr.mxu0 0.0
  %1591 = vmatpush1.msra.mxu0 %v1470
  %1592 = vmatprep.subr.mxu0 0.0
  %1593 = vmatpush1.msra.mxu0 %v1473
  %1594 = vmatprep.subr.mxu0 0.0
  %1595 = vmatpush1.msra.mxu0 0.0
  %1596 = vmatprep.subr.mxu0 0.0
  %1597 = vmatpush1.msra.mxu0 0.0
  %1598 = vmatprep.subr.mxu0 0.0
  %1599 = vmatpush1.msra.mxu0 0.0
  %1600 = vmatprep.subr.mxu0 0.0
  %1601 = vmatpush1.msra.mxu0 0.0
  %1602 = vmatprep.subr.mxu0 0.0
  %1603 = vmatpush1.msra.mxu0 0.0
  %1604 = vmatprep.subr.mxu0 0.0
  %1605 = vmatpush1.msra.mxu0 0.0
  %1606 = vmatprep.subr.mxu0 0.0
  %1607 = vmatpush1.msra.mxu0 0.0
  %1608 = vmatprep.subr.mxu0 0.0
  %1609 = vmatpush1.msra.mxu0 0.0
  %1610 = vmatprep.subr.mxu0 0.0
  %1611 = vmatpush1.msra.mxu0 0.0
  %1612 = vmatprep.subr.mxu0 0.0
  %1613 = vmatpush1.msra.mxu0 0.0
  %1614 = vmatprep.subr.mxu0 0.0
  %1615 = vmatpush1.msra.mxu0 0.0
  %1616 = vmatprep.subr.mxu0 0.0
  %1617 = vmatpush1.msra.mxu0 0.0
  %1618 = vmatprep.subr.mxu0 0.0
  %1619 = vmatpush1.msra.mxu0 0.0
  %1620 = vmatprep.subr.mxu0 0.0
  %1621 = vmatpush1.msra.mxu0 0.0
  %1622 = vmatprep.subr.mxu0 0.0
  %1623 = vmatpush1.msra.mxu0 0.0
  %1624 = vmatprep.subr.mxu0 0.0
  %1625 = vmatpush1.msra.mxu0 0.0
  %1626 = vmatprep.mubr.f32.mxu0 0.0
  %1627 = vmatmul.mubr.f32.gmra.mrb[0].mxu0 %v1419
  %v1628 = vpop.f32.mrb[0].mxu0
  %v1629 = vadd.f32 %v1487, %v1628
  %v1630 = vpop.f32.mrb[0].mxu0
  %1631 = vdwg.mxu0
  %v1632 = vadd.f32 %v1423, %v1558
  %v1633 = vxor.u32 %v1632, 2147483648
  %v1634 = vmul.f32 %v1633, 1.442695
  %v1635 = vpow.pop %v1634
  %v1636 = vadd.f32 %v1635, 1.0
  %v1637 = vrcp.pop %v1636
  %v1638 = vmul.f32 1.0, %v1637
  %v1639 = vadd.f32 %v1424, %v1560
  %v1640 = vxor.u32 %v1639, 2147483648
  %v1641 = vmul.f32 %v1640, 1.442695
  %v1642 = vpow.pop %v1641
  %v1643 = vadd.f32 %v1642, 1.0
  %v1644 = vrcp.pop %v1643
  %v1645 = vmul.f32 1.0, %v1644
  %v1646 = vmul.f32 %v1638, %v1629
  %v1647 = vadd.f32 %v1425, %v1646
  %v1648 = vtanh.pop %v1647
  %v1649 = vsub.f32 1.0, %v1645
  %v1650 = vmul.f32 %v1649, %v1648
  %v1651 = vmul.f32 %v1645, %v1419
  %v1652 = vadd.f32 %v1650, %v1651
  %s1653 = scalar_lea.vmem %s4, 48
  %1654 = vst [vmem:[%s1653] sm:$0xff] %v1652
  %s1655 = scalar_lea.vmem %s0, 168
  %v1656 = vld [vmem:[%s1655] sm:$0xff]
  %v1657 = vld [vmem:[%s1655 + $0x8] sm:$0xff]
  %v1658 = vld [vmem:[%s1655 + $0x10] sm:$0xff]
  %v1659 = vld [vmem:[%s1] sm:$0xff]
  %v1660 = vld [vmem:[%s1 + $0x8] sm:$0xff]
  %v1661 = vld [vmem:[%s1 + $0x10] sm:$0xff]
  %v1662 = vld [vmem:[%s1 + $0x18] sm:$0xff]
  %v1663 = vld [vmem:[%s1 + $0x20] sm:$0xff]
  %v1664 = vld [vmem:[%s1 + $0x28] sm:$0xff]
  %v1665 = vld [vmem:[%s1 + $0x30] sm:$0xff]
  %v1666 = vld [vmem:[%s1 + $0x38] sm:$0xff]
  %v1667 = vld [vmem:[%s1 + $0x40] sm:$0xff]
  %v1668 = vld [vmem:[%s1 + $0x48] sm:$0xff]
  %v1669 = vld [vmem:[%s1 + $0x50] sm:$0xff]
  %v1670 = vld [vmem:[%s1 + $0x58] sm:$0xff]
  %v1671 = vld [vmem:[%s1 + $0x60] sm:$0xff]
  %v1672 = vld [vmem:[%s1 + $0x68] sm:$0xff]
  %v1673 = vld [vmem:[%s1 + $0x70] sm:$0xff]
  %v1674 = vld [vmem:[%s1 + $0x78] sm:$0xff]
  %v1675 = vld [vmem:[%s1 + $0x80] sm:$0xff]
  %v1676 = vld [vmem:[%s1 + $0x88] sm:$0xff]
  %v1677 = vld [vmem:[%s1 + $0x90] sm:$0xff]
  %v1678 = vld [vmem:[%s1 + $0x98] sm:$0xff]
  %v1679 = vld [vmem:[%s1 + $0xa0] sm:$0xff]
  %v1680 = vld [vmem:[%s1 + $0xa8] sm:$0xff]
  %v1681 = vld [vmem:[%s1 + $0xb0] sm:$0xff]
  %v1682 = vld [vmem:[%s1 + $0xb8] sm:$0xff]
  %v1683 = vld [vmem:[%s1 + $0xc0] sm:$0xff]
  %v1684 = vld [vmem:[%s1 + $0xc8] sm:$0xff]
  %v1685 = vld [vmem:[%s1 + $0xd0] sm:$0xff]
  %v1686 = vld [vmem:[%s1 + $0xd8] sm:$0xff]
  %v1687 = vld [vmem:[%s1 + $0xe0] sm:$0xff]
  %v1688 = vld [vmem:[%s1 + $0xe8] sm:$0xff]
  %v1689 = vld [vmem:[%s1 + $0xf0] sm:$0xff]
  %v1690 = vld [vmem:[%s1 + $0xf8] sm:$0xff]
  %v1691 = vld [vmem:[%s1 + $0x100] sm:$0xff]
  %v1692 = vld [vmem:[%s1 + $0x108] sm:$0xff]
  %v1693 = vld [vmem:[%s1 + $0x110] sm:$0xff]
  %v1694 = vld [vmem:[%s1 + $0x118] sm:$0xff]
  %v1695 = vld [vmem:[%s1 + $0x120] sm:$0xff]
  %v1696 = vld [vmem:[%s1 + $0x128] sm:$0xff]
  %v1697 = vld [vmem:[%s1 + $0x130] sm:$0xff]
  %v1698 = vld [vmem:[%s1 + $0x138] sm:$0xff]
  %v1699 = vld [vmem:[%s1 + $0x140] sm:$0xff]
  %v1700 = vld [vmem:[%s1 + $0x148] sm:$0xff]
  %v1701 = vld [vmem:[%s1 + $0x150] sm:$0xff]
  %v1702 = vld [vmem:[%s1 + $0x158] sm:$0xff]
  %v1703 = vld [vmem:[%s1 + $0x160] sm:$0xff]
  %v1704 = vld [vmem:[%s1 + $0x168] sm:$0xff]
  %v1705 = vld [vmem:[%s1 + $0x170] sm:$0xff]
  %v1706 = vld [vmem:[%s1 + $0x178] sm:$0xff]
  %v1707 = vld [vmem:[%s2] sm:$0x7]
  %v1709 = vlaneseq
  %v1710 = vshrl.u32 %v1709, 7
  %v1711 = vsub.s32 0, %v1710
  %v1712 = vrot.slane %v1707, %v1711
  %v1713 = vlaneseq
  %v1714 = vshrl.u32 %v1713, 7
  %v1715 = vsub.s32 1, %v1714
  %v1716 = vrot.slane %v1707, %v1715
  %v1717 = vlaneseq
  %v1718 = vshrl.u32 %v1717, 7
  %v1719 = vsub.s32 2, %v1718
  %v1720 = vrot.slane %v1707, %v1719
  %1724 = vmatprep.subr.mxu0 %v1660
  %1725 = vmatpush1.msra.mxu0 %v1659
  %1726 = vmatprep.subr.mxu0 %v1663
  %1727 = vmatpush1.msra.mxu0 %v1662
  %1728 = vmatprep.subr.mxu0 %v1666
  %1729 = vmatpush1.msra.mxu0 %v1665
  %1730 = vmatprep.subr.mxu0 %v1669
  %1731 = vmatpush1.msra.mxu0 %v1668
  %1732 = vmatprep.subr.mxu0 %v1672
  %1733 = vmatpush1.msra.mxu0 %v1671
  %1734 = vmatprep.subr.mxu0 %v1675
  %1735 = vmatpush1.msra.mxu0 %v1674
  %1736 = vmatprep.subr.mxu0 %v1678
  %1737 = vmatpush1.msra.mxu0 %v1677
  %1738 = vmatprep.subr.mxu0 %v1681
  %1739 = vmatpush1.msra.mxu0 %v1680
  %1740 = vmatprep.subr.mxu0 %v1684
  %1741 = vmatpush1.msra.mxu0 %v1683
  %1742 = vmatprep.subr.mxu0 %v1687
  %1743 = vmatpush1.msra.mxu0 %v1686
  %1744 = vmatprep.subr.mxu0 %v1690
  %1745 = vmatpush1.msra.mxu0 %v1689
  %1746 = vmatprep.subr.mxu0 %v1693
  %1747 = vmatpush1.msra.mxu0 %v1692
  %1748 = vmatprep.subr.mxu0 %v1696
  %1749 = vmatpush1.msra.mxu0 %v1695
  %1750 = vmatprep.subr.mxu0 %v1699
  %1751 = vmatpush1.msra.mxu0 %v1698
  %1752 = vmatprep.subr.mxu0 %v1702
  %1753 = vmatpush1.msra.mxu0 %v1701
  %1754 = vmatprep.subr.mxu0 %v1705
  %1755 = vmatpush1.msra.mxu0 %v1704
  %1756 = vmatprep.subr.mxu0 0.0
  %1757 = vmatpush1.msra.mxu0 0.0
  %1758 = vmatprep.subr.mxu0 0.0
  %1759 = vmatpush1.msra.mxu0 0.0
  %1760 = vmatprep.subr.mxu0 0.0
  %1761 = vmatpush1.msra.mxu0 0.0
  %1762 = vmatprep.subr.mxu0 0.0
  %1763 = vmatpush1.msra.mxu0 0.0
  %1764 = vmatprep.subr.mxu0 0.0
  %1765 = vmatpush1.msra.mxu0 0.0
  %1766 = vmatprep.subr.mxu0 0.0
  %1767 = vmatpush1.msra.mxu0 0.0
  %1768 = vmatprep.subr.mxu0 0.0
  %1769 = vmatpush1.msra.mxu0 0.0
  %1770 = vmatprep.subr.mxu0 0.0
  %1771 = vmatpush1.msra.mxu0 0.0
  %1772 = vmatprep.subr.mxu0 0.0
  %1773 = vmatpush1.msra.mxu0 0.0
  %1774 = vmatprep.subr.mxu0 0.0
  %1775 = vmatpush1.msra.mxu0 0.0
  %1776 = vmatprep.subr.mxu0 0.0
  %1777 = vmatpush1.msra.mxu0 0.0
  %1778 = vmatprep.subr.mxu0 0.0
  %1779 = vmatpush1.msra.mxu0 0.0
  %1780 = vmatprep.subr.mxu0 0.0
  %1781 = vmatpush1.msra.mxu0 0.0
  %1782 = vmatprep.subr.mxu0 0.0
  %1783 = vmatpush1.msra.mxu0 0.0
  %1784 = vmatprep.subr.mxu0 0.0
  %1785 = vmatpush1.msra.mxu0 0.0
  %1786 = vmatprep.subr.mxu0 0.0
  %1787 = vmatpush1.msra.mxu0 0.0
  %1788 = vmatprep.mubr.f32.mxu0 0.0
  %1789 = vmatmul.mubr.f32.gmra.mrb[0].mxu0 %v1652
  %v1790 = vpop.f32.mrb[0].mxu0
  %v1791 = vadd.f32 %v1712, %v1790
  %v1792 = vpop.f32.mrb[0].mxu0
  %v1793 = vadd.f32 %v1716, %v1792
  %1794 = vdwg.mxu0
  %1795 = vmatprep.subr.mxu0 0.0
  %1796 = vmatpush1.msra.mxu0 %v1661
  %1797 = vmatprep.subr.mxu0 0.0
  %1798 = vmatpush1.msra.mxu0 %v1664
  %1799 = vmatprep.subr.mxu0 0.0
  %1800 = vmatpush1.msra.mxu0 %v1667
  %1801 = vmatprep.subr.mxu0 0.0
  %1802 = vmatpush1.msra.mxu0 %v1670
  %1803 = vmatprep.subr.mxu0 0.0
  %1804 = vmatpush1.msra.mxu0 %v1673
  %1805 = vmatprep.subr.mxu0 0.0
  %1806 = vmatpush1.msra.mxu0 %v1676
  %1807 = vmatprep.subr.mxu0 0.0
  %1808 = vmatpush1.msra.mxu0 %v1679
  %1809 = vmatprep.subr.mxu0 0.0
  %1810 = vmatpush1.msra.mxu0 %v1682
  %1811 = vmatprep.subr.mxu0 0.0
  %1812 = vmatpush1.msra.mxu0 %v1685
  %1813 = vmatprep.subr.mxu0 0.0
  %1814 = vmatpush1.msra.mxu0 %v1688
  %1815 = vmatprep.subr.mxu0 0.0
  %1816 = vmatpush1.msra.mxu0 %v1691
  %1817 = vmatprep.subr.mxu0 0.0
  %1818 = vmatpush1.msra.mxu0 %v1694
  %1819 = vmatprep.subr.mxu0 0.0
  %1820 = vmatpush1.msra.mxu0 %v1697
  %1821 = vmatprep.subr.mxu0 0.0
  %1822 = vmatpush1.msra.mxu0 %v1700
  %1823 = vmatprep.subr.mxu0 0.0
  %1824 = vmatpush1.msra.mxu0 %v1703
  %1825 = vmatprep.subr.mxu0 0.0
  %1826 = vmatpush1.msra.mxu0 %v1706
  %1827 = vmatprep.subr.mxu0 0.0
  %1828 = vmatpush1.msra.mxu0 0.0
  %1829 = vmatprep.subr.mxu0 0.0
  %1830 = vmatpush1.msra.mxu0 0.0
  %1831 = vmatprep.subr.mxu0 0.0
  %1832 = vmatpush1.msra.mxu0 0.0
  %1833 = vmatprep.subr.mxu0 0.0
  %1834 = vmatpush1.msra.mxu0 0.0
  %1835 = vmatprep.subr.mxu0 0.0
  %1836 = vmatpush1.msra.mxu0 0.0
  %1837 = vmatprep.subr.mxu0 0.0
  %1838 = vmatpush1.msra.mxu0 0.0
  %1839 = vmatprep.subr.mxu0 0.0
  %1840 = vmatpush1.msra.mxu0 0.0
  %1841 = vmatprep.subr.mxu0 0.0
  %1842 = vmatpush1.msra.mxu0 0.0
  %1843 = vmatprep.subr.mxu0 0.0
  %1844 = vmatpush1.msra.mxu0 0.0
  %1845 = vmatprep.subr.mxu0 0.0
  %1846 = vmatpush1.msra.mxu0 0.0
  %1847 = vmatprep.subr.mxu0 0.0
  %1848 = vmatpush1.msra.mxu0 0.0
  %1849 = vmatprep.subr.mxu0 0.0
  %1850 = vmatpush1.msra.mxu0 0.0
  %1851 = vmatprep.subr.mxu0 0.0
  %1852 = vmatpush1.msra.mxu0 0.0
  %1853 = vmatprep.subr.mxu0 0.0
  %1854 = vmatpush1.msra.mxu0 0.0
  %1855 = vmatprep.subr.mxu0 0.0
  %1856 = vmatpush1.msra.mxu0 0.0
  %1857 = vmatprep.subr.mxu0 0.0
  %1858 = vmatpush1.msra.mxu0 0.0
  %1859 = vmatprep.mubr.f32.mxu0 0.0
  %1860 = vmatmul.mubr.f32.gmra.mrb[0].mxu0 %v1652
  %v1861 = vpop.f32.mrb[0].mxu0
  %v1862 = vadd.f32 %v1720, %v1861
  %v1863 = vpop.f32.mrb[0].mxu0
  %1864 = vdwg.mxu0
  %v1865 = vadd.f32 %v1656, %v1791
  %v1866 = vxor.u32 %v1865, 2147483648
  %v1867 = vmul.f32 %v1866, 1.442695
  %v1868 = vpow.pop %v1867
  %v1869 = vadd.f32 %v1868, 1.0
  %v1870 = vrcp.pop %v1869
  %v1871 = vmul.f32 1.0, %v1870
  %v1872 = vadd.f32 %v1657, %v1793
  %v1873 = vxor.u32 %v1872, 2147483648
  %v1874 = vmul.f32 %v1873, 1.442695
  %v1875 = vpow.pop %v1874
  %v1876 = vadd.f32 %v1875, 1.0
  %v1877 = vrcp.pop %v1876
  %v1878 = vmul.f32 1.0, %v1877
  %v1879 = vmul.f32 %v1871, %v1862
  %v1880 = vadd.f32 %v1658, %v1879
  %v1881 = vtanh.pop %v1880
  %v1882 = vsub.f32 1.0, %v1878
  %v1883 = vmul.f32 %v1882, %v1881
  %v1884 = vmul.f32 %v1878, %v1652
  %v1885 = vadd.f32 %v1883, %v1884
  %s1886 = scalar_lea.vmem %s4, 56
  %1887 = vst [vmem:[%s1886] sm:$0xff] %v1885
  %1888 = vst [vmem:[#allocation2] sm:$0xff] %v1885
  // Predicated region
  $region22: #{model_forward.6} parent=0 // pred_check
    %p1889 = pneg %p19
  $region23: #{model_forward.6} parent=0 // pred_check_branch
    %1891 = sbr.rel (%p1889) target = $region25
  $region24: #{model_forward.6} parent=0 // pred_region
    %1892 = vst [vmem:[%s5] sm:$0xff] %v1885
  $region25: #{model_forward.6} parent=0 // pred_fallthru
    _
  // Predicated region
  $region26: #{model_forward.6} parent=0 // pred_check
    _
  $region27: #{model_forward.6} parent=0 // pred_check_branch
    %1894 = sbr.rel (0) target = $region29
  $region28: #{model_forward.6} parent=0 // pred_region
    _
  $region29: #{model_forward.6} parent=0 // pred_fallthru
    _
  // Predicated region
  $region30: #{model_forward.6} parent=0 // pred_check
    _
  $region31: #{model_forward.6} parent=0 // pred_check_branch
    %1896 = sbr.rel (0) target = $region33
  $region32: #{model_forward.6} parent=0 // pred_region
    _
  $region33: #{model_forward.6} parent=0 // pred_fallthru
    _
  // Predicated region
  $region34: #{model_forward.6} parent=0 // pred_check
    _
  $region35: #{model_forward.6} parent=0 // pred_check_branch
    %1898 = sbr.rel (0) target = $region37
  $region36: #{model_forward.6} parent=0 // pred_region
    _
  $region37: #{model_forward.6} parent=0 // pred_fallthru
    _
  // Predicated region
  $region38: #{model_forward.6} parent=0 // pred_check
    _
  $region39: #{model_forward.6} parent=0 // pred_check_branch
    %1900 = sbr.rel (0) target = $region41
  $region40: #{model_forward.6} parent=0 // pred_region
    _
  $region41: #{model_forward.6} parent=0 // pred_fallthru
    _

</llo_original>
